<compile_context>
chip_gen: v7x
topology: tpu7x:2x2x1
jax: 0.10.0
libtpu: 0.0.40
codegen_flags: <defaults>
</compile_context>

<pallas_src>
import jax
import jax.numpy as jnp
from jax.experimental import pallas as pl
from jax.experimental.pallas import tpu as pltpu  # noqa: F401  (TPU backend)


# --------------------- fused GRU-stack + Linear kernel -----------------------
def _make_fused_gru_kernel(n_layers, T, B, H):
    """Build a kernel closing over static (n_layers, T, B, H).

    Kernel ref order:
      lengths(B,1), x_flat(T*B,E),
      [w_ih(D_l,3H), w_hh(H,3H), b_i(1,3H), b_hn(1,H)] * n_layers,
      out_w(H,C), out_b(1,C),
      logits(B,C)                     <- output
    (No VMEM scratch: all inter-layer activations stay in vregs.)
    """

    def kernel(*refs):
        len_ref, x_ref = refs[0], refs[1]
        layer_refs = [refs[2 + 4 * l: 2 + 4 * (l + 1)] for l in range(n_layers)]
        ow_ref, ob_ref = refs[2 + 4 * n_layers], refs[3 + 4 * n_layers]
        o_ref = refs[4 + 4 * n_layers]

        lengths = len_ref[...]                                    # (B,1) int32
        # Packed-sequence freeze masks, hoisted once and reused across layers.
        masks = [(lengths > t).astype(jnp.float32) for t in range(T)]  # (B,1)

        # Load all weights once.
        w_ih = [layer_refs[l][0][...] for l in range(n_layers)]   # (D_l, 3H)
        w_hh = [layer_refs[l][1][...] for l in range(n_layers)]   # (H,   3H)
        b_i = [layer_refs[l][2][...] for l in range(n_layers)]    # (1,   3H)  (b_ih + b_hh[r|z])
        b_hn = [layer_refs[l][3][...] for l in range(n_layers)]   # (1,   H)   (n-gate hidden bias)

        # ---- layer 0 input projection: ONE batched MXU matmul, hoisted ------
        gx0 = jnp.dot(x_ref[...], w_ih[0],
                      preferred_element_type=jnp.float32) + b_i[0]   # (T*B,3H)
        gx0_t = [gx0[t * B:(t + 1) * B, :] for t in range(T)]        # (B,3H) each

        def gru_step(l, t, gx_t, h_prev):
            gh = jnp.dot(h_prev, w_hh[l],
                         preferred_element_type=jnp.float32)          # (B,3H)
            g_r, g_z, g_n = gx_t[:, :H], gx_t[:, H:2 * H], gx_t[:, 2 * H:]
            gh_r, gh_z, gh_n = gh[:, :H], gh[:, H:2 * H], gh[:, 2 * H:]
            r = jax.nn.sigmoid(g_r + gh_r)
            z = jax.nn.sigmoid(g_z + gh_z)
            n = jnp.tanh(g_n + r * (gh_n + b_hn[l]))
            h_new = n + z * (h_prev - n)                              # (1-z)n + z h
            # packed-sequence semantics: freeze h past this example's length
            return h_prev + masks[t] * (h_new - h_prev)

        # ---- layer-wavefront schedule: T + L - 1 diagonal stages ------------
        h = [jnp.zeros((B, H), jnp.float32) for _ in range(n_layers)]
        outs = [[None] * T for _ in range(n_layers)]   # register-resident history
        for d in range(T + n_layers - 1):
            for l in range(n_layers):
                t = d - l
                if 0 <= t < T:
                    if l == 0:
                        gx_t = gx0_t[t]
                    else:
                        gx_t = jnp.dot(outs[l - 1][t], w_ih[l],
                                       preferred_element_type=jnp.float32) + b_i[l]
                    h[l] = gru_step(l, t, gx_t, h[l])
                    outs[l][t] = h[l]

        # logit = out(hidden[-1]) fused into the same kernel (no extra launch)
        o_ref[...] = (jnp.dot(h[n_layers - 1], ow_ref[...],
                              preferred_element_type=jnp.float32) + ob_ref[...])

    return kernel


# ------------------------------ full forward ---------------------------------
def my_model_forward(params, x_ids, seq_lengths):
    # embedding lookup (glue); x.t() -> time-major; flatten for batched matmul
    emb = jnp.take(params["embed"], x_ids, axis=0)            # (B, T, E)
    x = jnp.transpose(emb, (1, 0, 2)).astype(jnp.float32)     # (T, B, E)
    T, B, E = x.shape
    x_flat = x.reshape(T * B, E)                              # (T*B, E)
    lengths = seq_lengths.astype(jnp.int32).reshape(-1, 1)    # (B, 1)

    n_layers = len(params["gru"])
    H = params["gru"][-1]["w_hh"].shape[0]
    C = params["out_w"].shape[-1]

    flat = []
    for layer in params["gru"]:
        b_ih, b_hh = layer["b_ih"], layer["b_hh"]
        # fold the r/z columns of b_hh into the input bias (param-prep time);
        # the n-gate hidden bias must stay separate (it sits inside r*(...)).
        b_i = jnp.concatenate([b_ih[:, :2 * H] + b_hh[:, :2 * H],
                               b_ih[:, 2 * H:]], axis=1)      # (1, 3H)
        b_hn = b_hh[:, 2 * H:]                                # (1, H)
        flat += [layer["w_ih"], layer["w_hh"], b_i, b_hn]

    return pl.pallas_call(
        _make_fused_gru_kernel(n_layers, T, B, H),
        out_shape=jax.ShapeDtypeStruct((B, C), jnp.float32),
    )(lengths, x_flat, *flat, params["out_w"], params["out_b"])


# --------------------------- pure-JAX reference -------------------------------
def ref_forward(params, x_ids, seq_lengths):
    emb = jnp.take(params["embed"], x_ids, axis=0)
    x = jnp.transpose(emb, (1, 0, 2)).astype(jnp.float32)
    T, B, _ = x.shape
    lengths = seq_lengths.astype(jnp.int32)
    inp = x
    h_last = None
    for layer in params["gru"]:
        w_ih, w_hh = layer["w_ih"], layer["w_hh"]
        b_ih, b_hh = layer["b_ih"], layer["b_hh"]
        Hd = w_hh.shape[0]

        def step(h, xt_t, w_ih=w_ih, w_hh=w_hh, b_ih=b_ih, b_hh=b_hh, Hd=Hd):
            xt, t = xt_t
            gx = xt @ w_ih + b_ih
            gh = h @ w_hh + b_hh
            r = jax.nn.sigmoid(gx[:, :Hd] + gh[:, :Hd])
            z = jax.nn.sigmoid(gx[:, Hd:2 * Hd] + gh[:, Hd:2 * Hd])
            n = jnp.tanh(gx[:, 2 * Hd:] + r * gh[:, 2 * Hd:])
            h_new = (1.0 - z) * n + z * h
            h_t = jnp.where((lengths > t)[:, None], h_new, h)
            return h_t, h_t

        h0 = jnp.zeros((B, Hd), jnp.float32)
        h_last, ys = jax.lax.scan(step, h0, (inp, jnp.arange(T)))
        inp = ys
    return h_last @ params["out_w"] + params["out_b"]


# ---------------------------------- params ------------------------------------
def init_params(key, n_layers, hidden_dim, n_vocab, embed_dim, n_classes):
    keys = jax.random.split(key, 3 + 4 * n_layers)
    params = {"embed": 0.1 * jax.random.normal(keys[0], (n_vocab, embed_dim), jnp.float32)}
    gru, ki, in_dim = [], 1, embed_dim
    for _ in range(n_layers):
        # gate-concatenated layout: columns [0:H]=r, [H:2H]=z, [2H:3H]=n
        w_ih = 0.1 * jax.random.normal(keys[ki + 0], (in_dim, 3 * hidden_dim), jnp.float32)
        w_hh = 0.1 * jax.random.normal(keys[ki + 1], (hidden_dim, 3 * hidden_dim), jnp.float32)
        b_ih = 0.1 * jax.random.normal(keys[ki + 2], (1, 3 * hidden_dim), jnp.float32)
        b_hh = 0.1 * jax.random.normal(keys[ki + 3], (1, 3 * hidden_dim), jnp.float32)
        gru.append(dict(w_ih=w_ih, w_hh=w_hh, b_ih=b_ih, b_hh=b_hh))
        ki += 4
        in_dim = hidden_dim
    params["gru"] = gru
    params["out_w"] = 0.1 * jax.random.normal(keys[ki], (hidden_dim, n_classes), jnp.float32)
    params["out_b"] = 0.1 * jax.random.normal(keys[ki + 1], (1, n_classes), jnp.float32)
    return params


if __name__ == "__main__":
    n_layers, hidden_dim, n_vocab, embed_dim, n_classes = 2, 32, 50, 16, 4
    B, T = 4, 8

    key = jax.random.PRNGKey(0)
    k_param, k_data = jax.random.split(key)
    params = init_params(k_param, n_layers, hidden_dim, n_vocab, embed_dim, n_classes)

    x_ids = jax.random.randint(k_data, (B, T), 0, n_vocab, dtype=jnp.int32)   # (B, T)
    seq_lengths = jnp.array([8, 7, 5, 3], dtype=jnp.int32)                    # sorted desc

    logits = jax.jit(my_model_forward)(params, x_ids, seq_lengths)
    logits = jax.block_until_ready(logits)

    ref = ref_forward(params, x_ids, seq_lengths)
    assert logits.shape == (B, n_classes)
    assert jnp.allclose(logits, ref, atol=1e-4, rtol=1e-4), "mismatch vs reference"

    print("KERNEL_OK")
</pallas_src>

<mosaic_0001>
module attributes {stable_mosaic.version = 11 : i64} {
  func.func @kernel(%arg0: memref<4x1xi32, #tpu.memory_space<vmem>>, %arg1: memref<32x16xf32, #tpu.memory_space<vmem>>, %arg2: memref<16x96xf32, #tpu.memory_space<vmem>>, %arg3: memref<32x96xf32, #tpu.memory_space<vmem>>, %arg4: memref<1x96xf32, #tpu.memory_space<vmem>>, %arg5: memref<1x32xf32, #tpu.memory_space<vmem>>, %arg6: memref<32x96xf32, #tpu.memory_space<vmem>>, %arg7: memref<32x96xf32, #tpu.memory_space<vmem>>, %arg8: memref<1x96xf32, #tpu.memory_space<vmem>>, %arg9: memref<1x32xf32, #tpu.memory_space<vmem>>, %arg10: memref<32x4xf32, #tpu.memory_space<vmem>>, %arg11: memref<1x4xf32, #tpu.memory_space<vmem>>, %arg12: memref<4x4xf32, #tpu.memory_space<vmem>>) attributes {dimension_semantics = [], scalar_prefetch = 0 : i64, scratch_operands = 0 : i64, tpu.core_type = #tpu.core_type<tc>} {
    %c0 = arith.constant 0 : index
    %c0_0 = arith.constant 0 : index
    %0 = vector.load %arg0[%c0, %c0_0] : memref<4x1xi32, #tpu.memory_space<vmem>>, vector<4x1xi32>
    %c0_i32 = arith.constant 0 : i32
    %1 = vector.broadcast %c0_i32 : i32 to vector<4x1xi32>
    %2 = arith.cmpi sgt, %0, %1 : vector<4x1xi32>
    %3 = arith.extui %2 : vector<4x1xi1> to vector<4x1xi32>
    %4 = arith.sitofp %3 : vector<4x1xi32> to vector<4x1xf32>
    %c1_i32 = arith.constant 1 : i32
    %5 = vector.broadcast %c1_i32 : i32 to vector<4x1xi32>
    %6 = arith.cmpi sgt, %0, %5 : vector<4x1xi32>
    %7 = arith.extui %6 : vector<4x1xi1> to vector<4x1xi32>
    %8 = arith.sitofp %7 : vector<4x1xi32> to vector<4x1xf32>
    %c2_i32 = arith.constant 2 : i32
    %9 = vector.broadcast %c2_i32 : i32 to vector<4x1xi32>
    %10 = arith.cmpi sgt, %0, %9 : vector<4x1xi32>
    %11 = arith.extui %10 : vector<4x1xi1> to vector<4x1xi32>
    %12 = arith.sitofp %11 : vector<4x1xi32> to vector<4x1xf32>
    %c3_i32 = arith.constant 3 : i32
    %13 = vector.broadcast %c3_i32 : i32 to vector<4x1xi32>
    %14 = arith.cmpi sgt, %0, %13 : vector<4x1xi32>
    %15 = arith.extui %14 : vector<4x1xi1> to vector<4x1xi32>
    %16 = arith.sitofp %15 : vector<4x1xi32> to vector<4x1xf32>
    %c4_i32 = arith.constant 4 : i32
    %17 = vector.broadcast %c4_i32 : i32 to vector<4x1xi32>
    %18 = arith.cmpi sgt, %0, %17 : vector<4x1xi32>
    %19 = arith.extui %18 : vector<4x1xi1> to vector<4x1xi32>
    %20 = arith.sitofp %19 : vector<4x1xi32> to vector<4x1xf32>
    %c5_i32 = arith.constant 5 : i32
    %21 = vector.broadcast %c5_i32 : i32 to vector<4x1xi32>
    %22 = arith.cmpi sgt, %0, %21 : vector<4x1xi32>
    %23 = arith.extui %22 : vector<4x1xi1> to vector<4x1xi32>
    %24 = arith.sitofp %23 : vector<4x1xi32> to vector<4x1xf32>
    %c6_i32 = arith.constant 6 : i32
    %25 = vector.broadcast %c6_i32 : i32 to vector<4x1xi32>
    %26 = arith.cmpi sgt, %0, %25 : vector<4x1xi32>
    %27 = arith.extui %26 : vector<4x1xi1> to vector<4x1xi32>
    %28 = arith.sitofp %27 : vector<4x1xi32> to vector<4x1xf32>
    %c7_i32 = arith.constant 7 : i32
    %29 = vector.broadcast %c7_i32 : i32 to vector<4x1xi32>
    %30 = arith.cmpi sgt, %0, %29 : vector<4x1xi32>
    %31 = arith.extui %30 : vector<4x1xi1> to vector<4x1xi32>
    %32 = arith.sitofp %31 : vector<4x1xi32> to vector<4x1xf32>
    %c0_1 = arith.constant 0 : index
    %c0_2 = arith.constant 0 : index
    %33 = vector.load %arg2[%c0_1, %c0_2] : memref<16x96xf32, #tpu.memory_space<vmem>>, vector<16x96xf32>
    %c0_3 = arith.constant 0 : index
    %c0_4 = arith.constant 0 : index
    %34 = vector.load %arg6[%c0_3, %c0_4] : memref<32x96xf32, #tpu.memory_space<vmem>>, vector<32x96xf32>
    %c0_5 = arith.constant 0 : index
    %c0_6 = arith.constant 0 : index
    %35 = vector.load %arg3[%c0_5, %c0_6] : memref<32x96xf32, #tpu.memory_space<vmem>>, vector<32x96xf32>
    %c0_7 = arith.constant 0 : index
    %c0_8 = arith.constant 0 : index
    %36 = vector.load %arg7[%c0_7, %c0_8] : memref<32x96xf32, #tpu.memory_space<vmem>>, vector<32x96xf32>
    %c0_9 = arith.constant 0 : index
    %c0_10 = arith.constant 0 : index
    %37 = vector.load %arg4[%c0_9, %c0_10] : memref<1x96xf32, #tpu.memory_space<vmem>>, vector<1x96xf32>
    %c0_11 = arith.constant 0 : index
    %c0_12 = arith.constant 0 : index
    %38 = vector.load %arg8[%c0_11, %c0_12] : memref<1x96xf32, #tpu.memory_space<vmem>>, vector<1x96xf32>
    %c0_13 = arith.constant 0 : index
    %c0_14 = arith.constant 0 : index
    %39 = vector.load %arg5[%c0_13, %c0_14] : memref<1x32xf32, #tpu.memory_space<vmem>>, vector<1x32xf32>
    %c0_15 = arith.constant 0 : index
    %c0_16 = arith.constant 0 : index
    %40 = vector.load %arg9[%c0_15, %c0_16] : memref<1x32xf32, #tpu.memory_space<vmem>>, vector<1x32xf32>
    %c0_17 = arith.constant 0 : index
    %c0_18 = arith.constant 0 : index
    %41 = vector.load %arg1[%c0_17, %c0_18] : memref<32x16xf32, #tpu.memory_space<vmem>>, vector<32x16xf32>
    %cst = arith.constant dense<0.000000e+00> : vector<32x96xf32>
    %42 = tpu.matmul %41, %33, %cst {dimension_numbers = #tpu.dot_dimension_numbers<[1], [0], [0], [1], [0, 0, 1, 1], [], []>} : vector<32x16xf32>, vector<16x96xf32>, vector<32x96xf32> -> vector<32x96xf32>
    %43 = vector.broadcast %37 : vector<1x96xf32> to vector<32x96xf32>
    %44 = arith.addf %42, %43 : vector<32x96xf32>
    %45 = vector.extract_strided_slice %44 {offsets = [0, 0], sizes = [4, 96], strides = [1, 1]} : vector<32x96xf32> to vector<4x96xf32>
    %46 = vector.extract_strided_slice %44 {offsets = [4, 0], sizes = [4, 96], strides = [1, 1]} : vector<32x96xf32> to vector<4x96xf32>
    %47 = vector.extract_strided_slice %44 {offsets = [8, 0], sizes = [4, 96], strides = [1, 1]} : vector<32x96xf32> to vector<4x96xf32>
    %48 = vector.extract_strided_slice %44 {offsets = [12, 0], sizes = [4, 96], strides = [1, 1]} : vector<32x96xf32> to vector<4x96xf32>
    %49 = vector.extract_strided_slice %44 {offsets = [16, 0], sizes = [4, 96], strides = [1, 1]} : vector<32x96xf32> to vector<4x96xf32>
    %50 = vector.extract_strided_slice %44 {offsets = [20, 0], sizes = [4, 96], strides = [1, 1]} : vector<32x96xf32> to vector<4x96xf32>
    %51 = vector.extract_strided_slice %44 {offsets = [24, 0], sizes = [4, 96], strides = [1, 1]} : vector<32x96xf32> to vector<4x96xf32>
    %52 = vector.extract_strided_slice %44 {offsets = [28, 0], sizes = [4, 96], strides = [1, 1]} : vector<32x96xf32> to vector<4x96xf32>
    %cst_19 = arith.constant 0.000000e+00 : f32
    %53 = vector.broadcast %cst_19 : f32 to vector<4x32xf32>
    %cst_20 = arith.constant 0.000000e+00 : f32
    %54 = vector.broadcast %cst_20 : f32 to vector<4x32xf32>
    %cst_21 = arith.constant dense<0.000000e+00> : vector<4x96xf32>
    %55 = tpu.matmul %53, %35, %cst_21 {dimension_numbers = #tpu.dot_dimension_numbers<[1], [0], [0], [1], [0, 0, 1, 1], [], []>} : vector<4x32xf32>, vector<32x96xf32>, vector<4x96xf32> -> vector<4x96xf32>
    %56 = vector.extract_strided_slice %45 {offsets = [0, 0], sizes = [4, 32], strides = [1, 1]} : vector<4x96xf32> to vector<4x32xf32>
    %57 = vector.extract_strided_slice %45 {offsets = [0, 32], sizes = [4, 32], strides = [1, 1]} : vector<4x96xf32> to vector<4x32xf32>
    %58 = vector.extract_strided_slice %45 {offsets = [0, 64], sizes = [4, 32], strides = [1, 1]} : vector<4x96xf32> to vector<4x32xf32>
    %59 = vector.extract_strided_slice %55 {offsets = [0, 0], sizes = [4, 32], strides = [1, 1]} : vector<4x96xf32> to vector<4x32xf32>
    %60 = vector.extract_strided_slice %55 {offsets = [0, 32], sizes = [4, 32], strides = [1, 1]} : vector<4x96xf32> to vector<4x32xf32>
    %61 = vector.extract_strided_slice %55 {offsets = [0, 64], sizes = [4, 32], strides = [1, 1]} : vector<4x96xf32> to vector<4x32xf32>
    %62 = arith.addf %56, %59 : vector<4x32xf32>
    %63 = arith.negf %62 : vector<4x32xf32>
    %64 = math.exp %63 : vector<4x32xf32>
    %cst_22 = arith.constant 1.000000e+00 : f32
    %65 = vector.broadcast %cst_22 : f32 to vector<4x32xf32>
    %66 = arith.addf %65, %64 : vector<4x32xf32>
    %67 = arith.divf %65, %66 : vector<4x32xf32>
    %68 = arith.addf %57, %60 : vector<4x32xf32>
    %69 = arith.negf %68 : vector<4x32xf32>
    %70 = math.exp %69 : vector<4x32xf32>
    %cst_23 = arith.constant 1.000000e+00 : f32
    %71 = vector.broadcast %cst_23 : f32 to vector<4x32xf32>
    %72 = arith.addf %71, %70 : vector<4x32xf32>
    %73 = arith.divf %71, %72 : vector<4x32xf32>
    %74 = vector.broadcast %39 : vector<1x32xf32> to vector<4x32xf32>
    %75 = arith.addf %61, %74 : vector<4x32xf32>
    %76 = arith.mulf %67, %75 : vector<4x32xf32>
    %77 = arith.addf %58, %76 : vector<4x32xf32>
    %78 = math.tanh %77 : vector<4x32xf32>
    %79 = arith.subf %53, %78 : vector<4x32xf32>
    %80 = arith.mulf %73, %79 : vector<4x32xf32>
    %81 = arith.addf %78, %80 : vector<4x32xf32>
    %82 = arith.subf %81, %53 : vector<4x32xf32>
    %83 = vector.broadcast %4 : vector<4x1xf32> to vector<4x32xf32>
    %84 = arith.mulf %83, %82 : vector<4x32xf32>
    %85 = arith.addf %53, %84 : vector<4x32xf32>
    %cst_24 = arith.constant dense<0.000000e+00> : vector<4x96xf32>
    %86 = tpu.matmul %85, %35, %cst_24 {dimension_numbers = #tpu.dot_dimension_numbers<[1], [0], [0], [1], [0, 0, 1, 1], [], []>} : vector<4x32xf32>, vector<32x96xf32>, vector<4x96xf32> -> vector<4x96xf32>
    %87 = vector.extract_strided_slice %46 {offsets = [0, 0], sizes = [4, 32], strides = [1, 1]} : vector<4x96xf32> to vector<4x32xf32>
    %88 = vector.extract_strided_slice %46 {offsets = [0, 32], sizes = [4, 32], strides = [1, 1]} : vector<4x96xf32> to vector<4x32xf32>
    %89 = vector.extract_strided_slice %46 {offsets = [0, 64], sizes = [4, 32], strides = [1, 1]} : vector<4x96xf32> to vector<4x32xf32>
    %90 = vector.extract_strided_slice %86 {offsets = [0, 0], sizes = [4, 32], strides = [1, 1]} : vector<4x96xf32> to vector<4x32xf32>
    %91 = vector.extract_strided_slice %86 {offsets = [0, 32], sizes = [4, 32], strides = [1, 1]} : vector<4x96xf32> to vector<4x32xf32>
    %92 = vector.extract_strided_slice %86 {offsets = [0, 64], sizes = [4, 32], strides = [1, 1]} : vector<4x96xf32> to vector<4x32xf32>
    %93 = arith.addf %87, %90 : vector<4x32xf32>
    %94 = arith.negf %93 : vector<4x32xf32>
    %95 = math.exp %94 : vector<4x32xf32>
    %cst_25 = arith.constant 1.000000e+00 : f32
    %96 = vector.broadcast %cst_25 : f32 to vector<4x32xf32>
    %97 = arith.addf %96, %95 : vector<4x32xf32>
    %98 = arith.divf %96, %97 : vector<4x32xf32>
    %99 = arith.addf %88, %91 : vector<4x32xf32>
    %100 = arith.negf %99 : vector<4x32xf32>
    %101 = math.exp %100 : vector<4x32xf32>
    %cst_26 = arith.constant 1.000000e+00 : f32
    %102 = vector.broadcast %cst_26 : f32 to vector<4x32xf32>
    %103 = arith.addf %102, %101 : vector<4x32xf32>
    %104 = arith.divf %102, %103 : vector<4x32xf32>
    %105 = vector.broadcast %39 : vector<1x32xf32> to vector<4x32xf32>
    %106 = arith.addf %92, %105 : vector<4x32xf32>
    %107 = arith.mulf %98, %106 : vector<4x32xf32>
    %108 = arith.addf %89, %107 : vector<4x32xf32>
    %109 = math.tanh %108 : vector<4x32xf32>
    %110 = arith.subf %85, %109 : vector<4x32xf32>
    %111 = arith.mulf %104, %110 : vector<4x32xf32>
    %112 = arith.addf %109, %111 : vector<4x32xf32>
    %113 = arith.subf %112, %85 : vector<4x32xf32>
    %114 = vector.broadcast %8 : vector<4x1xf32> to vector<4x32xf32>
    %115 = arith.mulf %114, %113 : vector<4x32xf32>
    %116 = arith.addf %85, %115 : vector<4x32xf32>
    %cst_27 = arith.constant dense<0.000000e+00> : vector<4x96xf32>
    %117 = tpu.matmul %85, %34, %cst_27 {dimension_numbers = #tpu.dot_dimension_numbers<[1], [0], [0], [1], [0, 0, 1, 1], [], []>} : vector<4x32xf32>, vector<32x96xf32>, vector<4x96xf32> -> vector<4x96xf32>
    %118 = vector.broadcast %38 : vector<1x96xf32> to vector<4x96xf32>
    %119 = arith.addf %117, %118 : vector<4x96xf32>
    %cst_28 = arith.constant dense<0.000000e+00> : vector<4x96xf32>
    %120 = tpu.matmul %54, %36, %cst_28 {dimension_numbers = #tpu.dot_dimension_numbers<[1], [0], [0], [1], [0, 0, 1, 1], [], []>} : vector<4x32xf32>, vector<32x96xf32>, vector<4x96xf32> -> vector<4x96xf32>
    %121 = vector.extract_strided_slice %119 {offsets = [0, 0], sizes = [4, 32], strides = [1, 1]} : vector<4x96xf32> to vector<4x32xf32>
    %122 = vector.extract_strided_slice %119 {offsets = [0, 32], sizes = [4, 32], strides = [1, 1]} : vector<4x96xf32> to vector<4x32xf32>
    %123 = vector.extract_strided_slice %119 {offsets = [0, 64], sizes = [4, 32], strides = [1, 1]} : vector<4x96xf32> to vector<4x32xf32>
    %124 = vector.extract_strided_slice %120 {offsets = [0, 0], sizes = [4, 32], strides = [1, 1]} : vector<4x96xf32> to vector<4x32xf32>
    %125 = vector.extract_strided_slice %120 {offsets = [0, 32], sizes = [4, 32], strides = [1, 1]} : vector<4x96xf32> to vector<4x32xf32>
    %126 = vector.extract_strided_slice %120 {offsets = [0, 64], sizes = [4, 32], strides = [1, 1]} : vector<4x96xf32> to vector<4x32xf32>
    %127 = arith.addf %121, %124 : vector<4x32xf32>
    %128 = arith.negf %127 : vector<4x32xf32>
    %129 = math.exp %128 : vector<4x32xf32>
    %cst_29 = arith.constant 1.000000e+00 : f32
    %130 = vector.broadcast %cst_29 : f32 to vector<4x32xf32>
    %131 = arith.addf %130, %129 : vector<4x32xf32>
    %132 = arith.divf %130, %131 : vector<4x32xf32>
    %133 = arith.addf %122, %125 : vector<4x32xf32>
    %134 = arith.negf %133 : vector<4x32xf32>
    %135 = math.exp %134 : vector<4x32xf32>
    %cst_30 = arith.constant 1.000000e+00 : f32
    %136 = vector.broadcast %cst_30 : f32 to vector<4x32xf32>
    %137 = arith.addf %136, %135 : vector<4x32xf32>
    %138 = arith.divf %136, %137 : vector<4x32xf32>
    %139 = vector.broadcast %40 : vector<1x32xf32> to vector<4x32xf32>
    %140 = arith.addf %126, %139 : vector<4x32xf32>
    %141 = arith.mulf %132, %140 : vector<4x32xf32>
    %142 = arith.addf %123, %141 : vector<4x32xf32>
    %143 = math.tanh %142 : vector<4x32xf32>
    %144 = arith.subf %54, %143 : vector<4x32xf32>
    %145 = arith.mulf %138, %144 : vector<4x32xf32>
    %146 = arith.addf %143, %145 : vector<4x32xf32>
    %147 = arith.subf %146, %54 : vector<4x32xf32>
    %148 = vector.broadcast %4 : vector<4x1xf32> to vector<4x32xf32>
    %149 = arith.mulf %148, %147 : vector<4x32xf32>
    %150 = arith.addf %54, %149 : vector<4x32xf32>
    %cst_31 = arith.constant dense<0.000000e+00> : vector<4x96xf32>
    %151 = tpu.matmul %116, %35, %cst_31 {dimension_numbers = #tpu.dot_dimension_numbers<[1], [0], [0], [1], [0, 0, 1, 1], [], []>} : vector<4x32xf32>, vector<32x96xf32>, vector<4x96xf32> -> vector<4x96xf32>
    %152 = vector.extract_strided_slice %47 {offsets = [0, 0], sizes = [4, 32], strides = [1, 1]} : vector<4x96xf32> to vector<4x32xf32>
    %153 = vector.extract_strided_slice %47 {offsets = [0, 32], sizes = [4, 32], strides = [1, 1]} : vector<4x96xf32> to vector<4x32xf32>
    %154 = vector.extract_strided_slice %47 {offsets = [0, 64], sizes = [4, 32], strides = [1, 1]} : vector<4x96xf32> to vector<4x32xf32>
    %155 = vector.extract_strided_slice %151 {offsets = [0, 0], sizes = [4, 32], strides = [1, 1]} : vector<4x96xf32> to vector<4x32xf32>
    %156 = vector.extract_strided_slice %151 {offsets = [0, 32], sizes = [4, 32], strides = [1, 1]} : vector<4x96xf32> to vector<4x32xf32>
    %157 = vector.extract_strided_slice %151 {offsets = [0, 64], sizes = [4, 32], strides = [1, 1]} : vector<4x96xf32> to vector<4x32xf32>
    %158 = arith.addf %152, %155 : vector<4x32xf32>
    %159 = arith.negf %158 : vector<4x32xf32>
    %160 = math.exp %159 : vector<4x32xf32>
    %cst_32 = arith.constant 1.000000e+00 : f32
    %161 = vector.broadcast %cst_32 : f32 to vector<4x32xf32>
    %162 = arith.addf %161, %160 : vector<4x32xf32>
    %163 = arith.divf %161, %162 : vector<4x32xf32>
    %164 = arith.addf %153, %156 : vector<4x32xf32>
    %165 = arith.negf %164 : vector<4x32xf32>
    %166 = math.exp %165 : vector<4x32xf32>
    %cst_33 = arith.constant 1.000000e+00 : f32
    %167 = vector.broadcast %cst_33 : f32 to vector<4x32xf32>
    %168 = arith.addf %167, %166 : vector<4x32xf32>
    %169 = arith.divf %167, %168 : vector<4x32xf32>
    %170 = vector.broadcast %39 : vector<1x32xf32> to vector<4x32xf32>
    %171 = arith.addf %157, %170 : vector<4x32xf32>
    %172 = arith.mulf %163, %171 : vector<4x32xf32>
    %173 = arith.addf %154, %172 : vector<4x32xf32>
    %174 = math.tanh %173 : vector<4x32xf32>
    %175 = arith.subf %116, %174 : vector<4x32xf32>
    %176 = arith.mulf %169, %175 : vector<4x32xf32>
    %177 = arith.addf %174, %176 : vector<4x32xf32>
    %178 = arith.subf %177, %116 : vector<4x32xf32>
    %179 = vector.broadcast %12 : vector<4x1xf32> to vector<4x32xf32>
    %180 = arith.mulf %179, %178 : vector<4x32xf32>
    %181 = arith.addf %116, %180 : vector<4x32xf32>
    %cst_34 = arith.constant dense<0.000000e+00> : vector<4x96xf32>
    %182 = tpu.matmul %116, %34, %cst_34 {dimension_numbers = #tpu.dot_dimension_numbers<[1], [0], [0], [1], [0, 0, 1, 1], [], []>} : vector<4x32xf32>, vector<32x96xf32>, vector<4x96xf32> -> vector<4x96xf32>
    %183 = vector.broadcast %38 : vector<1x96xf32> to vector<4x96xf32>
    %184 = arith.addf %182, %183 : vector<4x96xf32>
    %cst_35 = arith.constant dense<0.000000e+00> : vector<4x96xf32>
    %185 = tpu.matmul %150, %36, %cst_35 {dimension_numbers = #tpu.dot_dimension_numbers<[1], [0], [0], [1], [0, 0, 1, 1], [], []>} : vector<4x32xf32>, vector<32x96xf32>, vector<4x96xf32> -> vector<4x96xf32>
    %186 = vector.extract_strided_slice %184 {offsets = [0, 0], sizes = [4, 32], strides = [1, 1]} : vector<4x96xf32> to vector<4x32xf32>
    %187 = vector.extract_strided_slice %184 {offsets = [0, 32], sizes = [4, 32], strides = [1, 1]} : vector<4x96xf32> to vector<4x32xf32>
    %188 = vector.extract_strided_slice %184 {offsets = [0, 64], sizes = [4, 32], strides = [1, 1]} : vector<4x96xf32> to vector<4x32xf32>
    %189 = vector.extract_strided_slice %185 {offsets = [0, 0], sizes = [4, 32], strides = [1, 1]} : vector<4x96xf32> to vector<4x32xf32>
    %190 = vector.extract_strided_slice %185 {offsets = [0, 32], sizes = [4, 32], strides = [1, 1]} : vector<4x96xf32> to vector<4x32xf32>
    %191 = vector.extract_strided_slice %185 {offsets = [0, 64], sizes = [4, 32], strides = [1, 1]} : vector<4x96xf32> to vector<4x32xf32>
    %192 = arith.addf %186, %189 : vector<4x32xf32>
    %193 = arith.negf %192 : vector<4x32xf32>
    %194 = math.exp %193 : vector<4x32xf32>
    %cst_36 = arith.constant 1.000000e+00 : f32
    %195 = vector.broadcast %cst_36 : f32 to vector<4x32xf32>
    %196 = arith.addf %195, %194 : vector<4x32xf32>
    %197 = arith.divf %195, %196 : vector<4x32xf32>
    %198 = arith.addf %187, %190 : vector<4x32xf32>
    %199 = arith.negf %198 : vector<4x32xf32>
    %200 = math.exp %199 : vector<4x32xf32>
    %cst_37 = arith.constant 1.000000e+00 : f32
    %201 = vector.broadcast %cst_37 : f32 to vector<4x32xf32>
    %202 = arith.addf %201, %200 : vector<4x32xf32>
    %203 = arith.divf %201, %202 : vector<4x32xf32>
    %204 = vector.broadcast %40 : vector<1x32xf32> to vector<4x32xf32>
    %205 = arith.addf %191, %204 : vector<4x32xf32>
    %206 = arith.mulf %197, %205 : vector<4x32xf32>
    %207 = arith.addf %188, %206 : vector<4x32xf32>
    %208 = math.tanh %207 : vector<4x32xf32>
    %209 = arith.subf %150, %208 : vector<4x32xf32>
    %210 = arith.mulf %203, %209 : vector<4x32xf32>
    %211 = arith.addf %208, %210 : vector<4x32xf32>
    %212 = arith.subf %211, %150 : vector<4x32xf32>
    %213 = vector.broadcast %8 : vector<4x1xf32> to vector<4x32xf32>
    %214 = arith.mulf %213, %212 : vector<4x32xf32>
    %215 = arith.addf %150, %214 : vector<4x32xf32>
    %cst_38 = arith.constant dense<0.000000e+00> : vector<4x96xf32>
    %216 = tpu.matmul %181, %35, %cst_38 {dimension_numbers = #tpu.dot_dimension_numbers<[1], [0], [0], [1], [0, 0, 1, 1], [], []>} : vector<4x32xf32>, vector<32x96xf32>, vector<4x96xf32> -> vector<4x96xf32>
    %217 = vector.extract_strided_slice %48 {offsets = [0, 0], sizes = [4, 32], strides = [1, 1]} : vector<4x96xf32> to vector<4x32xf32>
    %218 = vector.extract_strided_slice %48 {offsets = [0, 32], sizes = [4, 32], strides = [1, 1]} : vector<4x96xf32> to vector<4x32xf32>
    %219 = vector.extract_strided_slice %48 {offsets = [0, 64], sizes = [4, 32], strides = [1, 1]} : vector<4x96xf32> to vector<4x32xf32>
    %220 = vector.extract_strided_slice %216 {offsets = [0, 0], sizes = [4, 32], strides = [1, 1]} : vector<4x96xf32> to vector<4x32xf32>
    %221 = vector.extract_strided_slice %216 {offsets = [0, 32], sizes = [4, 32], strides = [1, 1]} : vector<4x96xf32> to vector<4x32xf32>
    %222 = vector.extract_strided_slice %216 {offsets = [0, 64], sizes = [4, 32], strides = [1, 1]} : vector<4x96xf32> to vector<4x32xf32>
    %223 = arith.addf %217, %220 : vector<4x32xf32>
    %224 = arith.negf %223 : vector<4x32xf32>
    %225 = math.exp %224 : vector<4x32xf32>
    %cst_39 = arith.constant 1.000000e+00 : f32
    %226 = vector.broadcast %cst_39 : f32 to vector<4x32xf32>
    %227 = arith.addf %226, %225 : vector<4x32xf32>
    %228 = arith.divf %226, %227 : vector<4x32xf32>
    %229 = arith.addf %218, %221 : vector<4x32xf32>
    %230 = arith.negf %229 : vector<4x32xf32>
    %231 = math.exp %230 : vector<4x32xf32>
    %cst_40 = arith.constant 1.000000e+00 : f32
    %232 = vector.broadcast %cst_40 : f32 to vector<4x32xf32>
    %233 = arith.addf %232, %231 : vector<4x32xf32>
    %234 = arith.divf %232, %233 : vector<4x32xf32>
    %235 = vector.broadcast %39 : vector<1x32xf32> to vector<4x32xf32>
    %236 = arith.addf %222, %235 : vector<4x32xf32>
    %237 = arith.mulf %228, %236 : vector<4x32xf32>
    %238 = arith.addf %219, %237 : vector<4x32xf32>
    %239 = math.tanh %238 : vector<4x32xf32>
    %240 = arith.subf %181, %239 : vector<4x32xf32>
    %241 = arith.mulf %234, %240 : vector<4x32xf32>
    %242 = arith.addf %239, %241 : vector<4x32xf32>
    %243 = arith.subf %242, %181 : vector<4x32xf32>
    %244 = vector.broadcast %16 : vector<4x1xf32> to vector<4x32xf32>
    %245 = arith.mulf %244, %243 : vector<4x32xf32>
    %246 = arith.addf %181, %245 : vector<4x32xf32>
    %cst_41 = arith.constant dense<0.000000e+00> : vector<4x96xf32>
    %247 = tpu.matmul %181, %34, %cst_41 {dimension_numbers = #tpu.dot_dimension_numbers<[1], [0], [0], [1], [0, 0, 1, 1], [], []>} : vector<4x32xf32>, vector<32x96xf32>, vector<4x96xf32> -> vector<4x96xf32>
    %248 = vector.broadcast %38 : vector<1x96xf32> to vector<4x96xf32>
    %249 = arith.addf %247, %248 : vector<4x96xf32>
    %cst_42 = arith.constant dense<0.000000e+00> : vector<4x96xf32>
    %250 = tpu.matmul %215, %36, %cst_42 {dimension_numbers = #tpu.dot_dimension_numbers<[1], [0], [0], [1], [0, 0, 1, 1], [], []>} : vector<4x32xf32>, vector<32x96xf32>, vector<4x96xf32> -> vector<4x96xf32>
    %251 = vector.extract_strided_slice %249 {offsets = [0, 0], sizes = [4, 32], strides = [1, 1]} : vector<4x96xf32> to vector<4x32xf32>
    %252 = vector.extract_strided_slice %249 {offsets = [0, 32], sizes = [4, 32], strides = [1, 1]} : vector<4x96xf32> to vector<4x32xf32>
    %253 = vector.extract_strided_slice %249 {offsets = [0, 64], sizes = [4, 32], strides = [1, 1]} : vector<4x96xf32> to vector<4x32xf32>
    %254 = vector.extract_strided_slice %250 {offsets = [0, 0], sizes = [4, 32], strides = [1, 1]} : vector<4x96xf32> to vector<4x32xf32>
    %255 = vector.extract_strided_slice %250 {offsets = [0, 32], sizes = [4, 32], strides = [1, 1]} : vector<4x96xf32> to vector<4x32xf32>
    %256 = vector.extract_strided_slice %250 {offsets = [0, 64], sizes = [4, 32], strides = [1, 1]} : vector<4x96xf32> to vector<4x32xf32>
    %257 = arith.addf %251, %254 : vector<4x32xf32>
    %258 = arith.negf %257 : vector<4x32xf32>
    %259 = math.exp %258 : vector<4x32xf32>
    %cst_43 = arith.constant 1.000000e+00 : f32
    %260 = vector.broadcast %cst_43 : f32 to vector<4x32xf32>
    %261 = arith.addf %260, %259 : vector<4x32xf32>
    %262 = arith.divf %260, %261 : vector<4x32xf32>
    %263 = arith.addf %252, %255 : vector<4x32xf32>
    %264 = arith.negf %263 : vector<4x32xf32>
    %265 = math.exp %264 : vector<4x32xf32>
    %cst_44 = arith.constant 1.000000e+00 : f32
    %266 = vector.broadcast %cst_44 : f32 to vector<4x32xf32>
    %267 = arith.addf %266, %265 : vector<4x32xf32>
    %268 = arith.divf %266, %267 : vector<4x32xf32>
    %269 = vector.broadcast %40 : vector<1x32xf32> to vector<4x32xf32>
    %270 = arith.addf %256, %269 : vector<4x32xf32>
    %271 = arith.mulf %262, %270 : vector<4x32xf32>
    %272 = arith.addf %253, %271 : vector<4x32xf32>
    %273 = math.tanh %272 : vector<4x32xf32>
    %274 = arith.subf %215, %273 : vector<4x32xf32>
    %275 = arith.mulf %268, %274 : vector<4x32xf32>
    %276 = arith.addf %273, %275 : vector<4x32xf32>
    %277 = arith.subf %276, %215 : vector<4x32xf32>
    %278 = vector.broadcast %12 : vector<4x1xf32> to vector<4x32xf32>
    %279 = arith.mulf %278, %277 : vector<4x32xf32>
    %280 = arith.addf %215, %279 : vector<4x32xf32>
    %cst_45 = arith.constant dense<0.000000e+00> : vector<4x96xf32>
    %281 = tpu.matmul %246, %35, %cst_45 {dimension_numbers = #tpu.dot_dimension_numbers<[1], [0], [0], [1], [0, 0, 1, 1], [], []>} : vector<4x32xf32>, vector<32x96xf32>, vector<4x96xf32> -> vector<4x96xf32>
    %282 = vector.extract_strided_slice %49 {offsets = [0, 0], sizes = [4, 32], strides = [1, 1]} : vector<4x96xf32> to vector<4x32xf32>
    %283 = vector.extract_strided_slice %49 {offsets = [0, 32], sizes = [4, 32], strides = [1, 1]} : vector<4x96xf32> to vector<4x32xf32>
    %284 = vector.extract_strided_slice %49 {offsets = [0, 64], sizes = [4, 32], strides = [1, 1]} : vector<4x96xf32> to vector<4x32xf32>
    %285 = vector.extract_strided_slice %281 {offsets = [0, 0], sizes = [4, 32], strides = [1, 1]} : vector<4x96xf32> to vector<4x32xf32>
    %286 = vector.extract_strided_slice %281 {offsets = [0, 32], sizes = [4, 32], strides = [1, 1]} : vector<4x96xf32> to vector<4x32xf32>
    %287 = vector.extract_strided_slice %281 {offsets = [0, 64], sizes = [4, 32], strides = [1, 1]} : vector<4x96xf32> to vector<4x32xf32>
    %288 = arith.addf %282, %285 : vector<4x32xf32>
    %289 = arith.negf %288 : vector<4x32xf32>
    %290 = math.exp %289 : vector<4x32xf32>
    %cst_46 = arith.constant 1.000000e+00 : f32
    %291 = vector.broadcast %cst_46 : f32 to vector<4x32xf32>
    %292 = arith.addf %291, %290 : vector<4x32xf32>
    %293 = arith.divf %291, %292 : vector<4x32xf32>
    %294 = arith.addf %283, %286 : vector<4x32xf32>
    %295 = arith.negf %294 : vector<4x32xf32>
    %296 = math.exp %295 : vector<4x32xf32>
    %cst_47 = arith.constant 1.000000e+00 : f32
    %297 = vector.broadcast %cst_47 : f32 to vector<4x32xf32>
    %298 = arith.addf %297, %296 : vector<4x32xf32>
    %299 = arith.divf %297, %298 : vector<4x32xf32>
    %300 = vector.broadcast %39 : vector<1x32xf32> to vector<4x32xf32>
    %301 = arith.addf %287, %300 : vector<4x32xf32>
    %302 = arith.mulf %293, %301 : vector<4x32xf32>
    %303 = arith.addf %284, %302 : vector<4x32xf32>
    %304 = math.tanh %303 : vector<4x32xf32>
    %305 = arith.subf %246, %304 : vector<4x32xf32>
    %306 = arith.mulf %299, %305 : vector<4x32xf32>
    %307 = arith.addf %304, %306 : vector<4x32xf32>
    %308 = arith.subf %307, %246 : vector<4x32xf32>
    %309 = vector.broadcast %20 : vector<4x1xf32> to vector<4x32xf32>
    %310 = arith.mulf %309, %308 : vector<4x32xf32>
    %311 = arith.addf %246, %310 : vector<4x32xf32>
    %cst_48 = arith.constant dense<0.000000e+00> : vector<4x96xf32>
    %312 = tpu.matmul %246, %34, %cst_48 {dimension_numbers = #tpu.dot_dimension_numbers<[1], [0], [0], [1], [0, 0, 1, 1], [], []>} : vector<4x32xf32>, vector<32x96xf32>, vector<4x96xf32> -> vector<4x96xf32>
    %313 = vector.broadcast %38 : vector<1x96xf32> to vector<4x96xf32>
    %314 = arith.addf %312, %313 : vector<4x96xf32>
    %cst_49 = arith.constant dense<0.000000e+00> : vector<4x96xf32>
    %315 = tpu.matmul %280, %36, %cst_49 {dimension_numbers = #tpu.dot_dimension_numbers<[1], [0], [0], [1], [0, 0, 1, 1], [], []>} : vector<4x32xf32>, vector<32x96xf32>, vector<4x96xf32> -> vector<4x96xf32>
    %316 = vector.extract_strided_slice %314 {offsets = [0, 0], sizes = [4, 32], strides = [1, 1]} : vector<4x96xf32> to vector<4x32xf32>
    %317 = vector.extract_strided_slice %314 {offsets = [0, 32], sizes = [4, 32], strides = [1, 1]} : vector<4x96xf32> to vector<4x32xf32>
    %318 = vector.extract_strided_slice %314 {offsets = [0, 64], sizes = [4, 32], strides = [1, 1]} : vector<4x96xf32> to vector<4x32xf32>
    %319 = vector.extract_strided_slice %315 {offsets = [0, 0], sizes = [4, 32], strides = [1, 1]} : vector<4x96xf32> to vector<4x32xf32>
    %320 = vector.extract_strided_slice %315 {offsets = [0, 32], sizes = [4, 32], strides = [1, 1]} : vector<4x96xf32> to vector<4x32xf32>
    %321 = vector.extract_strided_slice %315 {offsets = [0, 64], sizes = [4, 32], strides = [1, 1]} : vector<4x96xf32> to vector<4x32xf32>
    %322 = arith.addf %316, %319 : vector<4x32xf32>
    %323 = arith.negf %322 : vector<4x32xf32>
    %324 = math.exp %323 : vector<4x32xf32>
    %cst_50 = arith.constant 1.000000e+00 : f32
    %325 = vector.broadcast %cst_50 : f32 to vector<4x32xf32>
    %326 = arith.addf %325, %324 : vector<4x32xf32>
    %327 = arith.divf %325, %326 : vector<4x32xf32>
    %328 = arith.addf %317, %320 : vector<4x32xf32>
    %329 = arith.negf %328 : vector<4x32xf32>
    %330 = math.exp %329 : vector<4x32xf32>
    %cst_51 = arith.constant 1.000000e+00 : f32
    %331 = vector.broadcast %cst_51 : f32 to vector<4x32xf32>
    %332 = arith.addf %331, %330 : vector<4x32xf32>
    %333 = arith.divf %331, %332 : vector<4x32xf32>
    %334 = vector.broadcast %40 : vector<1x32xf32> to vector<4x32xf32>
    %335 = arith.addf %321, %334 : vector<4x32xf32>
    %336 = arith.mulf %327, %335 : vector<4x32xf32>
    %337 = arith.addf %318, %336 : vector<4x32xf32>
    %338 = math.tanh %337 : vector<4x32xf32>
    %339 = arith.subf %280, %338 : vector<4x32xf32>
    %340 = arith.mulf %333, %339 : vector<4x32xf32>
    %341 = arith.addf %338, %340 : vector<4x32xf32>
    %342 = arith.subf %341, %280 : vector<4x32xf32>
    %343 = vector.broadcast %16 : vector<4x1xf32> to vector<4x32xf32>
    %344 = arith.mulf %343, %342 : vector<4x32xf32>
    %345 = arith.addf %280, %344 : vector<4x32xf32>
    %cst_52 = arith.constant dense<0.000000e+00> : vector<4x96xf32>
    %346 = tpu.matmul %311, %35, %cst_52 {dimension_numbers = #tpu.dot_dimension_numbers<[1], [0], [0], [1], [0, 0, 1, 1], [], []>} : vector<4x32xf32>, vector<32x96xf32>, vector<4x96xf32> -> vector<4x96xf32>
    %347 = vector.extract_strided_slice %50 {offsets = [0, 0], sizes = [4, 32], strides = [1, 1]} : vector<4x96xf32> to vector<4x32xf32>
    %348 = vector.extract_strided_slice %50 {offsets = [0, 32], sizes = [4, 32], strides = [1, 1]} : vector<4x96xf32> to vector<4x32xf32>
    %349 = vector.extract_strided_slice %50 {offsets = [0, 64], sizes = [4, 32], strides = [1, 1]} : vector<4x96xf32> to vector<4x32xf32>
    %350 = vector.extract_strided_slice %346 {offsets = [0, 0], sizes = [4, 32], strides = [1, 1]} : vector<4x96xf32> to vector<4x32xf32>
    %351 = vector.extract_strided_slice %346 {offsets = [0, 32], sizes = [4, 32], strides = [1, 1]} : vector<4x96xf32> to vector<4x32xf32>
    %352 = vector.extract_strided_slice %346 {offsets = [0, 64], sizes = [4, 32], strides = [1, 1]} : vector<4x96xf32> to vector<4x32xf32>
    %353 = arith.addf %347, %350 : vector<4x32xf32>
    %354 = arith.negf %353 : vector<4x32xf32>
    %355 = math.exp %354 : vector<4x32xf32>
    %cst_53 = arith.constant 1.000000e+00 : f32
    %356 = vector.broadcast %cst_53 : f32 to vector<4x32xf32>
    %357 = arith.addf %356, %355 : vector<4x32xf32>
    %358 = arith.divf %356, %357 : vector<4x32xf32>
    %359 = arith.addf %348, %351 : vector<4x32xf32>
    %360 = arith.negf %359 : vector<4x32xf32>
    %361 = math.exp %360 : vector<4x32xf32>
    %cst_54 = arith.constant 1.000000e+00 : f32
    %362 = vector.broadcast %cst_54 : f32 to vector<4x32xf32>
    %363 = arith.addf %362, %361 : vector<4x32xf32>
    %364 = arith.divf %362, %363 : vector<4x32xf32>
    %365 = vector.broadcast %39 : vector<1x32xf32> to vector<4x32xf32>
    %366 = arith.addf %352, %365 : vector<4x32xf32>
    %367 = arith.mulf %358, %366 : vector<4x32xf32>
    %368 = arith.addf %349, %367 : vector<4x32xf32>
    %369 = math.tanh %368 : vector<4x32xf32>
    %370 = arith.subf %311, %369 : vector<4x32xf32>
    %371 = arith.mulf %364, %370 : vector<4x32xf32>
    %372 = arith.addf %369, %371 : vector<4x32xf32>
    %373 = arith.subf %372, %311 : vector<4x32xf32>
    %374 = vector.broadcast %24 : vector<4x1xf32> to vector<4x32xf32>
    %375 = arith.mulf %374, %373 : vector<4x32xf32>
    %376 = arith.addf %311, %375 : vector<4x32xf32>
    %cst_55 = arith.constant dense<0.000000e+00> : vector<4x96xf32>
    %377 = tpu.matmul %311, %34, %cst_55 {dimension_numbers = #tpu.dot_dimension_numbers<[1], [0], [0], [1], [0, 0, 1, 1], [], []>} : vector<4x32xf32>, vector<32x96xf32>, vector<4x96xf32> -> vector<4x96xf32>
    %378 = vector.broadcast %38 : vector<1x96xf32> to vector<4x96xf32>
    %379 = arith.addf %377, %378 : vector<4x96xf32>
    %cst_56 = arith.constant dense<0.000000e+00> : vector<4x96xf32>
    %380 = tpu.matmul %345, %36, %cst_56 {dimension_numbers = #tpu.dot_dimension_numbers<[1], [0], [0], [1], [0, 0, 1, 1], [], []>} : vector<4x32xf32>, vector<32x96xf32>, vector<4x96xf32> -> vector<4x96xf32>
    %381 = vector.extract_strided_slice %379 {offsets = [0, 0], sizes = [4, 32], strides = [1, 1]} : vector<4x96xf32> to vector<4x32xf32>
    %382 = vector.extract_strided_slice %379 {offsets = [0, 32], sizes = [4, 32], strides = [1, 1]} : vector<4x96xf32> to vector<4x32xf32>
    %383 = vector.extract_strided_slice %379 {offsets = [0, 64], sizes = [4, 32], strides = [1, 1]} : vector<4x96xf32> to vector<4x32xf32>
    %384 = vector.extract_strided_slice %380 {offsets = [0, 0], sizes = [4, 32], strides = [1, 1]} : vector<4x96xf32> to vector<4x32xf32>
    %385 = vector.extract_strided_slice %380 {offsets = [0, 32], sizes = [4, 32], strides = [1, 1]} : vector<4x96xf32> to vector<4x32xf32>
    %386 = vector.extract_strided_slice %380 {offsets = [0, 64], sizes = [4, 32], strides = [1, 1]} : vector<4x96xf32> to vector<4x32xf32>
    %387 = arith.addf %381, %384 : vector<4x32xf32>
    %388 = arith.negf %387 : vector<4x32xf32>
    %389 = math.exp %388 : vector<4x32xf32>
    %cst_57 = arith.constant 1.000000e+00 : f32
    %390 = vector.broadcast %cst_57 : f32 to vector<4x32xf32>
    %391 = arith.addf %390, %389 : vector<4x32xf32>
    %392 = arith.divf %390, %391 : vector<4x32xf32>
    %393 = arith.addf %382, %385 : vector<4x32xf32>
    %394 = arith.negf %393 : vector<4x32xf32>
    %395 = math.exp %394 : vector<4x32xf32>
    %cst_58 = arith.constant 1.000000e+00 : f32
    %396 = vector.broadcast %cst_58 : f32 to vector<4x32xf32>
    %397 = arith.addf %396, %395 : vector<4x32xf32>
    %398 = arith.divf %396, %397 : vector<4x32xf32>
    %399 = vector.broadcast %40 : vector<1x32xf32> to vector<4x32xf32>
    %400 = arith.addf %386, %399 : vector<4x32xf32>
    %401 = arith.mulf %392, %400 : vector<4x32xf32>
    %402 = arith.addf %383, %401 : vector<4x32xf32>
    %403 = math.tanh %402 : vector<4x32xf32>
    %404 = arith.subf %345, %403 : vector<4x32xf32>
    %405 = arith.mulf %398, %404 : vector<4x32xf32>
    %406 = arith.addf %403, %405 : vector<4x32xf32>
    %407 = arith.subf %406, %345 : vector<4x32xf32>
    %408 = vector.broadcast %20 : vector<4x1xf32> to vector<4x32xf32>
    %409 = arith.mulf %408, %407 : vector<4x32xf32>
    %410 = arith.addf %345, %409 : vector<4x32xf32>
    %cst_59 = arith.constant dense<0.000000e+00> : vector<4x96xf32>
    %411 = tpu.matmul %376, %35, %cst_59 {dimension_numbers = #tpu.dot_dimension_numbers<[1], [0], [0], [1], [0, 0, 1, 1], [], []>} : vector<4x32xf32>, vector<32x96xf32>, vector<4x96xf32> -> vector<4x96xf32>
    %412 = vector.extract_strided_slice %51 {offsets = [0, 0], sizes = [4, 32], strides = [1, 1]} : vector<4x96xf32> to vector<4x32xf32>
    %413 = vector.extract_strided_slice %51 {offsets = [0, 32], sizes = [4, 32], strides = [1, 1]} : vector<4x96xf32> to vector<4x32xf32>
    %414 = vector.extract_strided_slice %51 {offsets = [0, 64], sizes = [4, 32], strides = [1, 1]} : vector<4x96xf32> to vector<4x32xf32>
    %415 = vector.extract_strided_slice %411 {offsets = [0, 0], sizes = [4, 32], strides = [1, 1]} : vector<4x96xf32> to vector<4x32xf32>
    %416 = vector.extract_strided_slice %411 {offsets = [0, 32], sizes = [4, 32], strides = [1, 1]} : vector<4x96xf32> to vector<4x32xf32>
    %417 = vector.extract_strided_slice %411 {offsets = [0, 64], sizes = [4, 32], strides = [1, 1]} : vector<4x96xf32> to vector<4x32xf32>
    %418 = arith.addf %412, %415 : vector<4x32xf32>
    %419 = arith.negf %418 : vector<4x32xf32>
    %420 = math.exp %419 : vector<4x32xf32>
    %cst_60 = arith.constant 1.000000e+00 : f32
    %421 = vector.broadcast %cst_60 : f32 to vector<4x32xf32>
    %422 = arith.addf %421, %420 : vector<4x32xf32>
    %423 = arith.divf %421, %422 : vector<4x32xf32>
    %424 = arith.addf %413, %416 : vector<4x32xf32>
    %425 = arith.negf %424 : vector<4x32xf32>
    %426 = math.exp %425 : vector<4x32xf32>
    %cst_61 = arith.constant 1.000000e+00 : f32
    %427 = vector.broadcast %cst_61 : f32 to vector<4x32xf32>
    %428 = arith.addf %427, %426 : vector<4x32xf32>
    %429 = arith.divf %427, %428 : vector<4x32xf32>
    %430 = vector.broadcast %39 : vector<1x32xf32> to vector<4x32xf32>
    %431 = arith.addf %417, %430 : vector<4x32xf32>
    %432 = arith.mulf %423, %431 : vector<4x32xf32>
    %433 = arith.addf %414, %432 : vector<4x32xf32>
    %434 = math.tanh %433 : vector<4x32xf32>
    %435 = arith.subf %376, %434 : vector<4x32xf32>
    %436 = arith.mulf %429, %435 : vector<4x32xf32>
    %437 = arith.addf %434, %436 : vector<4x32xf32>
    %438 = arith.subf %437, %376 : vector<4x32xf32>
    %439 = vector.broadcast %28 : vector<4x1xf32> to vector<4x32xf32>
    %440 = arith.mulf %439, %438 : vector<4x32xf32>
    %441 = arith.addf %376, %440 : vector<4x32xf32>
    %cst_62 = arith.constant dense<0.000000e+00> : vector<4x96xf32>
    %442 = tpu.matmul %376, %34, %cst_62 {dimension_numbers = #tpu.dot_dimension_numbers<[1], [0], [0], [1], [0, 0, 1, 1], [], []>} : vector<4x32xf32>, vector<32x96xf32>, vector<4x96xf32> -> vector<4x96xf32>
    %443 = vector.broadcast %38 : vector<1x96xf32> to vector<4x96xf32>
    %444 = arith.addf %442, %443 : vector<4x96xf32>
    %cst_63 = arith.constant dense<0.000000e+00> : vector<4x96xf32>
    %445 = tpu.matmul %410, %36, %cst_63 {dimension_numbers = #tpu.dot_dimension_numbers<[1], [0], [0], [1], [0, 0, 1, 1], [], []>} : vector<4x32xf32>, vector<32x96xf32>, vector<4x96xf32> -> vector<4x96xf32>
    %446 = vector.extract_strided_slice %444 {offsets = [0, 0], sizes = [4, 32], strides = [1, 1]} : vector<4x96xf32> to vector<4x32xf32>
    %447 = vector.extract_strided_slice %444 {offsets = [0, 32], sizes = [4, 32], strides = [1, 1]} : vector<4x96xf32> to vector<4x32xf32>
    %448 = vector.extract_strided_slice %444 {offsets = [0, 64], sizes = [4, 32], strides = [1, 1]} : vector<4x96xf32> to vector<4x32xf32>
    %449 = vector.extract_strided_slice %445 {offsets = [0, 0], sizes = [4, 32], strides = [1, 1]} : vector<4x96xf32> to vector<4x32xf32>
    %450 = vector.extract_strided_slice %445 {offsets = [0, 32], sizes = [4, 32], strides = [1, 1]} : vector<4x96xf32> to vector<4x32xf32>
    %451 = vector.extract_strided_slice %445 {offsets = [0, 64], sizes = [4, 32], strides = [1, 1]} : vector<4x96xf32> to vector<4x32xf32>
    %452 = arith.addf %446, %449 : vector<4x32xf32>
    %453 = arith.negf %452 : vector<4x32xf32>
    %454 = math.exp %453 : vector<4x32xf32>
    %cst_64 = arith.constant 1.000000e+00 : f32
    %455 = vector.broadcast %cst_64 : f32 to vector<4x32xf32>
    %456 = arith.addf %455, %454 : vector<4x32xf32>
    %457 = arith.divf %455, %456 : vector<4x32xf32>
    %458 = arith.addf %447, %450 : vector<4x32xf32>
    %459 = arith.negf %458 : vector<4x32xf32>
    %460 = math.exp %459 : vector<4x32xf32>
    %cst_65 = arith.constant 1.000000e+00 : f32
    %461 = vector.broadcast %cst_65 : f32 to vector<4x32xf32>
    %462 = arith.addf %461, %460 : vector<4x32xf32>
    %463 = arith.divf %461, %462 : vector<4x32xf32>
    %464 = vector.broadcast %40 : vector<1x32xf32> to vector<4x32xf32>
    %465 = arith.addf %451, %464 : vector<4x32xf32>
    %466 = arith.mulf %457, %465 : vector<4x32xf32>
    %467 = arith.addf %448, %466 : vector<4x32xf32>
    %468 = math.tanh %467 : vector<4x32xf32>
    %469 = arith.subf %410, %468 : vector<4x32xf32>
    %470 = arith.mulf %463, %469 : vector<4x32xf32>
    %471 = arith.addf %468, %470 : vector<4x32xf32>
    %472 = arith.subf %471, %410 : vector<4x32xf32>
    %473 = vector.broadcast %24 : vector<4x1xf32> to vector<4x32xf32>
    %474 = arith.mulf %473, %472 : vector<4x32xf32>
    %475 = arith.addf %410, %474 : vector<4x32xf32>
    %cst_66 = arith.constant dense<0.000000e+00> : vector<4x96xf32>
    %476 = tpu.matmul %441, %35, %cst_66 {dimension_numbers = #tpu.dot_dimension_numbers<[1], [0], [0], [1], [0, 0, 1, 1], [], []>} : vector<4x32xf32>, vector<32x96xf32>, vector<4x96xf32> -> vector<4x96xf32>
    %477 = vector.extract_strided_slice %52 {offsets = [0, 0], sizes = [4, 32], strides = [1, 1]} : vector<4x96xf32> to vector<4x32xf32>
    %478 = vector.extract_strided_slice %52 {offsets = [0, 32], sizes = [4, 32], strides = [1, 1]} : vector<4x96xf32> to vector<4x32xf32>
    %479 = vector.extract_strided_slice %52 {offsets = [0, 64], sizes = [4, 32], strides = [1, 1]} : vector<4x96xf32> to vector<4x32xf32>
    %480 = vector.extract_strided_slice %476 {offsets = [0, 0], sizes = [4, 32], strides = [1, 1]} : vector<4x96xf32> to vector<4x32xf32>
    %481 = vector.extract_strided_slice %476 {offsets = [0, 32], sizes = [4, 32], strides = [1, 1]} : vector<4x96xf32> to vector<4x32xf32>
    %482 = vector.extract_strided_slice %476 {offsets = [0, 64], sizes = [4, 32], strides = [1, 1]} : vector<4x96xf32> to vector<4x32xf32>
    %483 = arith.addf %477, %480 : vector<4x32xf32>
    %484 = arith.negf %483 : vector<4x32xf32>
    %485 = math.exp %484 : vector<4x32xf32>
    %cst_67 = arith.constant 1.000000e+00 : f32
    %486 = vector.broadcast %cst_67 : f32 to vector<4x32xf32>
    %487 = arith.addf %486, %485 : vector<4x32xf32>
    %488 = arith.divf %486, %487 : vector<4x32xf32>
    %489 = arith.addf %478, %481 : vector<4x32xf32>
    %490 = arith.negf %489 : vector<4x32xf32>
    %491 = math.exp %490 : vector<4x32xf32>
    %cst_68 = arith.constant 1.000000e+00 : f32
    %492 = vector.broadcast %cst_68 : f32 to vector<4x32xf32>
    %493 = arith.addf %492, %491 : vector<4x32xf32>
    %494 = arith.divf %492, %493 : vector<4x32xf32>
    %495 = vector.broadcast %39 : vector<1x32xf32> to vector<4x32xf32>
    %496 = arith.addf %482, %495 : vector<4x32xf32>
    %497 = arith.mulf %488, %496 : vector<4x32xf32>
    %498 = arith.addf %479, %497 : vector<4x32xf32>
    %499 = math.tanh %498 : vector<4x32xf32>
    %500 = arith.subf %441, %499 : vector<4x32xf32>
    %501 = arith.mulf %494, %500 : vector<4x32xf32>
    %502 = arith.addf %499, %501 : vector<4x32xf32>
    %503 = arith.subf %502, %441 : vector<4x32xf32>
    %504 = vector.broadcast %32 : vector<4x1xf32> to vector<4x32xf32>
    %505 = arith.mulf %504, %503 : vector<4x32xf32>
    %506 = arith.addf %441, %505 : vector<4x32xf32>
    %cst_69 = arith.constant dense<0.000000e+00> : vector<4x96xf32>
    %507 = tpu.matmul %441, %34, %cst_69 {dimension_numbers = #tpu.dot_dimension_numbers<[1], [0], [0], [1], [0, 0, 1, 1], [], []>} : vector<4x32xf32>, vector<32x96xf32>, vector<4x96xf32> -> vector<4x96xf32>
    %508 = vector.broadcast %38 : vector<1x96xf32> to vector<4x96xf32>
    %509 = arith.addf %507, %508 : vector<4x96xf32>
    %cst_70 = arith.constant dense<0.000000e+00> : vector<4x96xf32>
    %510 = tpu.matmul %475, %36, %cst_70 {dimension_numbers = #tpu.dot_dimension_numbers<[1], [0], [0], [1], [0, 0, 1, 1], [], []>} : vector<4x32xf32>, vector<32x96xf32>, vector<4x96xf32> -> vector<4x96xf32>
    %511 = vector.extract_strided_slice %509 {offsets = [0, 0], sizes = [4, 32], strides = [1, 1]} : vector<4x96xf32> to vector<4x32xf32>
    %512 = vector.extract_strided_slice %509 {offsets = [0, 32], sizes = [4, 32], strides = [1, 1]} : vector<4x96xf32> to vector<4x32xf32>
    %513 = vector.extract_strided_slice %509 {offsets = [0, 64], sizes = [4, 32], strides = [1, 1]} : vector<4x96xf32> to vector<4x32xf32>
    %514 = vector.extract_strided_slice %510 {offsets = [0, 0], sizes = [4, 32], strides = [1, 1]} : vector<4x96xf32> to vector<4x32xf32>
    %515 = vector.extract_strided_slice %510 {offsets = [0, 32], sizes = [4, 32], strides = [1, 1]} : vector<4x96xf32> to vector<4x32xf32>
    %516 = vector.extract_strided_slice %510 {offsets = [0, 64], sizes = [4, 32], strides = [1, 1]} : vector<4x96xf32> to vector<4x32xf32>
    %517 = arith.addf %511, %514 : vector<4x32xf32>
    %518 = arith.negf %517 : vector<4x32xf32>
    %519 = math.exp %518 : vector<4x32xf32>
    %cst_71 = arith.constant 1.000000e+00 : f32
    %520 = vector.broadcast %cst_71 : f32 to vector<4x32xf32>
    %521 = arith.addf %520, %519 : vector<4x32xf32>
    %522 = arith.divf %520, %521 : vector<4x32xf32>
    %523 = arith.addf %512, %515 : vector<4x32xf32>
    %524 = arith.negf %523 : vector<4x32xf32>
    %525 = math.exp %524 : vector<4x32xf32>
    %cst_72 = arith.constant 1.000000e+00 : f32
    %526 = vector.broadcast %cst_72 : f32 to vector<4x32xf32>
    %527 = arith.addf %526, %525 : vector<4x32xf32>
    %528 = arith.divf %526, %527 : vector<4x32xf32>
    %529 = vector.broadcast %40 : vector<1x32xf32> to vector<4x32xf32>
    %530 = arith.addf %516, %529 : vector<4x32xf32>
    %531 = arith.mulf %522, %530 : vector<4x32xf32>
    %532 = arith.addf %513, %531 : vector<4x32xf32>
    %533 = math.tanh %532 : vector<4x32xf32>
    %534 = arith.subf %475, %533 : vector<4x32xf32>
    %535 = arith.mulf %528, %534 : vector<4x32xf32>
    %536 = arith.addf %533, %535 : vector<4x32xf32>
    %537 = arith.subf %536, %475 : vector<4x32xf32>
    %538 = vector.broadcast %28 : vector<4x1xf32> to vector<4x32xf32>
    %539 = arith.mulf %538, %537 : vector<4x32xf32>
    %540 = arith.addf %475, %539 : vector<4x32xf32>
    %cst_73 = arith.constant dense<0.000000e+00> : vector<4x96xf32>
    %541 = tpu.matmul %506, %34, %cst_73 {dimension_numbers = #tpu.dot_dimension_numbers<[1], [0], [0], [1], [0, 0, 1, 1], [], []>} : vector<4x32xf32>, vector<32x96xf32>, vector<4x96xf32> -> vector<4x96xf32>
    %542 = vector.broadcast %38 : vector<1x96xf32> to vector<4x96xf32>
    %543 = arith.addf %541, %542 : vector<4x96xf32>
    %cst_74 = arith.constant dense<0.000000e+00> : vector<4x96xf32>
    %544 = tpu.matmul %540, %36, %cst_74 {dimension_numbers = #tpu.dot_dimension_numbers<[1], [0], [0], [1], [0, 0, 1, 1], [], []>} : vector<4x32xf32>, vector<32x96xf32>, vector<4x96xf32> -> vector<4x96xf32>
    %545 = vector.extract_strided_slice %543 {offsets = [0, 0], sizes = [4, 32], strides = [1, 1]} : vector<4x96xf32> to vector<4x32xf32>
    %546 = vector.extract_strided_slice %543 {offsets = [0, 32], sizes = [4, 32], strides = [1, 1]} : vector<4x96xf32> to vector<4x32xf32>
    %547 = vector.extract_strided_slice %543 {offsets = [0, 64], sizes = [4, 32], strides = [1, 1]} : vector<4x96xf32> to vector<4x32xf32>
    %548 = vector.extract_strided_slice %544 {offsets = [0, 0], sizes = [4, 32], strides = [1, 1]} : vector<4x96xf32> to vector<4x32xf32>
    %549 = vector.extract_strided_slice %544 {offsets = [0, 32], sizes = [4, 32], strides = [1, 1]} : vector<4x96xf32> to vector<4x32xf32>
    %550 = vector.extract_strided_slice %544 {offsets = [0, 64], sizes = [4, 32], strides = [1, 1]} : vector<4x96xf32> to vector<4x32xf32>
    %551 = arith.addf %545, %548 : vector<4x32xf32>
    %552 = arith.negf %551 : vector<4x32xf32>
    %553 = math.exp %552 : vector<4x32xf32>
    %cst_75 = arith.constant 1.000000e+00 : f32
    %554 = vector.broadcast %cst_75 : f32 to vector<4x32xf32>
    %555 = arith.addf %554, %553 : vector<4x32xf32>
    %556 = arith.divf %554, %555 : vector<4x32xf32>
    %557 = arith.addf %546, %549 : vector<4x32xf32>
    %558 = arith.negf %557 : vector<4x32xf32>
    %559 = math.exp %558 : vector<4x32xf32>
    %cst_76 = arith.constant 1.000000e+00 : f32
    %560 = vector.broadcast %cst_76 : f32 to vector<4x32xf32>
    %561 = arith.addf %560, %559 : vector<4x32xf32>
    %562 = arith.divf %560, %561 : vector<4x32xf32>
    %563 = vector.broadcast %40 : vector<1x32xf32> to vector<4x32xf32>
    %564 = arith.addf %550, %563 : vector<4x32xf32>
    %565 = arith.mulf %556, %564 : vector<4x32xf32>
    %566 = arith.addf %547, %565 : vector<4x32xf32>
    %567 = math.tanh %566 : vector<4x32xf32>
    %568 = arith.subf %540, %567 : vector<4x32xf32>
    %569 = arith.mulf %562, %568 : vector<4x32xf32>
    %570 = arith.addf %567, %569 : vector<4x32xf32>
    %571 = arith.subf %570, %540 : vector<4x32xf32>
    %572 = vector.broadcast %32 : vector<4x1xf32> to vector<4x32xf32>
    %573 = arith.mulf %572, %571 : vector<4x32xf32>
    %574 = arith.addf %540, %573 : vector<4x32xf32>
    %c0_77 = arith.constant 0 : index
    %c0_78 = arith.constant 0 : index
    %575 = vector.load %arg10[%c0_77, %c0_78] : memref<32x4xf32, #tpu.memory_space<vmem>>, vector<32x4xf32>
    %cst_79 = arith.constant dense<0.000000e+00> : vector<4x4xf32>
    %576 = tpu.matmul %574, %575, %cst_79 {dimension_numbers = #tpu.dot_dimension_numbers<[1], [0], [0], [1], [0, 0, 1, 1], [], []>} : vector<4x32xf32>, vector<32x4xf32>, vector<4x4xf32> -> vector<4x4xf32>
    %c0_80 = arith.constant 0 : index
    %c0_81 = arith.constant 0 : index
    %577 = vector.load %arg11[%c0_80, %c0_81] : memref<1x4xf32, #tpu.memory_space<vmem>>, vector<1x4xf32>
    %578 = vector.broadcast %577 : vector<1x4xf32> to vector<4x4xf32>
    %579 = arith.addf %576, %578 : vector<4x4xf32>
    %c0_82 = arith.constant 0 : index
    %c0_83 = arith.constant 0 : index
    %580 = vector.load %arg12[%c0_82, %c0_83] : memref<4x4xf32, #tpu.memory_space<vmem>>, vector<4x4xf32>
    tpu.vector_store %arg12[%c0_82, %c0_83], %579 {strides = array<i32>} : memref<4x4xf32, #tpu.memory_space<vmem>>, vector<4x4xf32>,
    return
  }
}

</mosaic_0001>

<llo_original>
// kernel: my_model_forward.1
$region0: #{my_model_forward.1}
  #allocation0 [shape = 'u32[]', space=smem, size = 0x4, offset = 0x4, fixed_abs, tag = 'smem constant byte address 0x4 - core index']
  #allocation1 [shape = 'u32[144,128]{1,0:T(1,128)}', space=vmem, size = 0x12000, scoped, tag = 'internal scratch']
  %s0 = inlined_call_operand.vmem [shape: s32[4,1], index: 0, kind: input, shape index: {}]
  %s1 = inlined_call_operand.vmem [shape: f32[32,16], index: 1, kind: input, shape index: {}]
  %s2 = inlined_call_operand.vmem [shape: f32[16,96], index: 2, kind: input, shape index: {}]
  %s3 = inlined_call_operand.vmem [shape: f32[32,96], index: 3, kind: input, shape index: {}]
  %s4 = inlined_call_operand.vmem [shape: f32[1,96], index: 4, kind: input, shape index: {}]
  %s5 = inlined_call_operand.vmem [shape: f32[1,32], index: 5, kind: input, shape index: {}]
  %s6 = inlined_call_operand.vmem [shape: f32[32,96], index: 6, kind: input, shape index: {}]
  %s7 = inlined_call_operand.vmem [shape: f32[32,96], index: 7, kind: input, shape index: {}]
  %s8 = inlined_call_operand.vmem [shape: f32[1,96], index: 8, kind: input, shape index: {}]
  %s9 = inlined_call_operand.vmem [shape: f32[1,32], index: 9, kind: input, shape index: {}]
  %s10 = inlined_call_operand.vmem [shape: f32[32,4], index: 10, kind: input, shape index: {}]
  %s11 = inlined_call_operand.vmem [shape: f32[1,4], index: 11, kind: input, shape index: {}]
  %s12 = inlined_call_operand.hbm [shape: f32[4,4], index: 12, kind: output, shape index: {}]
  %s13 = sld [smem:[#allocation0]]
  $region58: #{my_model_forward.1} parent=0
    _
  %s15 = ssub.s32 1, %s13
  %s16 = scalar_select 0, %s15, %s13
  $region1: #{my_model_forward.1} parent=0
    #allocation2 [shape = 'u8[2048]{0}', space=vmem, size = 0x800, scoped, tag = 'output window, operand 0, single buffered']
    #allocation3 [shape = 's32[1]{0}', space=sflag, size = 0x4, scoped, tag = 'scoped memory for my_model_forward.1']
    %17 = vsyncpa [#allocation3], 0
    // Predicated region
    $region2: #{my_model_forward.1} parent=1 // pred_check
      _
    $region3: #{my_model_forward.1} parent=1 // pred_check_branch
      %19 = sbr.rel (0) target = $region5
    $region4: #{my_model_forward.1} parent=1 // pred_region
      _
    $region5: #{my_model_forward.1} parent=1 // pred_fallthru
      _
    // Predicated region
    $region6: #{my_model_forward.1} parent=1 // pred_check
      _
    $region7: #{my_model_forward.1} parent=1 // pred_check_branch
      %21 = sbr.rel (0) target = $region9
    $region8: #{my_model_forward.1} parent=1 // pred_region
      _
    $region9: #{my_model_forward.1} parent=1 // pred_fallthru
      _
    // Predicated region
    $region10: #{my_model_forward.1} parent=1 // pred_check
      _
    $region11: #{my_model_forward.1} parent=1 // pred_check_branch
      %23 = sbr.rel (0) target = $region13
    $region12: #{my_model_forward.1} parent=1 // pred_region
      _
    $region13: #{my_model_forward.1} parent=1 // pred_fallthru
      _
    // Predicated region
    $region14: #{my_model_forward.1} parent=1 // pred_check
      _
    $region15: #{my_model_forward.1} parent=1 // pred_check_branch
      %25 = sbr.rel (0) target = $region17
    $region16: #{my_model_forward.1} parent=1 // pred_region
      _
    $region17: #{my_model_forward.1} parent=1 // pred_fallthru
      _
    // Predicated region
    $region18: #{my_model_forward.1} parent=1 // pred_check
      _
    $region19: #{my_model_forward.1} parent=1 // pred_check_branch
      %27 = sbr.rel (0) target = $region21
    $region20: #{my_model_forward.1} parent=1 // pred_region
      _
    $region21: #{my_model_forward.1} parent=1 // pred_fallthru
      _
    // Predicated region
    $region22: #{my_model_forward.1} parent=1 // pred_check
      _
    $region23: #{my_model_forward.1} parent=1 // pred_check_branch
      %29 = sbr.rel (0) target = $region25
    $region24: #{my_model_forward.1} parent=1 // pred_region
      _
    $region25: #{my_model_forward.1} parent=1 // pred_fallthru
      _
    // Predicated region
    $region26: #{my_model_forward.1} parent=1 // pred_check
      _
    $region27: #{my_model_forward.1} parent=1 // pred_check_branch
      %31 = sbr.rel (0) target = $region29
    $region28: #{my_model_forward.1} parent=1 // pred_region
      _
    $region29: #{my_model_forward.1} parent=1 // pred_fallthru
      _
    // Predicated region
    $region30: #{my_model_forward.1} parent=1 // pred_check
      _
    $region31: #{my_model_forward.1} parent=1 // pred_check_branch
      %33 = sbr.rel (0) target = $region33
    $region32: #{my_model_forward.1} parent=1 // pred_region
      _
    $region33: #{my_model_forward.1} parent=1 // pred_fallthru
      _
    // Predicated region
    $region34: #{my_model_forward.1} parent=1 // pred_check
      _
    $region35: #{my_model_forward.1} parent=1 // pred_check_branch
      %35 = sbr.rel (0) target = $region37
    $region36: #{my_model_forward.1} parent=1 // pred_region
      _
    $region37: #{my_model_forward.1} parent=1 // pred_fallthru
      _
    // Predicated region
    $region38: #{my_model_forward.1} parent=1 // pred_check
      _
    $region39: #{my_model_forward.1} parent=1 // pred_check_branch
      %37 = sbr.rel (0) target = $region41
    $region40: #{my_model_forward.1} parent=1 // pred_region
      _
    $region41: #{my_model_forward.1} parent=1 // pred_fallthru
      _
    // Predicated region
    $region42: #{my_model_forward.1} parent=1 // pred_check
      _
    $region43: #{my_model_forward.1} parent=1 // pred_check_branch
      %39 = sbr.rel (0) target = $region45
    $region44: #{my_model_forward.1} parent=1 // pred_region
      _
    $region45: #{my_model_forward.1} parent=1 // pred_fallthru
      _
    // Predicated region
    $region46: #{my_model_forward.1} parent=1 // pred_check
      _
    $region47: #{my_model_forward.1} parent=1 // pred_check_branch
      %41 = sbr.rel (0) target = $region49
    $region48: #{my_model_forward.1} parent=1 // pred_region
      _
    $region49: #{my_model_forward.1} parent=1 // pred_fallthru
      _
    %v42 = vld [vmem:[%s0] sm:$0xf]
    %vm43 = vcmp.gt.s32.totalorder %v42, 0
    %v44 = vsel %vm43, 1, 0
    %v45 = vcvt.s32.f32 %v44
    %vm46 = vcmp.gt.s32.totalorder %v42, 1
    %v47 = vsel %vm46, 1, 0
    %v48 = vcvt.s32.f32 %v47
    %vm49 = vcmp.gt.s32.totalorder %v42, 2
    %v50 = vsel %vm49, 1, 0
    %v51 = vcvt.s32.f32 %v50
    %vm52 = vcmp.gt.s32.totalorder %v42, 3
    %v53 = vsel %vm52, 1, 0
    %v54 = vcvt.s32.f32 %v53
    %vm55 = vcmp.gt.s32.totalorder %v42, 4
    %v56 = vsel %vm55, 1, 0
    %v57 = vcvt.s32.f32 %v56
    %vm58 = vcmp.gt.s32.totalorder %v42, 5
    %v59 = vsel %vm58, 1, 0
    %v60 = vcvt.s32.f32 %v59
    %vm61 = vcmp.gt.s32.totalorder %v42, 6
    %v62 = vsel %vm61, 1, 0
    %v63 = vcvt.s32.f32 %v62
    %vm64 = vcmp.gt.s32.totalorder %v42, 7
    %v65 = vsel %vm64, 1, 0
    %v66 = vcvt.s32.f32 %v65
    %v67 = vld [vmem:[%s2] sm:$0xff]
    %v68 = vld [vmem:[%s2 + $0x8] sm:$0xff]
    %v69 = vld [vmem:[%s6] sm:$0xff]
    %v70 = vld [vmem:[%s6 + $0x8] sm:$0xff]
    %v71 = vld [vmem:[%s6 + $0x10] sm:$0xff]
    %v72 = vld [vmem:[%s6 + $0x18] sm:$0xff]
    %v73 = vld [vmem:[%s3] sm:$0xff]
    %v74 = vld [vmem:[%s3 + $0x8] sm:$0xff]
    %v75 = vld [vmem:[%s3 + $0x10] sm:$0xff]
    %v76 = vld [vmem:[%s3 + $0x18] sm:$0xff]
    %v77 = vld [vmem:[%s7] sm:$0xff]
    %v78 = vld [vmem:[%s7 + $0x8] sm:$0xff]
    %v79 = vld [vmem:[%s7 + $0x10] sm:$0xff]
    %v80 = vld [vmem:[%s7 + $0x18] sm:$0xff]
    %v81 = vld [vmem:[%s4] sm:$0x1]
    %v82 = vld [vmem:[%s8] sm:$0x1]
    %v83 = vld [vmem:[%s5] sm:$0x1]
    %v84 = vld [vmem:[%s9] sm:$0x1]
    %v85 = vld [vmem:[%s1] sm:$0xff]
    %v86 = vld [vmem:[%s1 + $0x8] sm:$0xff]
    %v87 = vld [vmem:[%s1 + $0x10] sm:$0xff]
    %v88 = vld [vmem:[%s1 + $0x18] sm:$0xff]
    %v90 = vlaneseq
    %v91 = vshrl.u32 %v90, 7
    %v92 = vsub.s32 0, %v91
    %v93 = vrot.slane %v81, %v92
    %vm95 = vcmask 130048
    %v97 = vsel %vm95, %v85, 0
    %v100 = vsel %vm95, %v86, 0
    %v103 = vsel %vm95, %v87, 0
    %v106 = vsel %vm95, %v88, 0
    %108 = vmatprep.subr.mxu0 0.0
    %109 = vmatpush1.msra.mxu0 %v67
    %110 = vmatprep.subr.mxu0 0.0
    %111 = vmatpush1.msra.mxu0 %v68
    %112 = vmatprep.subr.mxu0 0.0
    %113 = vmatpush1.msra.mxu0 0.0
    %114 = vmatprep.subr.mxu0 0.0
    %115 = vmatpush1.msra.mxu0 0.0
    %116 = vmatprep.subr.mxu0 0.0
    %117 = vmatpush1.msra.mxu0 0.0
    %118 = vmatprep.subr.mxu0 0.0
    %119 = vmatpush1.msra.mxu0 0.0
    %120 = vmatprep.subr.mxu0 0.0
    %121 = vmatpush1.msra.mxu0 0.0
    %122 = vmatprep.subr.mxu0 0.0
    %123 = vmatpush1.msra.mxu0 0.0
    %124 = vmatprep.subr.mxu0 0.0
    %125 = vmatpush1.msra.mxu0 0.0
    %126 = vmatprep.subr.mxu0 0.0
    %127 = vmatpush1.msra.mxu0 0.0
    %128 = vmatprep.subr.mxu0 0.0
    %129 = vmatpush1.msra.mxu0 0.0
    %130 = vmatprep.subr.mxu0 0.0
    %131 = vmatpush1.msra.mxu0 0.0
    %132 = vmatprep.subr.mxu0 0.0
    %133 = vmatpush1.msra.mxu0 0.0
    %134 = vmatprep.subr.mxu0 0.0
    %135 = vmatpush1.msra.mxu0 0.0
    %136 = vmatprep.subr.mxu0 0.0
    %137 = vmatpush1.msra.mxu0 0.0
    %138 = vmatprep.subr.mxu0 0.0
    %139 = vmatpush1.msra.mxu0 0.0
    %140 = vmatprep.subr.mxu0 0.0
    %141 = vmatpush1.msra.mxu0 0.0
    %142 = vmatprep.subr.mxu0 0.0
    %143 = vmatpush1.msra.mxu0 0.0
    %144 = vmatprep.subr.mxu0 0.0
    %145 = vmatpush1.msra.mxu0 0.0
    %146 = vmatprep.subr.mxu0 0.0
    %147 = vmatpush1.msra.mxu0 0.0
    %148 = vmatprep.subr.mxu0 0.0
    %149 = vmatpush1.msra.mxu0 0.0
    %150 = vmatprep.subr.mxu0 0.0
    %151 = vmatpush1.msra.mxu0 0.0
    %152 = vmatprep.subr.mxu0 0.0
    %153 = vmatpush1.msra.mxu0 0.0
    %154 = vmatprep.subr.mxu0 0.0
    %155 = vmatpush1.msra.mxu0 0.0
    %156 = vmatprep.subr.mxu0 0.0
    %157 = vmatpush1.msra.mxu0 0.0
    %158 = vmatprep.subr.mxu0 0.0
    %159 = vmatpush1.msra.mxu0 0.0
    %160 = vmatprep.subr.mxu0 0.0
    %161 = vmatpush1.msra.mxu0 0.0
    %162 = vmatprep.subr.mxu0 0.0
    %163 = vmatpush1.msra.mxu0 0.0
    %164 = vmatprep.subr.mxu0 0.0
    %165 = vmatpush1.msra.mxu0 0.0
    %166 = vmatprep.subr.mxu0 0.0
    %167 = vmatpush1.msra.mxu0 0.0
    %168 = vmatprep.subr.mxu0 0.0
    %169 = vmatpush1.msra.mxu0 0.0
    %170 = vmatprep.subr.mxu0 0.0
    %171 = vmatpush1.msra.mxu0 0.0
    %172 = vmatprep.mubr.f32.mxu0 0.0
    %173 = vmatmul.mubr.f32.gmra.mrb[0].mxu0 %v97
    %v174 = vpop.f32.mrb[0].mxu0
    %v175 = vadd.f32 %v93, %v174
    %v176 = vpop.f32.mrb[0].mxu0
    %177 = vmatprep.mubr.f32.mxu0 0.0
    %178 = vmatmul.mubr.f32.gmra.mrb[0].mxu0 %v100
    %v179 = vpop.f32.mrb[0].mxu0
    %v180 = vadd.f32 %v93, %v179
    %v181 = vpop.f32.mrb[0].mxu0
    %182 = vmatprep.mubr.f32.mxu0 0.0
    %183 = vmatmul.mubr.f32.gmra.mrb[0].mxu0 %v103
    %v184 = vpop.f32.mrb[0].mxu0
    %v185 = vadd.f32 %v93, %v184
    %v186 = vpop.f32.mrb[0].mxu0
    %187 = vmatprep.mubr.f32.mxu0 0.0
    %188 = vmatmul.mubr.f32.gmra.mrb[0].mxu0 %v106
    %v189 = vpop.f32.mrb[0].mxu0
    %v190 = vadd.f32 %v93, %v189
    %v191 = vpop.f32.mrb[0].mxu0
    %192 = vdwg.mxu0
    %vm193 = vcmask 261120
    %v195 = vsel %vm193, 0.0, 0
    %197 = vmatprep.subr.mxu0 0.0
    %198 = vmatpush1.msra.mxu0 %v73
    %199 = vmatprep.subr.mxu0 0.0
    %200 = vmatpush1.msra.mxu0 %v74
    %201 = vmatprep.subr.mxu0 0.0
    %202 = vmatpush1.msra.mxu0 %v75
    %203 = vmatprep.subr.mxu0 0.0
    %204 = vmatpush1.msra.mxu0 %v76
    %205 = vmatprep.subr.mxu0 0.0
    %206 = vmatpush1.msra.mxu0 0.0
    %207 = vmatprep.subr.mxu0 0.0
    %208 = vmatpush1.msra.mxu0 0.0
    %209 = vmatprep.subr.mxu0 0.0
    %210 = vmatpush1.msra.mxu0 0.0
    %211 = vmatprep.subr.mxu0 0.0
    %212 = vmatpush1.msra.mxu0 0.0
    %213 = vmatprep.subr.mxu0 0.0
    %214 = vmatpush1.msra.mxu0 0.0
    %215 = vmatprep.subr.mxu0 0.0
    %216 = vmatpush1.msra.mxu0 0.0
    %217 = vmatprep.subr.mxu0 0.0
    %218 = vmatpush1.msra.mxu0 0.0
    %219 = vmatprep.subr.mxu0 0.0
    %220 = vmatpush1.msra.mxu0 0.0
    %221 = vmatprep.subr.mxu0 0.0
    %222 = vmatpush1.msra.mxu0 0.0
    %223 = vmatprep.subr.mxu0 0.0
    %224 = vmatpush1.msra.mxu0 0.0
    %225 = vmatprep.subr.mxu0 0.0
    %226 = vmatpush1.msra.mxu0 0.0
    %227 = vmatprep.subr.mxu0 0.0
    %228 = vmatpush1.msra.mxu0 0.0
    %229 = vmatprep.subr.mxu0 0.0
    %230 = vmatpush1.msra.mxu0 0.0
    %231 = vmatprep.subr.mxu0 0.0
    %232 = vmatpush1.msra.mxu0 0.0
    %233 = vmatprep.subr.mxu0 0.0
    %234 = vmatpush1.msra.mxu0 0.0
    %235 = vmatprep.subr.mxu0 0.0
    %236 = vmatpush1.msra.mxu0 0.0
    %237 = vmatprep.subr.mxu0 0.0
    %238 = vmatpush1.msra.mxu0 0.0
    %239 = vmatprep.subr.mxu0 0.0
    %240 = vmatpush1.msra.mxu0 0.0
    %241 = vmatprep.subr.mxu0 0.0
    %242 = vmatpush1.msra.mxu0 0.0
    %243 = vmatprep.subr.mxu0 0.0
    %244 = vmatpush1.msra.mxu0 0.0
    %245 = vmatprep.subr.mxu0 0.0
    %246 = vmatpush1.msra.mxu0 0.0
    %247 = vmatprep.subr.mxu0 0.0
    %248 = vmatpush1.msra.mxu0 0.0
    %249 = vmatprep.subr.mxu0 0.0
    %250 = vmatpush1.msra.mxu0 0.0
    %251 = vmatprep.subr.mxu0 0.0
    %252 = vmatpush1.msra.mxu0 0.0
    %253 = vmatprep.subr.mxu0 0.0
    %254 = vmatpush1.msra.mxu0 0.0
    %255 = vmatprep.subr.mxu0 0.0
    %256 = vmatpush1.msra.mxu0 0.0
    %257 = vmatprep.subr.mxu0 0.0
    %258 = vmatpush1.msra.mxu0 0.0
    %259 = vmatprep.subr.mxu0 0.0
    %260 = vmatpush1.msra.mxu0 0.0
    %261 = vmatprep.mubr.f32.mxu0 0.0
    %262 = vmatmul.mubr.f32.gmra.mrb[0].mxu0 %v195
    %v263 = vpop.f32.mrb[0].mxu0
    %v264 = vadd.f32 0.0, %v263
    %v265 = vpop.f32.mrb[0].mxu0
    %266 = vdwg.mxu0
    %v267 = vadd.f32 %v175, %v264
    %v268 = vxor.u32 %v267, 2147483648
    %v269 = vmul.f32 %v268, 1.442695
    %v270 = vpow.pop %v269
    %v271 = vadd.f32 %v270, 1.0
    %v272 = vrcp.pop %v271
    %v273 = vmul.f32 1.0, %v272
    %v275 = vlaneseq
    %v276 = vshrl.u32 %v275, 7
    %v277 = vsub.s32 0, %v276
    %v278 = vrot.slane %v83, %v277
    %279 = vrot.lane.b32.xlu0 %v278, 64
    %v280 = vpop.permute.xlu0 %279
    %v282 = vadd.f32 %v264, %v280
    %284 = vrot.lane.b32.xlu0 %v282, 64
    %v285 = vpop.permute.xlu0 %284
    %v287 = vmul.f32 %v273, %v285
    %289 = vrot.lane.b32.xlu0 %v287, 64
    %v290 = vpop.permute.xlu0 %289
    %v292 = vadd.f32 %v175, %v290
    %v293 = vtanh.pop %v292
    %v294 = vsub.f32 0.0, %v293
    %296 = vrot.lane.b32.xlu0 %v294, 96
    %v297 = vpop.permute.xlu0 %296
    %v299 = vmul.f32 %v273, %v297
    %301 = vrot.lane.b32.xlu0 %v299, 32
    %v302 = vpop.permute.xlu0 %301
    %v304 = vadd.f32 %v293, %v302
    %306 = vset.pattern.permute.xlu0 0
    %307 = vperm.xlu0 %306, %v45
    %v308 = vpop.permute.xlu0 %307
    %v310 = vmul.f32 %v308, %v304
    %v311 = vadd.f32 %v310, 0.0
    %313 = vrot.lane.b32.xlu0 %v311, 64
    %v314 = vpop.permute.xlu0 %313
    %v315 = vsel %vm193, %v314, 0
    %317 = vmatprep.subr.mxu0 0.0
    %318 = vmatpush1.msra.mxu0 %v73
    %319 = vmatprep.subr.mxu0 0.0
    %320 = vmatpush1.msra.mxu0 %v74
    %321 = vmatprep.subr.mxu0 0.0
    %322 = vmatpush1.msra.mxu0 %v75
    %323 = vmatprep.subr.mxu0 0.0
    %324 = vmatpush1.msra.mxu0 %v76
    %325 = vmatprep.subr.mxu0 0.0
    %326 = vmatpush1.msra.mxu0 0.0
    %327 = vmatprep.subr.mxu0 0.0
    %328 = vmatpush1.msra.mxu0 0.0
    %329 = vmatprep.subr.mxu0 0.0
    %330 = vmatpush1.msra.mxu0 0.0
    %331 = vmatprep.subr.mxu0 0.0
    %332 = vmatpush1.msra.mxu0 0.0
    %333 = vmatprep.subr.mxu0 0.0
    %334 = vmatpush1.msra.mxu0 0.0
    %335 = vmatprep.subr.mxu0 0.0
    %336 = vmatpush1.msra.mxu0 0.0
    %337 = vmatprep.subr.mxu0 0.0
    %338 = vmatpush1.msra.mxu0 0.0
    %339 = vmatprep.subr.mxu0 0.0
    %340 = vmatpush1.msra.mxu0 0.0
    %341 = vmatprep.subr.mxu0 0.0
    %342 = vmatpush1.msra.mxu0 0.0
    %343 = vmatprep.subr.mxu0 0.0
    %344 = vmatpush1.msra.mxu0 0.0
    %345 = vmatprep.subr.mxu0 0.0
    %346 = vmatpush1.msra.mxu0 0.0
    %347 = vmatprep.subr.mxu0 0.0
    %348 = vmatpush1.msra.mxu0 0.0
    %349 = vmatprep.subr.mxu0 0.0
    %350 = vmatpush1.msra.mxu0 0.0
    %351 = vmatprep.subr.mxu0 0.0
    %352 = vmatpush1.msra.mxu0 0.0
    %353 = vmatprep.subr.mxu0 0.0
    %354 = vmatpush1.msra.mxu0 0.0
    %355 = vmatprep.subr.mxu0 0.0
    %356 = vmatpush1.msra.mxu0 0.0
    %357 = vmatprep.subr.mxu0 0.0
    %358 = vmatpush1.msra.mxu0 0.0
    %359 = vmatprep.subr.mxu0 0.0
    %360 = vmatpush1.msra.mxu0 0.0
    %361 = vmatprep.subr.mxu0 0.0
    %362 = vmatpush1.msra.mxu0 0.0
    %363 = vmatprep.subr.mxu0 0.0
    %364 = vmatpush1.msra.mxu0 0.0
    %365 = vmatprep.subr.mxu0 0.0
    %366 = vmatpush1.msra.mxu0 0.0
    %367 = vmatprep.subr.mxu0 0.0
    %368 = vmatpush1.msra.mxu0 0.0
    %369 = vmatprep.subr.mxu0 0.0
    %370 = vmatpush1.msra.mxu0 0.0
    %371 = vmatprep.subr.mxu0 0.0
    %372 = vmatpush1.msra.mxu0 0.0
    %373 = vmatprep.subr.mxu0 0.0
    %374 = vmatpush1.msra.mxu0 0.0
    %375 = vmatprep.subr.mxu0 0.0
    %376 = vmatpush1.msra.mxu0 0.0
    %377 = vmatprep.subr.mxu0 0.0
    %378 = vmatpush1.msra.mxu0 0.0
    %379 = vmatprep.subr.mxu0 0.0
    %380 = vmatpush1.msra.mxu0 0.0
    %381 = vmatprep.mubr.f32.mxu0 0.0
    %382 = vmatmul.mubr.f32.gmra.mrb[0].mxu0 %v315
    %v383 = vpop.f32.mrb[0].mxu0
    %v384 = vadd.f32 0.0, %v383
    %v385 = vpop.f32.mrb[0].mxu0
    %386 = vdwg.mxu0
    %v388 = vrot.slane %v384, 4
    %v390 = vadd.f32 %v175, %v388
    %v391 = vxor.u32 %v390, 2147483648
    %v392 = vmul.f32 %v391, 1.442695
    %v393 = vpow.pop %v392
    %v394 = vadd.f32 %v393, 1.0
    %v395 = vrcp.pop %v394
    %v396 = vmul.f32 1.0, %v395
    %v397 = vadd.f32 %v384, %v280
    %v399 = vrot.slane %v397, 4
    %400 = vrot.lane.b32.xlu0 %v399, 64
    %v401 = vpop.permute.xlu0 %400
    %v403 = vmul.f32 %v396, %v401
    %405 = vrot.lane.b32.xlu0 %v403, 64
    %v406 = vpop.permute.xlu0 %405
    %v408 = vadd.f32 %v175, %v406
    %v409 = vtanh.pop %v408
    %v411 = vrot.slane %v409, 4
    %v413 = vsub.f32 %v311, %v411
    %v415 = vrot.slane %v413, 4
    %416 = vrot.lane.b32.xlu0 %v415, 96
    %v417 = vpop.permute.xlu0 %416
    %v419 = vmul.f32 %v396, %v417
    %421 = vrot.lane.b32.xlu0 %v419, 32
    %v422 = vpop.permute.xlu0 %421
    %v424 = vadd.f32 %v409, %v422
    %v425 = vrot.slane %v311, 4
    %v427 = vsub.f32 %v424, %v425
    %429 = vset.pattern.permute.xlu0 0
    %430 = vperm.xlu0 %429, %v48
    %v431 = vpop.permute.xlu0 %430
    %v434 = vrot.slane %v427, 4
    %435 = vrot.lane.b32.xlu0 %v434, 64
    %v436 = vpop.permute.xlu0 %435
    %v438 = vmul.f32 %v431, %v436
    %440 = vrot.lane.b32.xlu0 %v438, 64
    %v441 = vpop.permute.xlu0 %440
    %v443 = vadd.f32 %v311, %v441
    %v445 = vlaneseq
    %v446 = vshrl.u32 %v445, 7
    %v447 = vsub.s32 0, %v446
    %v448 = vrot.slane %v82, %v447
    %450 = vmatprep.subr.mxu0 0.0
    %451 = vmatpush1.msra.mxu0 %v69
    %452 = vmatprep.subr.mxu0 0.0
    %453 = vmatpush1.msra.mxu0 %v70
    %454 = vmatprep.subr.mxu0 0.0
    %455 = vmatpush1.msra.mxu0 %v71
    %456 = vmatprep.subr.mxu0 0.0
    %457 = vmatpush1.msra.mxu0 %v72
    %458 = vmatprep.subr.mxu0 0.0
    %459 = vmatpush1.msra.mxu0 0.0
    %460 = vmatprep.subr.mxu0 0.0
    %461 = vmatpush1.msra.mxu0 0.0
    %462 = vmatprep.subr.mxu0 0.0
    %463 = vmatpush1.msra.mxu0 0.0
    %464 = vmatprep.subr.mxu0 0.0
    %465 = vmatpush1.msra.mxu0 0.0
    %466 = vmatprep.subr.mxu0 0.0
    %467 = vmatpush1.msra.mxu0 0.0
    %468 = vmatprep.subr.mxu0 0.0
    %469 = vmatpush1.msra.mxu0 0.0
    %470 = vmatprep.subr.mxu0 0.0
    %471 = vmatpush1.msra.mxu0 0.0
    %472 = vmatprep.subr.mxu0 0.0
    %473 = vmatpush1.msra.mxu0 0.0
    %474 = vmatprep.subr.mxu0 0.0
    %475 = vmatpush1.msra.mxu0 0.0
    %476 = vmatprep.subr.mxu0 0.0
    %477 = vmatpush1.msra.mxu0 0.0
    %478 = vmatprep.subr.mxu0 0.0
    %479 = vmatpush1.msra.mxu0 0.0
    %480 = vmatprep.subr.mxu0 0.0
    %481 = vmatpush1.msra.mxu0 0.0
    %482 = vmatprep.subr.mxu0 0.0
    %483 = vmatpush1.msra.mxu0 0.0
    %484 = vmatprep.subr.mxu0 0.0
    %485 = vmatpush1.msra.mxu0 0.0
    %486 = vmatprep.subr.mxu0 0.0
    %487 = vmatpush1.msra.mxu0 0.0
    %488 = vmatprep.subr.mxu0 0.0
    %489 = vmatpush1.msra.mxu0 0.0
    %490 = vmatprep.subr.mxu0 0.0
    %491 = vmatpush1.msra.mxu0 0.0
    %492 = vmatprep.subr.mxu0 0.0
    %493 = vmatpush1.msra.mxu0 0.0
    %494 = vmatprep.subr.mxu0 0.0
    %495 = vmatpush1.msra.mxu0 0.0
    %496 = vmatprep.subr.mxu0 0.0
    %497 = vmatpush1.msra.mxu0 0.0
    %498 = vmatprep.subr.mxu0 0.0
    %499 = vmatpush1.msra.mxu0 0.0
    %500 = vmatprep.subr.mxu0 0.0
    %501 = vmatpush1.msra.mxu0 0.0
    %502 = vmatprep.subr.mxu0 0.0
    %503 = vmatpush1.msra.mxu0 0.0
    %504 = vmatprep.subr.mxu0 0.0
    %505 = vmatpush1.msra.mxu0 0.0
    %506 = vmatprep.subr.mxu0 0.0
    %507 = vmatpush1.msra.mxu0 0.0
    %508 = vmatprep.subr.mxu0 0.0
    %509 = vmatpush1.msra.mxu0 0.0
    %510 = vmatprep.subr.mxu0 0.0
    %511 = vmatpush1.msra.mxu0 0.0
    %512 = vmatprep.subr.mxu0 0.0
    %513 = vmatpush1.msra.mxu0 0.0
    %514 = vmatprep.mubr.f32.mxu0 0.0
    %515 = vmatmul.mubr.f32.gmra.mrb[0].mxu0 %v315
    %v516 = vpop.f32.mrb[0].mxu0
    %v517 = vadd.f32 %v448, %v516
    %v518 = vpop.f32.mrb[0].mxu0
    %519 = vdwg.mxu0
    %520 = vmatprep.subr.mxu0 0.0
    %521 = vmatpush1.msra.mxu0 %v77
    %522 = vmatprep.subr.mxu0 0.0
    %523 = vmatpush1.msra.mxu0 %v78
    %524 = vmatprep.subr.mxu0 0.0
    %525 = vmatpush1.msra.mxu0 %v79
    %526 = vmatprep.subr.mxu0 0.0
    %527 = vmatpush1.msra.mxu0 %v80
    %528 = vmatprep.subr.mxu0 0.0
    %529 = vmatpush1.msra.mxu0 0.0
    %530 = vmatprep.subr.mxu0 0.0
    %531 = vmatpush1.msra.mxu0 0.0
    %532 = vmatprep.subr.mxu0 0.0
    %533 = vmatpush1.msra.mxu0 0.0
    %534 = vmatprep.subr.mxu0 0.0
    %535 = vmatpush1.msra.mxu0 0.0
    %536 = vmatprep.subr.mxu0 0.0
    %537 = vmatpush1.msra.mxu0 0.0
    %538 = vmatprep.subr.mxu0 0.0
    %539 = vmatpush1.msra.mxu0 0.0
    %540 = vmatprep.subr.mxu0 0.0
    %541 = vmatpush1.msra.mxu0 0.0
    %542 = vmatprep.subr.mxu0 0.0
    %543 = vmatpush1.msra.mxu0 0.0
    %544 = vmatprep.subr.mxu0 0.0
    %545 = vmatpush1.msra.mxu0 0.0
    %546 = vmatprep.subr.mxu0 0.0
    %547 = vmatpush1.msra.mxu0 0.0
    %548 = vmatprep.subr.mxu0 0.0
    %549 = vmatpush1.msra.mxu0 0.0
    %550 = vmatprep.subr.mxu0 0.0
    %551 = vmatpush1.msra.mxu0 0.0
    %552 = vmatprep.subr.mxu0 0.0
    %553 = vmatpush1.msra.mxu0 0.0
    %554 = vmatprep.subr.mxu0 0.0
    %555 = vmatpush1.msra.mxu0 0.0
    %556 = vmatprep.subr.mxu0 0.0
    %557 = vmatpush1.msra.mxu0 0.0
    %558 = vmatprep.subr.mxu0 0.0
    %559 = vmatpush1.msra.mxu0 0.0
    %560 = vmatprep.subr.mxu0 0.0
    %561 = vmatpush1.msra.mxu0 0.0
    %562 = vmatprep.subr.mxu0 0.0
    %563 = vmatpush1.msra.mxu0 0.0
    %564 = vmatprep.subr.mxu0 0.0
    %565 = vmatpush1.msra.mxu0 0.0
    %566 = vmatprep.subr.mxu0 0.0
    %567 = vmatpush1.msra.mxu0 0.0
    %568 = vmatprep.subr.mxu0 0.0
    %569 = vmatpush1.msra.mxu0 0.0
    %570 = vmatprep.subr.mxu0 0.0
    %571 = vmatpush1.msra.mxu0 0.0
    %572 = vmatprep.subr.mxu0 0.0
    %573 = vmatpush1.msra.mxu0 0.0
    %574 = vmatprep.subr.mxu0 0.0
    %575 = vmatpush1.msra.mxu0 0.0
    %576 = vmatprep.subr.mxu0 0.0
    %577 = vmatpush1.msra.mxu0 0.0
    %578 = vmatprep.subr.mxu0 0.0
    %579 = vmatpush1.msra.mxu0 0.0
    %580 = vmatprep.subr.mxu0 0.0
    %581 = vmatpush1.msra.mxu0 0.0
    %582 = vmatprep.subr.mxu0 0.0
    %583 = vmatpush1.msra.mxu0 0.0
    %584 = vmatprep.mubr.f32.mxu0 0.0
    %585 = vmatmul.mubr.f32.gmra.mrb[0].mxu0 %v195
    %v586 = vpop.f32.mrb[0].mxu0
    %v587 = vadd.f32 0.0, %v586
    %v588 = vpop.f32.mrb[0].mxu0
    %589 = vdwg.mxu0
    %v590 = vadd.f32 %v517, %v587
    %v591 = vxor.u32 %v590, 2147483648
    %v592 = vmul.f32 %v591, 1.442695
    %v593 = vpow.pop %v592
    %v594 = vadd.f32 %v593, 1.0
    %v595 = vrcp.pop %v594
    %v596 = vmul.f32 1.0, %v595
    %v598 = vlaneseq
    %v599 = vshrl.u32 %v598, 7
    %v600 = vsub.s32 0, %v599
    %v601 = vrot.slane %v84, %v600
    %602 = vrot.lane.b32.xlu0 %v601, 64
    %v603 = vpop.permute.xlu0 %602
    %v605 = vadd.f32 %v587, %v603
    %607 = vrot.lane.b32.xlu0 %v605, 64
    %v608 = vpop.permute.xlu0 %607
    %v610 = vmul.f32 %v596, %v608
    %612 = vrot.lane.b32.xlu0 %v610, 64
    %v613 = vpop.permute.xlu0 %612
    %v615 = vadd.f32 %v517, %v613
    %v616 = vtanh.pop %v615
    %v617 = vsub.f32 0.0, %v616
    %619 = vrot.lane.b32.xlu0 %v617, 96
    %v620 = vpop.permute.xlu0 %619
    %v622 = vmul.f32 %v596, %v620
    %624 = vrot.lane.b32.xlu0 %v622, 32
    %v625 = vpop.permute.xlu0 %624
    %v627 = vadd.f32 %v616, %v625
    %v628 = vmul.f32 %v308, %v627
    %v629 = vadd.f32 %v628, 0.0
    %631 = vrot.lane.b32.xlu0 %v443, 64
    %v632 = vpop.permute.xlu0 %631
    %v633 = vsel %vm193, %v632, 0
    %635 = vmatprep.subr.mxu0 0.0
    %636 = vmatpush1.msra.mxu0 %v73
    %637 = vmatprep.subr.mxu0 0.0
    %638 = vmatpush1.msra.mxu0 %v74
    %639 = vmatprep.subr.mxu0 0.0
    %640 = vmatpush1.msra.mxu0 %v75
    %641 = vmatprep.subr.mxu0 0.0
    %642 = vmatpush1.msra.mxu0 %v76
    %643 = vmatprep.subr.mxu0 0.0
    %644 = vmatpush1.msra.mxu0 0.0
    %645 = vmatprep.subr.mxu0 0.0
    %646 = vmatpush1.msra.mxu0 0.0
    %647 = vmatprep.subr.mxu0 0.0
    %648 = vmatpush1.msra.mxu0 0.0
    %649 = vmatprep.subr.mxu0 0.0
    %650 = vmatpush1.msra.mxu0 0.0
    %651 = vmatprep.subr.mxu0 0.0
    %652 = vmatpush1.msra.mxu0 0.0
    %653 = vmatprep.subr.mxu0 0.0
    %654 = vmatpush1.msra.mxu0 0.0
    %655 = vmatprep.subr.mxu0 0.0
    %656 = vmatpush1.msra.mxu0 0.0
    %657 = vmatprep.subr.mxu0 0.0
    %658 = vmatpush1.msra.mxu0 0.0
    %659 = vmatprep.subr.mxu0 0.0
    %660 = vmatpush1.msra.mxu0 0.0
    %661 = vmatprep.subr.mxu0 0.0
    %662 = vmatpush1.msra.mxu0 0.0
    %663 = vmatprep.subr.mxu0 0.0
    %664 = vmatpush1.msra.mxu0 0.0
    %665 = vmatprep.subr.mxu0 0.0
    %666 = vmatpush1.msra.mxu0 0.0
    %667 = vmatprep.subr.mxu0 0.0
    %668 = vmatpush1.msra.mxu0 0.0
    %669 = vmatprep.subr.mxu0 0.0
    %670 = vmatpush1.msra.mxu0 0.0
    %671 = vmatprep.subr.mxu0 0.0
    %672 = vmatpush1.msra.mxu0 0.0
    %673 = vmatprep.subr.mxu0 0.0
    %674 = vmatpush1.msra.mxu0 0.0
    %675 = vmatprep.subr.mxu0 0.0
    %676 = vmatpush1.msra.mxu0 0.0
    %677 = vmatprep.subr.mxu0 0.0
    %678 = vmatpush1.msra.mxu0 0.0
    %679 = vmatprep.subr.mxu0 0.0
    %680 = vmatpush1.msra.mxu0 0.0
    %681 = vmatprep.subr.mxu0 0.0
    %682 = vmatpush1.msra.mxu0 0.0
    %683 = vmatprep.subr.mxu0 0.0
    %684 = vmatpush1.msra.mxu0 0.0
    %685 = vmatprep.subr.mxu0 0.0
    %686 = vmatpush1.msra.mxu0 0.0
    %687 = vmatprep.subr.mxu0 0.0
    %688 = vmatpush1.msra.mxu0 0.0
    %689 = vmatprep.subr.mxu0 0.0
    %690 = vmatpush1.msra.mxu0 0.0
    %691 = vmatprep.subr.mxu0 0.0
    %692 = vmatpush1.msra.mxu0 0.0
    %693 = vmatprep.subr.mxu0 0.0
    %694 = vmatpush1.msra.mxu0 0.0
    %695 = vmatprep.subr.mxu0 0.0
    %696 = vmatpush1.msra.mxu0 0.0
    %697 = vmatprep.subr.mxu0 0.0
    %698 = vmatpush1.msra.mxu0 0.0
    %699 = vmatprep.mubr.f32.mxu0 0.0
    %700 = vmatmul.mubr.f32.gmra.mrb[0].mxu0 %v633
    %v701 = vpop.f32.mrb[0].mxu0
    %v702 = vadd.f32 0.0, %v701
    %v703 = vpop.f32.mrb[0].mxu0
    %704 = vdwg.mxu0
    %v705 = vadd.f32 %v180, %v702
    %v706 = vxor.u32 %v705, 2147483648
    %v707 = vmul.f32 %v706, 1.442695
    %v708 = vpow.pop %v707
    %v709 = vadd.f32 %v708, 1.0
    %v710 = vrcp.pop %v709
    %v711 = vmul.f32 1.0, %v710
    %v712 = vadd.f32 %v702, %v280
    %714 = vrot.lane.b32.xlu0 %v712, 64
    %v715 = vpop.permute.xlu0 %714
    %v717 = vmul.f32 %v711, %v715
    %719 = vrot.lane.b32.xlu0 %v717, 64
    %v720 = vpop.permute.xlu0 %719
    %v722 = vadd.f32 %v180, %v720
    %v723 = vtanh.pop %v722
    %v724 = vsub.f32 %v443, %v723
    %726 = vrot.lane.b32.xlu0 %v724, 96
    %v727 = vpop.permute.xlu0 %726
    %v729 = vmul.f32 %v711, %v727
    %731 = vrot.lane.b32.xlu0 %v729, 32
    %v732 = vpop.permute.xlu0 %731
    %v734 = vadd.f32 %v723, %v732
    %v735 = vsub.f32 %v734, %v443
    %737 = vset.pattern.permute.xlu0 0
    %738 = vperm.xlu0 %737, %v51
    %v739 = vpop.permute.xlu0 %738
    %v741 = vmul.f32 %v739, %v735
    %v742 = vadd.f32 %v443, %v741
    %743 = vmatprep.subr.mxu0 0.0
    %744 = vmatpush1.msra.mxu0 %v69
    %745 = vmatprep.subr.mxu0 0.0
    %746 = vmatpush1.msra.mxu0 %v70
    %747 = vmatprep.subr.mxu0 0.0
    %748 = vmatpush1.msra.mxu0 %v71
    %749 = vmatprep.subr.mxu0 0.0
    %750 = vmatpush1.msra.mxu0 %v72
    %751 = vmatprep.subr.mxu0 0.0
    %752 = vmatpush1.msra.mxu0 0.0
    %753 = vmatprep.subr.mxu0 0.0
    %754 = vmatpush1.msra.mxu0 0.0
    %755 = vmatprep.subr.mxu0 0.0
    %756 = vmatpush1.msra.mxu0 0.0
    %757 = vmatprep.subr.mxu0 0.0
    %758 = vmatpush1.msra.mxu0 0.0
    %759 = vmatprep.subr.mxu0 0.0
    %760 = vmatpush1.msra.mxu0 0.0
    %761 = vmatprep.subr.mxu0 0.0
    %762 = vmatpush1.msra.mxu0 0.0
    %763 = vmatprep.subr.mxu0 0.0
    %764 = vmatpush1.msra.mxu0 0.0
    %765 = vmatprep.subr.mxu0 0.0
    %766 = vmatpush1.msra.mxu0 0.0
    %767 = vmatprep.subr.mxu0 0.0
    %768 = vmatpush1.msra.mxu0 0.0
    %769 = vmatprep.subr.mxu0 0.0
    %770 = vmatpush1.msra.mxu0 0.0
    %771 = vmatprep.subr.mxu0 0.0
    %772 = vmatpush1.msra.mxu0 0.0
    %773 = vmatprep.subr.mxu0 0.0
    %774 = vmatpush1.msra.mxu0 0.0
    %775 = vmatprep.subr.mxu0 0.0
    %776 = vmatpush1.msra.mxu0 0.0
    %777 = vmatprep.subr.mxu0 0.0
    %778 = vmatpush1.msra.mxu0 0.0
    %779 = vmatprep.subr.mxu0 0.0
    %780 = vmatpush1.msra.mxu0 0.0
    %781 = vmatprep.subr.mxu0 0.0
    %782 = vmatpush1.msra.mxu0 0.0
    %783 = vmatprep.subr.mxu0 0.0
    %784 = vmatpush1.msra.mxu0 0.0
    %785 = vmatprep.subr.mxu0 0.0
    %786 = vmatpush1.msra.mxu0 0.0
    %787 = vmatprep.subr.mxu0 0.0
    %788 = vmatpush1.msra.mxu0 0.0
    %789 = vmatprep.subr.mxu0 0.0
    %790 = vmatpush1.msra.mxu0 0.0
    %791 = vmatprep.subr.mxu0 0.0
    %792 = vmatpush1.msra.mxu0 0.0
    %793 = vmatprep.subr.mxu0 0.0
    %794 = vmatpush1.msra.mxu0 0.0
    %795 = vmatprep.subr.mxu0 0.0
    %796 = vmatpush1.msra.mxu0 0.0
    %797 = vmatprep.subr.mxu0 0.0
    %798 = vmatpush1.msra.mxu0 0.0
    %799 = vmatprep.subr.mxu0 0.0
    %800 = vmatpush1.msra.mxu0 0.0
    %801 = vmatprep.subr.mxu0 0.0
    %802 = vmatpush1.msra.mxu0 0.0
    %803 = vmatprep.subr.mxu0 0.0
    %804 = vmatpush1.msra.mxu0 0.0
    %805 = vmatprep.subr.mxu0 0.0
    %806 = vmatpush1.msra.mxu0 0.0
    %807 = vmatprep.mubr.f32.mxu0 0.0
    %808 = vmatmul.mubr.f32.gmra.mrb[0].mxu0 %v633
    %v809 = vpop.f32.mrb[0].mxu0
    %v810 = vadd.f32 %v448, %v809
    %v811 = vpop.f32.mrb[0].mxu0
    %812 = vdwg.mxu0
    %814 = vrot.lane.b32.xlu0 %v629, 64
    %v815 = vpop.permute.xlu0 %814
    %v816 = vsel %vm193, %v815, 0
    %818 = vmatprep.subr.mxu0 0.0
    %819 = vmatpush1.msra.mxu0 %v77
    %820 = vmatprep.subr.mxu0 0.0
    %821 = vmatpush1.msra.mxu0 %v78
    %822 = vmatprep.subr.mxu0 0.0
    %823 = vmatpush1.msra.mxu0 %v79
    %824 = vmatprep.subr.mxu0 0.0
    %825 = vmatpush1.msra.mxu0 %v80
    %826 = vmatprep.subr.mxu0 0.0
    %827 = vmatpush1.msra.mxu0 0.0
    %828 = vmatprep.subr.mxu0 0.0
    %829 = vmatpush1.msra.mxu0 0.0
    %830 = vmatprep.subr.mxu0 0.0
    %831 = vmatpush1.msra.mxu0 0.0
    %832 = vmatprep.subr.mxu0 0.0
    %833 = vmatpush1.msra.mxu0 0.0
    %834 = vmatprep.subr.mxu0 0.0
    %835 = vmatpush1.msra.mxu0 0.0
    %836 = vmatprep.subr.mxu0 0.0
    %837 = vmatpush1.msra.mxu0 0.0
    %838 = vmatprep.subr.mxu0 0.0
    %839 = vmatpush1.msra.mxu0 0.0
    %840 = vmatprep.subr.mxu0 0.0
    %841 = vmatpush1.msra.mxu0 0.0
    %842 = vmatprep.subr.mxu0 0.0
    %843 = vmatpush1.msra.mxu0 0.0
    %844 = vmatprep.subr.mxu0 0.0
    %845 = vmatpush1.msra.mxu0 0.0
    %846 = vmatprep.subr.mxu0 0.0
    %847 = vmatpush1.msra.mxu0 0.0
    %848 = vmatprep.subr.mxu0 0.0
    %849 = vmatpush1.msra.mxu0 0.0
    %850 = vmatprep.subr.mxu0 0.0
    %851 = vmatpush1.msra.mxu0 0.0
    %852 = vmatprep.subr.mxu0 0.0
    %853 = vmatpush1.msra.mxu0 0.0
    %854 = vmatprep.subr.mxu0 0.0
    %855 = vmatpush1.msra.mxu0 0.0
    %856 = vmatprep.subr.mxu0 0.0
    %857 = vmatpush1.msra.mxu0 0.0
    %858 = vmatprep.subr.mxu0 0.0
    %859 = vmatpush1.msra.mxu0 0.0
    %860 = vmatprep.subr.mxu0 0.0
    %861 = vmatpush1.msra.mxu0 0.0
    %862 = vmatprep.subr.mxu0 0.0
    %863 = vmatpush1.msra.mxu0 0.0
    %864 = vmatprep.subr.mxu0 0.0
    %865 = vmatpush1.msra.mxu0 0.0
    %866 = vmatprep.subr.mxu0 0.0
    %867 = vmatpush1.msra.mxu0 0.0
    %868 = vmatprep.subr.mxu0 0.0
    %869 = vmatpush1.msra.mxu0 0.0
    %870 = vmatprep.subr.mxu0 0.0
    %871 = vmatpush1.msra.mxu0 0.0
    %872 = vmatprep.subr.mxu0 0.0
    %873 = vmatpush1.msra.mxu0 0.0
    %874 = vmatprep.subr.mxu0 0.0
    %875 = vmatpush1.msra.mxu0 0.0
    %876 = vmatprep.subr.mxu0 0.0
    %877 = vmatpush1.msra.mxu0 0.0
    %878 = vmatprep.subr.mxu0 0.0
    %879 = vmatpush1.msra.mxu0 0.0
    %880 = vmatprep.subr.mxu0 0.0
    %881 = vmatpush1.msra.mxu0 0.0
    %882 = vmatprep.mubr.f32.mxu0 0.0
    %883 = vmatmul.mubr.f32.gmra.mrb[0].mxu0 %v816
    %v884 = vpop.f32.mrb[0].mxu0
    %v885 = vadd.f32 0.0, %v884
    %v886 = vpop.f32.mrb[0].mxu0
    %887 = vdwg.mxu0
    %v888 = vadd.f32 %v810, %v885
    %v889 = vxor.u32 %v888, 2147483648
    %v890 = vmul.f32 %v889, 1.442695
    %v891 = vpow.pop %v890
    %v892 = vadd.f32 %v891, 1.0
    %v893 = vrcp.pop %v892
    %v894 = vmul.f32 1.0, %v893
    %v895 = vadd.f32 %v885, %v603
    %897 = vrot.lane.b32.xlu0 %v895, 64
    %v898 = vpop.permute.xlu0 %897
    %v900 = vmul.f32 %v894, %v898
    %902 = vrot.lane.b32.xlu0 %v900, 64
    %v903 = vpop.permute.xlu0 %902
    %v905 = vadd.f32 %v810, %v903
    %v906 = vtanh.pop %v905
    %v907 = vsub.f32 %v629, %v906
    %909 = vrot.lane.b32.xlu0 %v907, 96
    %v910 = vpop.permute.xlu0 %909
    %v912 = vmul.f32 %v894, %v910
    %914 = vrot.lane.b32.xlu0 %v912, 32
    %v915 = vpop.permute.xlu0 %914
    %v917 = vadd.f32 %v906, %v915
    %v918 = vsub.f32 %v917, %v629
    %v919 = vmul.f32 %v431, %v918
    %v920 = vadd.f32 %v629, %v919
    %922 = vrot.lane.b32.xlu0 %v742, 64
    %v923 = vpop.permute.xlu0 %922
    %v924 = vsel %vm193, %v923, 0
    %926 = vmatprep.subr.mxu0 0.0
    %927 = vmatpush1.msra.mxu0 %v73
    %928 = vmatprep.subr.mxu0 0.0
    %929 = vmatpush1.msra.mxu0 %v74
    %930 = vmatprep.subr.mxu0 0.0
    %931 = vmatpush1.msra.mxu0 %v75
    %932 = vmatprep.subr.mxu0 0.0
    %933 = vmatpush1.msra.mxu0 %v76
    %934 = vmatprep.subr.mxu0 0.0
    %935 = vmatpush1.msra.mxu0 0.0
    %936 = vmatprep.subr.mxu0 0.0
    %937 = vmatpush1.msra.mxu0 0.0
    %938 = vmatprep.subr.mxu0 0.0
    %939 = vmatpush1.msra.mxu0 0.0
    %940 = vmatprep.subr.mxu0 0.0
    %941 = vmatpush1.msra.mxu0 0.0
    %942 = vmatprep.subr.mxu0 0.0
    %943 = vmatpush1.msra.mxu0 0.0
    %944 = vmatprep.subr.mxu0 0.0
    %945 = vmatpush1.msra.mxu0 0.0
    %946 = vmatprep.subr.mxu0 0.0
    %947 = vmatpush1.msra.mxu0 0.0
    %948 = vmatprep.subr.mxu0 0.0
    %949 = vmatpush1.msra.mxu0 0.0
    %950 = vmatprep.subr.mxu0 0.0
    %951 = vmatpush1.msra.mxu0 0.0
    %952 = vmatprep.subr.mxu0 0.0
    %953 = vmatpush1.msra.mxu0 0.0
    %954 = vmatprep.subr.mxu0 0.0
    %955 = vmatpush1.msra.mxu0 0.0
    %956 = vmatprep.subr.mxu0 0.0
    %957 = vmatpush1.msra.mxu0 0.0
    %958 = vmatprep.subr.mxu0 0.0
    %959 = vmatpush1.msra.mxu0 0.0
    %960 = vmatprep.subr.mxu0 0.0
    %961 = vmatpush1.msra.mxu0 0.0
    %962 = vmatprep.subr.mxu0 0.0
    %963 = vmatpush1.msra.mxu0 0.0
    %964 = vmatprep.subr.mxu0 0.0
    %965 = vmatpush1.msra.mxu0 0.0
    %966 = vmatprep.subr.mxu0 0.0
    %967 = vmatpush1.msra.mxu0 0.0
    %968 = vmatprep.subr.mxu0 0.0
    %969 = vmatpush1.msra.mxu0 0.0
    %970 = vmatprep.subr.mxu0 0.0
    %971 = vmatpush1.msra.mxu0 0.0
    %972 = vmatprep.subr.mxu0 0.0
    %973 = vmatpush1.msra.mxu0 0.0
    %974 = vmatprep.subr.mxu0 0.0
    %975 = vmatpush1.msra.mxu0 0.0
    %976 = vmatprep.subr.mxu0 0.0
    %977 = vmatpush1.msra.mxu0 0.0
    %978 = vmatprep.subr.mxu0 0.0
    %979 = vmatpush1.msra.mxu0 0.0
    %980 = vmatprep.subr.mxu0 0.0
    %981 = vmatpush1.msra.mxu0 0.0
    %982 = vmatprep.subr.mxu0 0.0
    %983 = vmatpush1.msra.mxu0 0.0
    %984 = vmatprep.subr.mxu0 0.0
    %985 = vmatpush1.msra.mxu0 0.0
    %986 = vmatprep.subr.mxu0 0.0
    %987 = vmatpush1.msra.mxu0 0.0
    %988 = vmatprep.subr.mxu0 0.0
    %989 = vmatpush1.msra.mxu0 0.0
    %990 = vmatprep.mubr.f32.mxu0 0.0
    %991 = vmatmul.mubr.f32.gmra.mrb[0].mxu0 %v924
    %v992 = vpop.f32.mrb[0].mxu0
    %v993 = vadd.f32 0.0, %v992
    %v994 = vpop.f32.mrb[0].mxu0
    %995 = vdwg.mxu0
    %v997 = vrot.slane %v993, 4
    %v999 = vadd.f32 %v180, %v997
    %v1000 = vxor.u32 %v999, 2147483648
    %v1001 = vmul.f32 %v1000, 1.442695
    %v1002 = vpow.pop %v1001
    %v1003 = vadd.f32 %v1002, 1.0
    %v1004 = vrcp.pop %v1003
    %v1005 = vmul.f32 1.0, %v1004
    %v1006 = vadd.f32 %v993, %v280
    %v1008 = vrot.slane %v1006, 4
    %1009 = vrot.lane.b32.xlu0 %v1008, 64
    %v1010 = vpop.permute.xlu0 %1009
    %v1012 = vmul.f32 %v1005, %v1010
    %1014 = vrot.lane.b32.xlu0 %v1012, 64
    %v1015 = vpop.permute.xlu0 %1014
    %v1017 = vadd.f32 %v180, %v1015
    %v1018 = vtanh.pop %v1017
    %v1020 = vrot.slane %v1018, 4
    %v1022 = vsub.f32 %v742, %v1020
    %v1024 = vrot.slane %v1022, 4
    %1025 = vrot.lane.b32.xlu0 %v1024, 96
    %v1026 = vpop.permute.xlu0 %1025
    %v1028 = vmul.f32 %v1005, %v1026
    %1030 = vrot.lane.b32.xlu0 %v1028, 32
    %v1031 = vpop.permute.xlu0 %1030
    %v1033 = vadd.f32 %v1018, %v1031
    %v1034 = vrot.slane %v742, 4
    %v1036 = vsub.f32 %v1033, %v1034
    %1038 = vset.pattern.permute.xlu0 0
    %1039 = vperm.xlu0 %1038, %v54
    %v1040 = vpop.permute.xlu0 %1039
    %v1043 = vrot.slane %v1036, 4
    %1044 = vrot.lane.b32.xlu0 %v1043, 64
    %v1045 = vpop.permute.xlu0 %1044
    %v1047 = vmul.f32 %v1040, %v1045
    %1049 = vrot.lane.b32.xlu0 %v1047, 64
    %v1050 = vpop.permute.xlu0 %1049
    %v1052 = vadd.f32 %v742, %v1050
    %1053 = vmatprep.subr.mxu0 0.0
    %1054 = vmatpush1.msra.mxu0 %v69
    %1055 = vmatprep.subr.mxu0 0.0
    %1056 = vmatpush1.msra.mxu0 %v70
    %1057 = vmatprep.subr.mxu0 0.0
    %1058 = vmatpush1.msra.mxu0 %v71
    %1059 = vmatprep.subr.mxu0 0.0
    %1060 = vmatpush1.msra.mxu0 %v72
    %1061 = vmatprep.subr.mxu0 0.0
    %1062 = vmatpush1.msra.mxu0 0.0
    %1063 = vmatprep.subr.mxu0 0.0
    %1064 = vmatpush1.msra.mxu0 0.0
    %1065 = vmatprep.subr.mxu0 0.0
    %1066 = vmatpush1.msra.mxu0 0.0
    %1067 = vmatprep.subr.mxu0 0.0
    %1068 = vmatpush1.msra.mxu0 0.0
    %1069 = vmatprep.subr.mxu0 0.0
    %1070 = vmatpush1.msra.mxu0 0.0
    %1071 = vmatprep.subr.mxu0 0.0
    %1072 = vmatpush1.msra.mxu0 0.0
    %1073 = vmatprep.subr.mxu0 0.0
    %1074 = vmatpush1.msra.mxu0 0.0
    %1075 = vmatprep.subr.mxu0 0.0
    %1076 = vmatpush1.msra.mxu0 0.0
    %1077 = vmatprep.subr.mxu0 0.0
    %1078 = vmatpush1.msra.mxu0 0.0
    %1079 = vmatprep.subr.mxu0 0.0
    %1080 = vmatpush1.msra.mxu0 0.0
    %1081 = vmatprep.subr.mxu0 0.0
    %1082 = vmatpush1.msra.mxu0 0.0
    %1083 = vmatprep.subr.mxu0 0.0
    %1084 = vmatpush1.msra.mxu0 0.0
    %1085 = vmatprep.subr.mxu0 0.0
    %1086 = vmatpush1.msra.mxu0 0.0
    %1087 = vmatprep.subr.mxu0 0.0
    %1088 = vmatpush1.msra.mxu0 0.0
    %1089 = vmatprep.subr.mxu0 0.0
    %1090 = vmatpush1.msra.mxu0 0.0
    %1091 = vmatprep.subr.mxu0 0.0
    %1092 = vmatpush1.msra.mxu0 0.0
    %1093 = vmatprep.subr.mxu0 0.0
    %1094 = vmatpush1.msra.mxu0 0.0
    %1095 = vmatprep.subr.mxu0 0.0
    %1096 = vmatpush1.msra.mxu0 0.0
    %1097 = vmatprep.subr.mxu0 0.0
    %1098 = vmatpush1.msra.mxu0 0.0
    %1099 = vmatprep.subr.mxu0 0.0
    %1100 = vmatpush1.msra.mxu0 0.0
    %1101 = vmatprep.subr.mxu0 0.0
    %1102 = vmatpush1.msra.mxu0 0.0
    %1103 = vmatprep.subr.mxu0 0.0
    %1104 = vmatpush1.msra.mxu0 0.0
    %1105 = vmatprep.subr.mxu0 0.0
    %1106 = vmatpush1.msra.mxu0 0.0
    %1107 = vmatprep.subr.mxu0 0.0
    %1108 = vmatpush1.msra.mxu0 0.0
    %1109 = vmatprep.subr.mxu0 0.0
    %1110 = vmatpush1.msra.mxu0 0.0
    %1111 = vmatprep.subr.mxu0 0.0
    %1112 = vmatpush1.msra.mxu0 0.0
    %1113 = vmatprep.subr.mxu0 0.0
    %1114 = vmatpush1.msra.mxu0 0.0
    %1115 = vmatprep.subr.mxu0 0.0
    %1116 = vmatpush1.msra.mxu0 0.0
    %1117 = vmatprep.mubr.f32.mxu0 0.0
    %1118 = vmatmul.mubr.f32.gmra.mrb[0].mxu0 %v924
    %v1119 = vpop.f32.mrb[0].mxu0
    %v1120 = vadd.f32 %v448, %v1119
    %v1121 = vpop.f32.mrb[0].mxu0
    %1122 = vdwg.mxu0
    %1124 = vrot.lane.b32.xlu0 %v920, 64
    %v1125 = vpop.permute.xlu0 %1124
    %v1126 = vsel %vm193, %v1125, 0
    %1128 = vmatprep.subr.mxu0 0.0
    %1129 = vmatpush1.msra.mxu0 %v77
    %1130 = vmatprep.subr.mxu0 0.0
    %1131 = vmatpush1.msra.mxu0 %v78
    %1132 = vmatprep.subr.mxu0 0.0
    %1133 = vmatpush1.msra.mxu0 %v79
    %1134 = vmatprep.subr.mxu0 0.0
    %1135 = vmatpush1.msra.mxu0 %v80
    %1136 = vmatprep.subr.mxu0 0.0
    %1137 = vmatpush1.msra.mxu0 0.0
    %1138 = vmatprep.subr.mxu0 0.0
    %1139 = vmatpush1.msra.mxu0 0.0
    %1140 = vmatprep.subr.mxu0 0.0
    %1141 = vmatpush1.msra.mxu0 0.0
    %1142 = vmatprep.subr.mxu0 0.0
    %1143 = vmatpush1.msra.mxu0 0.0
    %1144 = vmatprep.subr.mxu0 0.0
    %1145 = vmatpush1.msra.mxu0 0.0
    %1146 = vmatprep.subr.mxu0 0.0
    %1147 = vmatpush1.msra.mxu0 0.0
    %1148 = vmatprep.subr.mxu0 0.0
    %1149 = vmatpush1.msra.mxu0 0.0
    %1150 = vmatprep.subr.mxu0 0.0
    %1151 = vmatpush1.msra.mxu0 0.0
    %1152 = vmatprep.subr.mxu0 0.0
    %1153 = vmatpush1.msra.mxu0 0.0
    %1154 = vmatprep.subr.mxu0 0.0
    %1155 = vmatpush1.msra.mxu0 0.0
    %1156 = vmatprep.subr.mxu0 0.0
    %1157 = vmatpush1.msra.mxu0 0.0
    %1158 = vmatprep.subr.mxu0 0.0
    %1159 = vmatpush1.msra.mxu0 0.0
    %1160 = vmatprep.subr.mxu0 0.0
    %1161 = vmatpush1.msra.mxu0 0.0
    %1162 = vmatprep.subr.mxu0 0.0
    %1163 = vmatpush1.msra.mxu0 0.0
    %1164 = vmatprep.subr.mxu0 0.0
    %1165 = vmatpush1.msra.mxu0 0.0
    %1166 = vmatprep.subr.mxu0 0.0
    %1167 = vmatpush1.msra.mxu0 0.0
    %1168 = vmatprep.subr.mxu0 0.0
    %1169 = vmatpush1.msra.mxu0 0.0
    %1170 = vmatprep.subr.mxu0 0.0
    %1171 = vmatpush1.msra.mxu0 0.0
    %1172 = vmatprep.subr.mxu0 0.0
    %1173 = vmatpush1.msra.mxu0 0.0
    %1174 = vmatprep.subr.mxu0 0.0
    %1175 = vmatpush1.msra.mxu0 0.0
    %1176 = vmatprep.subr.mxu0 0.0
    %1177 = vmatpush1.msra.mxu0 0.0
    %1178 = vmatprep.subr.mxu0 0.0
    %1179 = vmatpush1.msra.mxu0 0.0
    %1180 = vmatprep.subr.mxu0 0.0
    %1181 = vmatpush1.msra.mxu0 0.0
    %1182 = vmatprep.subr.mxu0 0.0
    %1183 = vmatpush1.msra.mxu0 0.0
    %1184 = vmatprep.subr.mxu0 0.0
    %1185 = vmatpush1.msra.mxu0 0.0
    %1186 = vmatprep.subr.mxu0 0.0
    %1187 = vmatpush1.msra.mxu0 0.0
    %1188 = vmatprep.subr.mxu0 0.0
    %1189 = vmatpush1.msra.mxu0 0.0
    %1190 = vmatprep.subr.mxu0 0.0
    %1191 = vmatpush1.msra.mxu0 0.0
    %1192 = vmatprep.mubr.f32.mxu0 0.0
    %1193 = vmatmul.mubr.f32.gmra.mrb[0].mxu0 %v1126
    %v1194 = vpop.f32.mrb[0].mxu0
    %v1195 = vadd.f32 0.0, %v1194
    %v1196 = vpop.f32.mrb[0].mxu0
    %1197 = vdwg.mxu0
    %v1198 = vadd.f32 %v1120, %v1195
    %v1199 = vxor.u32 %v1198, 2147483648
    %v1200 = vmul.f32 %v1199, 1.442695
    %v1201 = vpow.pop %v1200
    %v1202 = vadd.f32 %v1201, 1.0
    %v1203 = vrcp.pop %v1202
    %v1204 = vmul.f32 1.0, %v1203
    %v1205 = vadd.f32 %v1195, %v603
    %1207 = vrot.lane.b32.xlu0 %v1205, 64
    %v1208 = vpop.permute.xlu0 %1207
    %v1210 = vmul.f32 %v1204, %v1208
    %1212 = vrot.lane.b32.xlu0 %v1210, 64
    %v1213 = vpop.permute.xlu0 %1212
    %v1215 = vadd.f32 %v1120, %v1213
    %v1216 = vtanh.pop %v1215
    %v1217 = vsub.f32 %v920, %v1216
    %1219 = vrot.lane.b32.xlu0 %v1217, 96
    %v1220 = vpop.permute.xlu0 %1219
    %v1222 = vmul.f32 %v1204, %v1220
    %1224 = vrot.lane.b32.xlu0 %v1222, 32
    %v1225 = vpop.permute.xlu0 %1224
    %v1227 = vadd.f32 %v1216, %v1225
    %v1228 = vsub.f32 %v1227, %v920
    %v1229 = vmul.f32 %v739, %v1228
    %v1230 = vadd.f32 %v920, %v1229
    %1232 = vrot.lane.b32.xlu0 %v1052, 64
    %v1233 = vpop.permute.xlu0 %1232
    %v1234 = vsel %vm193, %v1233, 0
    %1236 = vmatprep.subr.mxu0 0.0
    %1237 = vmatpush1.msra.mxu0 %v73
    %1238 = vmatprep.subr.mxu0 0.0
    %1239 = vmatpush1.msra.mxu0 %v74
    %1240 = vmatprep.subr.mxu0 0.0
    %1241 = vmatpush1.msra.mxu0 %v75
    %1242 = vmatprep.subr.mxu0 0.0
    %1243 = vmatpush1.msra.mxu0 %v76
    %1244 = vmatprep.subr.mxu0 0.0
    %1245 = vmatpush1.msra.mxu0 0.0
    %1246 = vmatprep.subr.mxu0 0.0
    %1247 = vmatpush1.msra.mxu0 0.0
    %1248 = vmatprep.subr.mxu0 0.0
    %1249 = vmatpush1.msra.mxu0 0.0
    %1250 = vmatprep.subr.mxu0 0.0
    %1251 = vmatpush1.msra.mxu0 0.0
    %1252 = vmatprep.subr.mxu0 0.0
    %1253 = vmatpush1.msra.mxu0 0.0
    %1254 = vmatprep.subr.mxu0 0.0
    %1255 = vmatpush1.msra.mxu0 0.0
    %1256 = vmatprep.subr.mxu0 0.0
    %1257 = vmatpush1.msra.mxu0 0.0
    %1258 = vmatprep.subr.mxu0 0.0
    %1259 = vmatpush1.msra.mxu0 0.0
    %1260 = vmatprep.subr.mxu0 0.0
    %1261 = vmatpush1.msra.mxu0 0.0
    %1262 = vmatprep.subr.mxu0 0.0
    %1263 = vmatpush1.msra.mxu0 0.0
    %1264 = vmatprep.subr.mxu0 0.0
    %1265 = vmatpush1.msra.mxu0 0.0
    %1266 = vmatprep.subr.mxu0 0.0
    %1267 = vmatpush1.msra.mxu0 0.0
    %1268 = vmatprep.subr.mxu0 0.0
    %1269 = vmatpush1.msra.mxu0 0.0
    %1270 = vmatprep.subr.mxu0 0.0
    %1271 = vmatpush1.msra.mxu0 0.0
    %1272 = vmatprep.subr.mxu0 0.0
    %1273 = vmatpush1.msra.mxu0 0.0
    %1274 = vmatprep.subr.mxu0 0.0
    %1275 = vmatpush1.msra.mxu0 0.0
    %1276 = vmatprep.subr.mxu0 0.0
    %1277 = vmatpush1.msra.mxu0 0.0
    %1278 = vmatprep.subr.mxu0 0.0
    %1279 = vmatpush1.msra.mxu0 0.0
    %1280 = vmatprep.subr.mxu0 0.0
    %1281 = vmatpush1.msra.mxu0 0.0
    %1282 = vmatprep.subr.mxu0 0.0
    %1283 = vmatpush1.msra.mxu0 0.0
    %1284 = vmatprep.subr.mxu0 0.0
    %1285 = vmatpush1.msra.mxu0 0.0
    %1286 = vmatprep.subr.mxu0 0.0
    %1287 = vmatpush1.msra.mxu0 0.0
    %1288 = vmatprep.subr.mxu0 0.0
    %1289 = vmatpush1.msra.mxu0 0.0
    %1290 = vmatprep.subr.mxu0 0.0
    %1291 = vmatpush1.msra.mxu0 0.0
    %1292 = vmatprep.subr.mxu0 0.0
    %1293 = vmatpush1.msra.mxu0 0.0
    %1294 = vmatprep.subr.mxu0 0.0
    %1295 = vmatpush1.msra.mxu0 0.0
    %1296 = vmatprep.subr.mxu0 0.0
    %1297 = vmatpush1.msra.mxu0 0.0
    %1298 = vmatprep.subr.mxu0 0.0
    %1299 = vmatpush1.msra.mxu0 0.0
    %1300 = vmatprep.mubr.f32.mxu0 0.0
    %1301 = vmatmul.mubr.f32.gmra.mrb[0].mxu0 %v1234
    %v1302 = vpop.f32.mrb[0].mxu0
    %v1303 = vadd.f32 0.0, %v1302
    %v1304 = vpop.f32.mrb[0].mxu0
    %1305 = vdwg.mxu0
    %v1306 = vadd.f32 %v185, %v1303
    %v1307 = vxor.u32 %v1306, 2147483648
    %v1308 = vmul.f32 %v1307, 1.442695
    %v1309 = vpow.pop %v1308
    %v1310 = vadd.f32 %v1309, 1.0
    %v1311 = vrcp.pop %v1310
    %v1312 = vmul.f32 1.0, %v1311
    %v1313 = vadd.f32 %v1303, %v280
    %1315 = vrot.lane.b32.xlu0 %v1313, 64
    %v1316 = vpop.permute.xlu0 %1315
    %v1318 = vmul.f32 %v1312, %v1316
    %1320 = vrot.lane.b32.xlu0 %v1318, 64
    %v1321 = vpop.permute.xlu0 %1320
    %v1323 = vadd.f32 %v185, %v1321
    %v1324 = vtanh.pop %v1323
    %v1325 = vsub.f32 %v1052, %v1324
    %1327 = vrot.lane.b32.xlu0 %v1325, 96
    %v1328 = vpop.permute.xlu0 %1327
    %v1330 = vmul.f32 %v1312, %v1328
    %1332 = vrot.lane.b32.xlu0 %v1330, 32
    %v1333 = vpop.permute.xlu0 %1332
    %v1335 = vadd.f32 %v1324, %v1333
    %v1336 = vsub.f32 %v1335, %v1052
    %1338 = vset.pattern.permute.xlu0 0
    %1339 = vperm.xlu0 %1338, %v57
    %v1340 = vpop.permute.xlu0 %1339
    %v1342 = vmul.f32 %v1340, %v1336
    %v1343 = vadd.f32 %v1052, %v1342
    %1344 = vmatprep.subr.mxu0 0.0
    %1345 = vmatpush1.msra.mxu0 %v69
    %1346 = vmatprep.subr.mxu0 0.0
    %1347 = vmatpush1.msra.mxu0 %v70
    %1348 = vmatprep.subr.mxu0 0.0
    %1349 = vmatpush1.msra.mxu0 %v71
    %1350 = vmatprep.subr.mxu0 0.0
    %1351 = vmatpush1.msra.mxu0 %v72
    %1352 = vmatprep.subr.mxu0 0.0
    %1353 = vmatpush1.msra.mxu0 0.0
    %1354 = vmatprep.subr.mxu0 0.0
    %1355 = vmatpush1.msra.mxu0 0.0
    %1356 = vmatprep.subr.mxu0 0.0
    %1357 = vmatpush1.msra.mxu0 0.0
    %1358 = vmatprep.subr.mxu0 0.0
    %1359 = vmatpush1.msra.mxu0 0.0
    %1360 = vmatprep.subr.mxu0 0.0
    %1361 = vmatpush1.msra.mxu0 0.0
    %1362 = vmatprep.subr.mxu0 0.0
    %1363 = vmatpush1.msra.mxu0 0.0
    %1364 = vmatprep.subr.mxu0 0.0
    %1365 = vmatpush1.msra.mxu0 0.0
    %1366 = vmatprep.subr.mxu0 0.0
    %1367 = vmatpush1.msra.mxu0 0.0
    %1368 = vmatprep.subr.mxu0 0.0
    %1369 = vmatpush1.msra.mxu0 0.0
    %1370 = vmatprep.subr.mxu0 0.0
    %1371 = vmatpush1.msra.mxu0 0.0
    %1372 = vmatprep.subr.mxu0 0.0
    %1373 = vmatpush1.msra.mxu0 0.0
    %1374 = vmatprep.subr.mxu0 0.0
    %1375 = vmatpush1.msra.mxu0 0.0
    %1376 = vmatprep.subr.mxu0 0.0
    %1377 = vmatpush1.msra.mxu0 0.0
    %1378 = vmatprep.subr.mxu0 0.0
    %1379 = vmatpush1.msra.mxu0 0.0
    %1380 = vmatprep.subr.mxu0 0.0
    %1381 = vmatpush1.msra.mxu0 0.0
    %1382 = vmatprep.subr.mxu0 0.0
    %1383 = vmatpush1.msra.mxu0 0.0
    %1384 = vmatprep.subr.mxu0 0.0
    %1385 = vmatpush1.msra.mxu0 0.0
    %1386 = vmatprep.subr.mxu0 0.0
    %1387 = vmatpush1.msra.mxu0 0.0
    %1388 = vmatprep.subr.mxu0 0.0
    %1389 = vmatpush1.msra.mxu0 0.0
    %1390 = vmatprep.subr.mxu0 0.0
    %1391 = vmatpush1.msra.mxu0 0.0
    %1392 = vmatprep.subr.mxu0 0.0
    %1393 = vmatpush1.msra.mxu0 0.0
    %1394 = vmatprep.subr.mxu0 0.0
    %1395 = vmatpush1.msra.mxu0 0.0
    %1396 = vmatprep.subr.mxu0 0.0
    %1397 = vmatpush1.msra.mxu0 0.0
    %1398 = vmatprep.subr.mxu0 0.0
    %1399 = vmatpush1.msra.mxu0 0.0
    %1400 = vmatprep.subr.mxu0 0.0
    %1401 = vmatpush1.msra.mxu0 0.0
    %1402 = vmatprep.subr.mxu0 0.0
    %1403 = vmatpush1.msra.mxu0 0.0
    %1404 = vmatprep.subr.mxu0 0.0
    %1405 = vmatpush1.msra.mxu0 0.0
    %1406 = vmatprep.subr.mxu0 0.0
    %1407 = vmatpush1.msra.mxu0 0.0
    %1408 = vmatprep.mubr.f32.mxu0 0.0
    %1409 = vmatmul.mubr.f32.gmra.mrb[0].mxu0 %v1234
    %v1410 = vpop.f32.mrb[0].mxu0
    %v1411 = vadd.f32 %v448, %v1410
    %v1412 = vpop.f32.mrb[0].mxu0
    %1413 = vdwg.mxu0
    %1415 = vrot.lane.b32.xlu0 %v1230, 64
    %v1416 = vpop.permute.xlu0 %1415
    %v1417 = vsel %vm193, %v1416, 0
    %1419 = vmatprep.subr.mxu0 0.0
    %1420 = vmatpush1.msra.mxu0 %v77
    %1421 = vmatprep.subr.mxu0 0.0
    %1422 = vmatpush1.msra.mxu0 %v78
    %1423 = vmatprep.subr.mxu0 0.0
    %1424 = vmatpush1.msra.mxu0 %v79
    %1425 = vmatprep.subr.mxu0 0.0
    %1426 = vmatpush1.msra.mxu0 %v80
    %1427 = vmatprep.subr.mxu0 0.0
    %1428 = vmatpush1.msra.mxu0 0.0
    %1429 = vmatprep.subr.mxu0 0.0
    %1430 = vmatpush1.msra.mxu0 0.0
    %1431 = vmatprep.subr.mxu0 0.0
    %1432 = vmatpush1.msra.mxu0 0.0
    %1433 = vmatprep.subr.mxu0 0.0
    %1434 = vmatpush1.msra.mxu0 0.0
    %1435 = vmatprep.subr.mxu0 0.0
    %1436 = vmatpush1.msra.mxu0 0.0
    %1437 = vmatprep.subr.mxu0 0.0
    %1438 = vmatpush1.msra.mxu0 0.0
    %1439 = vmatprep.subr.mxu0 0.0
    %1440 = vmatpush1.msra.mxu0 0.0
    %1441 = vmatprep.subr.mxu0 0.0
    %1442 = vmatpush1.msra.mxu0 0.0
    %1443 = vmatprep.subr.mxu0 0.0
    %1444 = vmatpush1.msra.mxu0 0.0
    %1445 = vmatprep.subr.mxu0 0.0
    %1446 = vmatpush1.msra.mxu0 0.0
    %1447 = vmatprep.subr.mxu0 0.0
    %1448 = vmatpush1.msra.mxu0 0.0
    %1449 = vmatprep.subr.mxu0 0.0
    %1450 = vmatpush1.msra.mxu0 0.0
    %1451 = vmatprep.subr.mxu0 0.0
    %1452 = vmatpush1.msra.mxu0 0.0
    %1453 = vmatprep.subr.mxu0 0.0
    %1454 = vmatpush1.msra.mxu0 0.0
    %1455 = vmatprep.subr.mxu0 0.0
    %1456 = vmatpush1.msra.mxu0 0.0
    %1457 = vmatprep.subr.mxu0 0.0
    %1458 = vmatpush1.msra.mxu0 0.0
    %1459 = vmatprep.subr.mxu0 0.0
    %1460 = vmatpush1.msra.mxu0 0.0
    %1461 = vmatprep.subr.mxu0 0.0
    %1462 = vmatpush1.msra.mxu0 0.0
    %1463 = vmatprep.subr.mxu0 0.0
    %1464 = vmatpush1.msra.mxu0 0.0
    %1465 = vmatprep.subr.mxu0 0.0
    %1466 = vmatpush1.msra.mxu0 0.0
    %1467 = vmatprep.subr.mxu0 0.0
    %1468 = vmatpush1.msra.mxu0 0.0
    %1469 = vmatprep.subr.mxu0 0.0
    %1470 = vmatpush1.msra.mxu0 0.0
    %1471 = vmatprep.subr.mxu0 0.0
    %1472 = vmatpush1.msra.mxu0 0.0
    %1473 = vmatprep.subr.mxu0 0.0
    %1474 = vmatpush1.msra.mxu0 0.0
    %1475 = vmatprep.subr.mxu0 0.0
    %1476 = vmatpush1.msra.mxu0 0.0
    %1477 = vmatprep.subr.mxu0 0.0
    %1478 = vmatpush1.msra.mxu0 0.0
    %1479 = vmatprep.subr.mxu0 0.0
    %1480 = vmatpush1.msra.mxu0 0.0
    %1481 = vmatprep.subr.mxu0 0.0
    %1482 = vmatpush1.msra.mxu0 0.0
    %1483 = vmatprep.mubr.f32.mxu0 0.0
    %1484 = vmatmul.mubr.f32.gmra.mrb[0].mxu0 %v1417
    %v1485 = vpop.f32.mrb[0].mxu0
    %v1486 = vadd.f32 0.0, %v1485
    %v1487 = vpop.f32.mrb[0].mxu0
    %1488 = vdwg.mxu0
    %v1489 = vadd.f32 %v1411, %v1486
    %v1490 = vxor.u32 %v1489, 2147483648
    %v1491 = vmul.f32 %v1490, 1.442695
    %v1492 = vpow.pop %v1491
    %v1493 = vadd.f32 %v1492, 1.0
    %v1494 = vrcp.pop %v1493
    %v1495 = vmul.f32 1.0, %v1494
    %v1496 = vadd.f32 %v1486, %v603
    %1498 = vrot.lane.b32.xlu0 %v1496, 64
    %v1499 = vpop.permute.xlu0 %1498
    %v1501 = vmul.f32 %v1495, %v1499
    %1503 = vrot.lane.b32.xlu0 %v1501, 64
    %v1504 = vpop.permute.xlu0 %1503
    %v1506 = vadd.f32 %v1411, %v1504
    %v1507 = vtanh.pop %v1506
    %v1508 = vsub.f32 %v1230, %v1507
    %1510 = vrot.lane.b32.xlu0 %v1508, 96
    %v1511 = vpop.permute.xlu0 %1510
    %v1513 = vmul.f32 %v1495, %v1511
    %1515 = vrot.lane.b32.xlu0 %v1513, 32
    %v1516 = vpop.permute.xlu0 %1515
    %v1518 = vadd.f32 %v1507, %v1516
    %v1519 = vsub.f32 %v1518, %v1230
    %v1520 = vmul.f32 %v1040, %v1519
    %v1521 = vadd.f32 %v1230, %v1520
    %1523 = vrot.lane.b32.xlu0 %v1343, 64
    %v1524 = vpop.permute.xlu0 %1523
    %v1525 = vsel %vm193, %v1524, 0
    %1527 = vmatprep.subr.mxu0 0.0
    %1528 = vmatpush1.msra.mxu0 %v73
    %1529 = vmatprep.subr.mxu0 0.0
    %1530 = vmatpush1.msra.mxu0 %v74
    %1531 = vmatprep.subr.mxu0 0.0
    %1532 = vmatpush1.msra.mxu0 %v75
    %1533 = vmatprep.subr.mxu0 0.0
    %1534 = vmatpush1.msra.mxu0 %v76
    %1535 = vmatprep.subr.mxu0 0.0
    %1536 = vmatpush1.msra.mxu0 0.0
    %1537 = vmatprep.subr.mxu0 0.0
    %1538 = vmatpush1.msra.mxu0 0.0
    %1539 = vmatprep.subr.mxu0 0.0
    %1540 = vmatpush1.msra.mxu0 0.0
    %1541 = vmatprep.subr.mxu0 0.0
    %1542 = vmatpush1.msra.mxu0 0.0
    %1543 = vmatprep.subr.mxu0 0.0
    %1544 = vmatpush1.msra.mxu0 0.0
    %1545 = vmatprep.subr.mxu0 0.0
    %1546 = vmatpush1.msra.mxu0 0.0
    %1547 = vmatprep.subr.mxu0 0.0
    %1548 = vmatpush1.msra.mxu0 0.0
    %1549 = vmatprep.subr.mxu0 0.0
    %1550 = vmatpush1.msra.mxu0 0.0
    %1551 = vmatprep.subr.mxu0 0.0
    %1552 = vmatpush1.msra.mxu0 0.0
    %1553 = vmatprep.subr.mxu0 0.0
    %1554 = vmatpush1.msra.mxu0 0.0
    %1555 = vmatprep.subr.mxu0 0.0
    %1556 = vmatpush1.msra.mxu0 0.0
    %1557 = vmatprep.subr.mxu0 0.0
    %1558 = vmatpush1.msra.mxu0 0.0
    %1559 = vmatprep.subr.mxu0 0.0
    %1560 = vmatpush1.msra.mxu0 0.0
    %1561 = vmatprep.subr.mxu0 0.0
    %1562 = vmatpush1.msra.mxu0 0.0
    %1563 = vmatprep.subr.mxu0 0.0
    %1564 = vmatpush1.msra.mxu0 0.0
    %1565 = vmatprep.subr.mxu0 0.0
    %1566 = vmatpush1.msra.mxu0 0.0
    %1567 = vmatprep.subr.mxu0 0.0
    %1568 = vmatpush1.msra.mxu0 0.0
    %1569 = vmatprep.subr.mxu0 0.0
    %1570 = vmatpush1.msra.mxu0 0.0
    %1571 = vmatprep.subr.mxu0 0.0
    %1572 = vmatpush1.msra.mxu0 0.0
    %1573 = vmatprep.subr.mxu0 0.0
    %1574 = vmatpush1.msra.mxu0 0.0
    %1575 = vmatprep.subr.mxu0 0.0
    %1576 = vmatpush1.msra.mxu0 0.0
    %1577 = vmatprep.subr.mxu0 0.0
    %1578 = vmatpush1.msra.mxu0 0.0
    %1579 = vmatprep.subr.mxu0 0.0
    %1580 = vmatpush1.msra.mxu0 0.0
    %1581 = vmatprep.subr.mxu0 0.0
    %1582 = vmatpush1.msra.mxu0 0.0
    %1583 = vmatprep.subr.mxu0 0.0
    %1584 = vmatpush1.msra.mxu0 0.0
    %1585 = vmatprep.subr.mxu0 0.0
    %1586 = vmatpush1.msra.mxu0 0.0
    %1587 = vmatprep.subr.mxu0 0.0
    %1588 = vmatpush1.msra.mxu0 0.0
    %1589 = vmatprep.subr.mxu0 0.0
    %1590 = vmatpush1.msra.mxu0 0.0
    %1591 = vmatprep.mubr.f32.mxu0 0.0
    %1592 = vmatmul.mubr.f32.gmra.mrb[0].mxu0 %v1525
    %v1593 = vpop.f32.mrb[0].mxu0
    %v1594 = vadd.f32 0.0, %v1593
    %v1595 = vpop.f32.mrb[0].mxu0
    %1596 = vdwg.mxu0
    %v1598 = vrot.slane %v1594, 4
    %v1600 = vadd.f32 %v185, %v1598
    %v1601 = vxor.u32 %v1600, 2147483648
    %v1602 = vmul.f32 %v1601, 1.442695
    %v1603 = vpow.pop %v1602
    %v1604 = vadd.f32 %v1603, 1.0
    %v1605 = vrcp.pop %v1604
    %v1606 = vmul.f32 1.0, %v1605
    %v1607 = vadd.f32 %v1594, %v280
    %v1609 = vrot.slane %v1607, 4
    %1610 = vrot.lane.b32.xlu0 %v1609, 64
    %v1611 = vpop.permute.xlu0 %1610
    %v1613 = vmul.f32 %v1606, %v1611
    %1615 = vrot.lane.b32.xlu0 %v1613, 64
    %v1616 = vpop.permute.xlu0 %1615
    %v1618 = vadd.f32 %v185, %v1616
    %v1619 = vtanh.pop %v1618
    %v1621 = vrot.slane %v1619, 4
    %v1623 = vsub.f32 %v1343, %v1621
    %v1625 = vrot.slane %v1623, 4
    %1626 = vrot.lane.b32.xlu0 %v1625, 96
    %v1627 = vpop.permute.xlu0 %1626
    %v1629 = vmul.f32 %v1606, %v1627
    %1631 = vrot.lane.b32.xlu0 %v1629, 32
    %v1632 = vpop.permute.xlu0 %1631
    %v1634 = vadd.f32 %v1619, %v1632
    %v1635 = vrot.slane %v1343, 4
    %v1637 = vsub.f32 %v1634, %v1635
    %1639 = vset.pattern.permute.xlu0 0
    %1640 = vperm.xlu0 %1639, %v60
    %v1641 = vpop.permute.xlu0 %1640
    %v1644 = vrot.slane %v1637, 4
    %1645 = vrot.lane.b32.xlu0 %v1644, 64
    %v1646 = vpop.permute.xlu0 %1645
    %v1648 = vmul.f32 %v1641, %v1646
    %1650 = vrot.lane.b32.xlu0 %v1648, 64
    %v1651 = vpop.permute.xlu0 %1650
    %v1653 = vadd.f32 %v1343, %v1651
    %1654 = vmatprep.subr.mxu0 0.0
    %1655 = vmatpush1.msra.mxu0 %v69
    %1656 = vmatprep.subr.mxu0 0.0
    %1657 = vmatpush1.msra.mxu0 %v70
    %1658 = vmatprep.subr.mxu0 0.0
    %1659 = vmatpush1.msra.mxu0 %v71
    %1660 = vmatprep.subr.mxu0 0.0
    %1661 = vmatpush1.msra.mxu0 %v72
    %1662 = vmatprep.subr.mxu0 0.0
    %1663 = vmatpush1.msra.mxu0 0.0
    %1664 = vmatprep.subr.mxu0 0.0
    %1665 = vmatpush1.msra.mxu0 0.0
    %1666 = vmatprep.subr.mxu0 0.0
    %1667 = vmatpush1.msra.mxu0 0.0
    %1668 = vmatprep.subr.mxu0 0.0
    %1669 = vmatpush1.msra.mxu0 0.0
    %1670 = vmatprep.subr.mxu0 0.0
    %1671 = vmatpush1.msra.mxu0 0.0
    %1672 = vmatprep.subr.mxu0 0.0
    %1673 = vmatpush1.msra.mxu0 0.0
    %1674 = vmatprep.subr.mxu0 0.0
    %1675 = vmatpush1.msra.mxu0 0.0
    %1676 = vmatprep.subr.mxu0 0.0
    %1677 = vmatpush1.msra.mxu0 0.0
    %1678 = vmatprep.subr.mxu0 0.0
    %1679 = vmatpush1.msra.mxu0 0.0
    %1680 = vmatprep.subr.mxu0 0.0
    %1681 = vmatpush1.msra.mxu0 0.0
    %1682 = vmatprep.subr.mxu0 0.0
    %1683 = vmatpush1.msra.mxu0 0.0
    %1684 = vmatprep.subr.mxu0 0.0
    %1685 = vmatpush1.msra.mxu0 0.0
    %1686 = vmatprep.subr.mxu0 0.0
    %1687 = vmatpush1.msra.mxu0 0.0
    %1688 = vmatprep.subr.mxu0 0.0
    %1689 = vmatpush1.msra.mxu0 0.0
    %1690 = vmatprep.subr.mxu0 0.0
    %1691 = vmatpush1.msra.mxu0 0.0
    %1692 = vmatprep.subr.mxu0 0.0
    %1693 = vmatpush1.msra.mxu0 0.0
    %1694 = vmatprep.subr.mxu0 0.0
    %1695 = vmatpush1.msra.mxu0 0.0
    %1696 = vmatprep.subr.mxu0 0.0
    %1697 = vmatpush1.msra.mxu0 0.0
    %1698 = vmatprep.subr.mxu0 0.0
    %1699 = vmatpush1.msra.mxu0 0.0
    %1700 = vmatprep.subr.mxu0 0.0
    %1701 = vmatpush1.msra.mxu0 0.0
    %1702 = vmatprep.subr.mxu0 0.0
    %1703 = vmatpush1.msra.mxu0 0.0
    %1704 = vmatprep.subr.mxu0 0.0
    %1705 = vmatpush1.msra.mxu0 0.0
    %1706 = vmatprep.subr.mxu0 0.0
    %1707 = vmatpush1.msra.mxu0 0.0
    %1708 = vmatprep.subr.mxu0 0.0
    %1709 = vmatpush1.msra.mxu0 0.0
    %1710 = vmatprep.subr.mxu0 0.0
    %1711 = vmatpush1.msra.mxu0 0.0
    %1712 = vmatprep.subr.mxu0 0.0
    %1713 = vmatpush1.msra.mxu0 0.0
    %1714 = vmatprep.subr.mxu0 0.0
    %1715 = vmatpush1.msra.mxu0 0.0
    %1716 = vmatprep.subr.mxu0 0.0
    %1717 = vmatpush1.msra.mxu0 0.0
    %1718 = vmatprep.mubr.f32.mxu0 0.0
    %1719 = vmatmul.mubr.f32.gmra.mrb[0].mxu0 %v1525
    %v1720 = vpop.f32.mrb[0].mxu0
    %v1721 = vadd.f32 %v448, %v1720
    %v1722 = vpop.f32.mrb[0].mxu0
    %1723 = vdwg.mxu0
    %1725 = vrot.lane.b32.xlu0 %v1521, 64
    %v1726 = vpop.permute.xlu0 %1725
    %v1727 = vsel %vm193, %v1726, 0
    %1729 = vmatprep.subr.mxu0 0.0
    %1730 = vmatpush1.msra.mxu0 %v77
    %1731 = vmatprep.subr.mxu0 0.0
    %1732 = vmatpush1.msra.mxu0 %v78
    %1733 = vmatprep.subr.mxu0 0.0
    %1734 = vmatpush1.msra.mxu0 %v79
    %1735 = vmatprep.subr.mxu0 0.0
    %1736 = vmatpush1.msra.mxu0 %v80
    %1737 = vmatprep.subr.mxu0 0.0
    %1738 = vmatpush1.msra.mxu0 0.0
    %1739 = vmatprep.subr.mxu0 0.0
    %1740 = vmatpush1.msra.mxu0 0.0
    %1741 = vmatprep.subr.mxu0 0.0
    %1742 = vmatpush1.msra.mxu0 0.0
    %1743 = vmatprep.subr.mxu0 0.0
    %1744 = vmatpush1.msra.mxu0 0.0
    %1745 = vmatprep.subr.mxu0 0.0
    %1746 = vmatpush1.msra.mxu0 0.0
    %1747 = vmatprep.subr.mxu0 0.0
    %1748 = vmatpush1.msra.mxu0 0.0
    %1749 = vmatprep.subr.mxu0 0.0
    %1750 = vmatpush1.msra.mxu0 0.0
    %1751 = vmatprep.subr.mxu0 0.0
    %1752 = vmatpush1.msra.mxu0 0.0
    %1753 = vmatprep.subr.mxu0 0.0
    %1754 = vmatpush1.msra.mxu0 0.0
    %1755 = vmatprep.subr.mxu0 0.0
    %1756 = vmatpush1.msra.mxu0 0.0
    %1757 = vmatprep.subr.mxu0 0.0
    %1758 = vmatpush1.msra.mxu0 0.0
    %1759 = vmatprep.subr.mxu0 0.0
    %1760 = vmatpush1.msra.mxu0 0.0
    %1761 = vmatprep.subr.mxu0 0.0
    %1762 = vmatpush1.msra.mxu0 0.0
    %1763 = vmatprep.subr.mxu0 0.0
    %1764 = vmatpush1.msra.mxu0 0.0
    %1765 = vmatprep.subr.mxu0 0.0
    %1766 = vmatpush1.msra.mxu0 0.0
    %1767 = vmatprep.subr.mxu0 0.0
    %1768 = vmatpush1.msra.mxu0 0.0
    %1769 = vmatprep.subr.mxu0 0.0
    %1770 = vmatpush1.msra.mxu0 0.0
    %1771 = vmatprep.subr.mxu0 0.0
    %1772 = vmatpush1.msra.mxu0 0.0
    %1773 = vmatprep.subr.mxu0 0.0
    %1774 = vmatpush1.msra.mxu0 0.0
    %1775 = vmatprep.subr.mxu0 0.0
    %1776 = vmatpush1.msra.mxu0 0.0
    %1777 = vmatprep.subr.mxu0 0.0
    %1778 = vmatpush1.msra.mxu0 0.0
    %1779 = vmatprep.subr.mxu0 0.0
    %1780 = vmatpush1.msra.mxu0 0.0
    %1781 = vmatprep.subr.mxu0 0.0
    %1782 = vmatpush1.msra.mxu0 0.0
    %1783 = vmatprep.subr.mxu0 0.0
    %1784 = vmatpush1.msra.mxu0 0.0
    %1785 = vmatprep.subr.mxu0 0.0
    %1786 = vmatpush1.msra.mxu0 0.0
    %1787 = vmatprep.subr.mxu0 0.0
    %1788 = vmatpush1.msra.mxu0 0.0
    %1789 = vmatprep.subr.mxu0 0.0
    %1790 = vmatpush1.msra.mxu0 0.0
    %1791 = vmatprep.subr.mxu0 0.0
    %1792 = vmatpush1.msra.mxu0 0.0
    %1793 = vmatprep.mubr.f32.mxu0 0.0
    %1794 = vmatmul.mubr.f32.gmra.mrb[0].mxu0 %v1727
    %v1795 = vpop.f32.mrb[0].mxu0
    %v1796 = vadd.f32 0.0, %v1795
    %v1797 = vpop.f32.mrb[0].mxu0
    %1798 = vdwg.mxu0
    %v1799 = vadd.f32 %v1721, %v1796
    %v1800 = vxor.u32 %v1799, 2147483648
    %v1801 = vmul.f32 %v1800, 1.442695
    %v1802 = vpow.pop %v1801
    %v1803 = vadd.f32 %v1802, 1.0
    %v1804 = vrcp.pop %v1803
    %v1805 = vmul.f32 1.0, %v1804
    %v1806 = vadd.f32 %v1796, %v603
    %1808 = vrot.lane.b32.xlu0 %v1806, 64
    %v1809 = vpop.permute.xlu0 %1808
    %v1811 = vmul.f32 %v1805, %v1809
    %1813 = vrot.lane.b32.xlu0 %v1811, 64
    %v1814 = vpop.permute.xlu0 %1813
    %v1816 = vadd.f32 %v1721, %v1814
    %v1817 = vtanh.pop %v1816
    %v1818 = vsub.f32 %v1521, %v1817
    %1820 = vrot.lane.b32.xlu0 %v1818, 96
    %v1821 = vpop.permute.xlu0 %1820
    %v1823 = vmul.f32 %v1805, %v1821
    %1825 = vrot.lane.b32.xlu0 %v1823, 32
    %v1826 = vpop.permute.xlu0 %1825
    %v1828 = vadd.f32 %v1817, %v1826
    %v1829 = vsub.f32 %v1828, %v1521
    %v1830 = vmul.f32 %v1340, %v1829
    %v1831 = vadd.f32 %v1521, %v1830
    %1833 = vrot.lane.b32.xlu0 %v1653, 64
    %v1834 = vpop.permute.xlu0 %1833
    %v1835 = vsel %vm193, %v1834, 0
    %1837 = vmatprep.subr.mxu0 0.0
    %1838 = vmatpush1.msra.mxu0 %v73
    %1839 = vmatprep.subr.mxu0 0.0
    %1840 = vmatpush1.msra.mxu0 %v74
    %1841 = vmatprep.subr.mxu0 0.0
    %1842 = vmatpush1.msra.mxu0 %v75
    %1843 = vmatprep.subr.mxu0 0.0
    %1844 = vmatpush1.msra.mxu0 %v76
    %1845 = vmatprep.subr.mxu0 0.0
    %1846 = vmatpush1.msra.mxu0 0.0
    %1847 = vmatprep.subr.mxu0 0.0
    %1848 = vmatpush1.msra.mxu0 0.0
    %1849 = vmatprep.subr.mxu0 0.0
    %1850 = vmatpush1.msra.mxu0 0.0
    %1851 = vmatprep.subr.mxu0 0.0
    %1852 = vmatpush1.msra.mxu0 0.0
    %1853 = vmatprep.subr.mxu0 0.0
    %1854 = vmatpush1.msra.mxu0 0.0
    %1855 = vmatprep.subr.mxu0 0.0
    %1856 = vmatpush1.msra.mxu0 0.0
    %1857 = vmatprep.subr.mxu0 0.0
    %1858 = vmatpush1.msra.mxu0 0.0
    %1859 = vmatprep.subr.mxu0 0.0
    %1860 = vmatpush1.msra.mxu0 0.0
    %1861 = vmatprep.subr.mxu0 0.0
    %1862 = vmatpush1.msra.mxu0 0.0
    %1863 = vmatprep.subr.mxu0 0.0
    %1864 = vmatpush1.msra.mxu0 0.0
    %1865 = vmatprep.subr.mxu0 0.0
    %1866 = vmatpush1.msra.mxu0 0.0
    %1867 = vmatprep.subr.mxu0 0.0
    %1868 = vmatpush1.msra.mxu0 0.0
    %1869 = vmatprep.subr.mxu0 0.0
    %1870 = vmatpush1.msra.mxu0 0.0
    %1871 = vmatprep.subr.mxu0 0.0
    %1872 = vmatpush1.msra.mxu0 0.0
    %1873 = vmatprep.subr.mxu0 0.0
    %1874 = vmatpush1.msra.mxu0 0.0
    %1875 = vmatprep.subr.mxu0 0.0
    %1876 = vmatpush1.msra.mxu0 0.0
    %1877 = vmatprep.subr.mxu0 0.0
    %1878 = vmatpush1.msra.mxu0 0.0
    %1879 = vmatprep.subr.mxu0 0.0
    %1880 = vmatpush1.msra.mxu0 0.0
    %1881 = vmatprep.subr.mxu0 0.0
    %1882 = vmatpush1.msra.mxu0 0.0
    %1883 = vmatprep.subr.mxu0 0.0
    %1884 = vmatpush1.msra.mxu0 0.0
    %1885 = vmatprep.subr.mxu0 0.0
    %1886 = vmatpush1.msra.mxu0 0.0
    %1887 = vmatprep.subr.mxu0 0.0
    %1888 = vmatpush1.msra.mxu0 0.0
    %1889 = vmatprep.subr.mxu0 0.0
    %1890 = vmatpush1.msra.mxu0 0.0
    %1891 = vmatprep.subr.mxu0 0.0
    %1892 = vmatpush1.msra.mxu0 0.0
    %1893 = vmatprep.subr.mxu0 0.0
    %1894 = vmatpush1.msra.mxu0 0.0
    %1895 = vmatprep.subr.mxu0 0.0
    %1896 = vmatpush1.msra.mxu0 0.0
    %1897 = vmatprep.subr.mxu0 0.0
    %1898 = vmatpush1.msra.mxu0 0.0
    %1899 = vmatprep.subr.mxu0 0.0
    %1900 = vmatpush1.msra.mxu0 0.0
    %1901 = vmatprep.mubr.f32.mxu0 0.0
    %1902 = vmatmul.mubr.f32.gmra.mrb[0].mxu0 %v1835
    %v1903 = vpop.f32.mrb[0].mxu0
    %v1904 = vadd.f32 0.0, %v1903
    %v1905 = vpop.f32.mrb[0].mxu0
    %1906 = vdwg.mxu0
    %v1907 = vadd.f32 %v190, %v1904
    %v1908 = vxor.u32 %v1907, 2147483648
    %v1909 = vmul.f32 %v1908, 1.442695
    %v1910 = vpow.pop %v1909
    %v1911 = vadd.f32 %v1910, 1.0
    %v1912 = vrcp.pop %v1911
    %v1913 = vmul.f32 1.0, %v1912
    %v1914 = vadd.f32 %v1904, %v280
    %1916 = vrot.lane.b32.xlu0 %v1914, 64
    %v1917 = vpop.permute.xlu0 %1916
    %v1919 = vmul.f32 %v1913, %v1917
    %1921 = vrot.lane.b32.xlu0 %v1919, 64
    %v1922 = vpop.permute.xlu0 %1921
    %v1924 = vadd.f32 %v190, %v1922
    %v1925 = vtanh.pop %v1924
    %v1926 = vsub.f32 %v1653, %v1925
    %1928 = vrot.lane.b32.xlu0 %v1926, 96
    %v1929 = vpop.permute.xlu0 %1928
    %v1931 = vmul.f32 %v1913, %v1929
    %1933 = vrot.lane.b32.xlu0 %v1931, 32
    %v1934 = vpop.permute.xlu0 %1933
    %v1936 = vadd.f32 %v1925, %v1934
    %v1937 = vsub.f32 %v1936, %v1653
    %1939 = vset.pattern.permute.xlu0 0
    %1940 = vperm.xlu0 %1939, %v63
    %v1941 = vpop.permute.xlu0 %1940
    %v1943 = vmul.f32 %v1941, %v1937
    %v1944 = vadd.f32 %v1653, %v1943
    %1945 = vmatprep.subr.mxu0 0.0
    %1946 = vmatpush1.msra.mxu0 %v69
    %1947 = vmatprep.subr.mxu0 0.0
    %1948 = vmatpush1.msra.mxu0 %v70
    %1949 = vmatprep.subr.mxu0 0.0
    %1950 = vmatpush1.msra.mxu0 %v71
    %1951 = vmatprep.subr.mxu0 0.0
    %1952 = vmatpush1.msra.mxu0 %v72
    %1953 = vmatprep.subr.mxu0 0.0
    %1954 = vmatpush1.msra.mxu0 0.0
    %1955 = vmatprep.subr.mxu0 0.0
    %1956 = vmatpush1.msra.mxu0 0.0
    %1957 = vmatprep.subr.mxu0 0.0
    %1958 = vmatpush1.msra.mxu0 0.0
    %1959 = vmatprep.subr.mxu0 0.0
    %1960 = vmatpush1.msra.mxu0 0.0
    %1961 = vmatprep.subr.mxu0 0.0
    %1962 = vmatpush1.msra.mxu0 0.0
    %1963 = vmatprep.subr.mxu0 0.0
    %1964 = vmatpush1.msra.mxu0 0.0
    %1965 = vmatprep.subr.mxu0 0.0
    %1966 = vmatpush1.msra.mxu0 0.0
    %1967 = vmatprep.subr.mxu0 0.0
    %1968 = vmatpush1.msra.mxu0 0.0
    %1969 = vmatprep.subr.mxu0 0.0
    %1970 = vmatpush1.msra.mxu0 0.0
    %1971 = vmatprep.subr.mxu0 0.0
    %1972 = vmatpush1.msra.mxu0 0.0
    %1973 = vmatprep.subr.mxu0 0.0
    %1974 = vmatpush1.msra.mxu0 0.0
    %1975 = vmatprep.subr.mxu0 0.0
    %1976 = vmatpush1.msra.mxu0 0.0
    %1977 = vmatprep.subr.mxu0 0.0
    %1978 = vmatpush1.msra.mxu0 0.0
    %1979 = vmatprep.subr.mxu0 0.0
    %1980 = vmatpush1.msra.mxu0 0.0
    %1981 = vmatprep.subr.mxu0 0.0
    %1982 = vmatpush1.msra.mxu0 0.0
    %1983 = vmatprep.subr.mxu0 0.0
    %1984 = vmatpush1.msra.mxu0 0.0
    %1985 = vmatprep.subr.mxu0 0.0
    %1986 = vmatpush1.msra.mxu0 0.0
    %1987 = vmatprep.subr.mxu0 0.0
    %1988 = vmatpush1.msra.mxu0 0.0
    %1989 = vmatprep.subr.mxu0 0.0
    %1990 = vmatpush1.msra.mxu0 0.0
    %1991 = vmatprep.subr.mxu0 0.0
    %1992 = vmatpush1.msra.mxu0 0.0
    %1993 = vmatprep.subr.mxu0 0.0
    %1994 = vmatpush1.msra.mxu0 0.0
    %1995 = vmatprep.subr.mxu0 0.0
    %1996 = vmatpush1.msra.mxu0 0.0
    %1997 = vmatprep.subr.mxu0 0.0
    %1998 = vmatpush1.msra.mxu0 0.0
    %1999 = vmatprep.subr.mxu0 0.0
    %2000 = vmatpush1.msra.mxu0 0.0
    %2001 = vmatprep.subr.mxu0 0.0
    %2002 = vmatpush1.msra.mxu0 0.0
    %2003 = vmatprep.subr.mxu0 0.0
    %2004 = vmatpush1.msra.mxu0 0.0
    %2005 = vmatprep.subr.mxu0 0.0
    %2006 = vmatpush1.msra.mxu0 0.0
    %2007 = vmatprep.subr.mxu0 0.0
    %2008 = vmatpush1.msra.mxu0 0.0
    %2009 = vmatprep.mubr.f32.mxu0 0.0
    %2010 = vmatmul.mubr.f32.gmra.mrb[0].mxu0 %v1835
    %v2011 = vpop.f32.mrb[0].mxu0
    %v2012 = vadd.f32 %v448, %v2011
    %v2013 = vpop.f32.mrb[0].mxu0
    %2014 = vdwg.mxu0
    %2016 = vrot.lane.b32.xlu0 %v1831, 64
    %v2017 = vpop.permute.xlu0 %2016
    %v2018 = vsel %vm193, %v2017, 0
    %2020 = vmatprep.subr.mxu0 0.0
    %2021 = vmatpush1.msra.mxu0 %v77
    %2022 = vmatprep.subr.mxu0 0.0
    %2023 = vmatpush1.msra.mxu0 %v78
    %2024 = vmatprep.subr.mxu0 0.0
    %2025 = vmatpush1.msra.mxu0 %v79
    %2026 = vmatprep.subr.mxu0 0.0
    %2027 = vmatpush1.msra.mxu0 %v80
    %2028 = vmatprep.subr.mxu0 0.0
    %2029 = vmatpush1.msra.mxu0 0.0
    %2030 = vmatprep.subr.mxu0 0.0
    %2031 = vmatpush1.msra.mxu0 0.0
    %2032 = vmatprep.subr.mxu0 0.0
    %2033 = vmatpush1.msra.mxu0 0.0
    %2034 = vmatprep.subr.mxu0 0.0
    %2035 = vmatpush1.msra.mxu0 0.0
    %2036 = vmatprep.subr.mxu0 0.0
    %2037 = vmatpush1.msra.mxu0 0.0
    %2038 = vmatprep.subr.mxu0 0.0
    %2039 = vmatpush1.msra.mxu0 0.0
    %2040 = vmatprep.subr.mxu0 0.0
    %2041 = vmatpush1.msra.mxu0 0.0
    %2042 = vmatprep.subr.mxu0 0.0
    %2043 = vmatpush1.msra.mxu0 0.0
    %2044 = vmatprep.subr.mxu0 0.0
    %2045 = vmatpush1.msra.mxu0 0.0
    %2046 = vmatprep.subr.mxu0 0.0
    %2047 = vmatpush1.msra.mxu0 0.0
    %2048 = vmatprep.subr.mxu0 0.0
    %2049 = vmatpush1.msra.mxu0 0.0
    %2050 = vmatprep.subr.mxu0 0.0
    %2051 = vmatpush1.msra.mxu0 0.0
    %2052 = vmatprep.subr.mxu0 0.0
    %2053 = vmatpush1.msra.mxu0 0.0
    %2054 = vmatprep.subr.mxu0 0.0
    %2055 = vmatpush1.msra.mxu0 0.0
    %2056 = vmatprep.subr.mxu0 0.0
    %2057 = vmatpush1.msra.mxu0 0.0
    %2058 = vmatprep.subr.mxu0 0.0
    %2059 = vmatpush1.msra.mxu0 0.0
    %2060 = vmatprep.subr.mxu0 0.0
    %2061 = vmatpush1.msra.mxu0 0.0
    %2062 = vmatprep.subr.mxu0 0.0
    %2063 = vmatpush1.msra.mxu0 0.0
    %2064 = vmatprep.subr.mxu0 0.0
    %2065 = vmatpush1.msra.mxu0 0.0
    %2066 = vmatprep.subr.mxu0 0.0
    %2067 = vmatpush1.msra.mxu0 0.0
    %2068 = vmatprep.subr.mxu0 0.0
    %2069 = vmatpush1.msra.mxu0 0.0
    %2070 = vmatprep.subr.mxu0 0.0
    %2071 = vmatpush1.msra.mxu0 0.0
    %2072 = vmatprep.subr.mxu0 0.0
    %2073 = vmatpush1.msra.mxu0 0.0
    %2074 = vmatprep.subr.mxu0 0.0
    %2075 = vmatpush1.msra.mxu0 0.0
    %2076 = vmatprep.subr.mxu0 0.0
    %2077 = vmatpush1.msra.mxu0 0.0
    %2078 = vmatprep.subr.mxu0 0.0
    %2079 = vmatpush1.msra.mxu0 0.0
    %2080 = vmatprep.subr.mxu0 0.0
    %2081 = vmatpush1.msra.mxu0 0.0
    %2082 = vmatprep.subr.mxu0 0.0
    %2083 = vmatpush1.msra.mxu0 0.0
    %2084 = vmatprep.mubr.f32.mxu0 0.0
    %2085 = vmatmul.mubr.f32.gmra.mrb[0].mxu0 %v2018
    %v2086 = vpop.f32.mrb[0].mxu0
    %v2087 = vadd.f32 0.0, %v2086
    %v2088 = vpop.f32.mrb[0].mxu0
    %2089 = vdwg.mxu0
    %v2090 = vadd.f32 %v2012, %v2087
    %v2091 = vxor.u32 %v2090, 2147483648
    %v2092 = vmul.f32 %v2091, 1.442695
    %v2093 = vpow.pop %v2092
    %v2094 = vadd.f32 %v2093, 1.0
    %v2095 = vrcp.pop %v2094
    %v2096 = vmul.f32 1.0, %v2095
    %v2097 = vadd.f32 %v2087, %v603
    %2099 = vrot.lane.b32.xlu0 %v2097, 64
    %v2100 = vpop.permute.xlu0 %2099
    %v2102 = vmul.f32 %v2096, %v2100
    %2104 = vrot.lane.b32.xlu0 %v2102, 64
    %v2105 = vpop.permute.xlu0 %2104
    %v2107 = vadd.f32 %v2012, %v2105
    %v2108 = vtanh.pop %v2107
    %v2109 = vsub.f32 %v1831, %v2108
    %2111 = vrot.lane.b32.xlu0 %v2109, 96
    %v2112 = vpop.permute.xlu0 %2111
    %v2114 = vmul.f32 %v2096, %v2112
    %2116 = vrot.lane.b32.xlu0 %v2114, 32
    %v2117 = vpop.permute.xlu0 %2116
    %v2119 = vadd.f32 %v2108, %v2117
    %v2120 = vsub.f32 %v2119, %v1831
    %v2121 = vmul.f32 %v1641, %v2120
    %v2122 = vadd.f32 %v1831, %v2121
    %2124 = vrot.lane.b32.xlu0 %v1944, 64
    %v2125 = vpop.permute.xlu0 %2124
    %v2126 = vsel %vm193, %v2125, 0
    %2128 = vmatprep.subr.mxu0 0.0
    %2129 = vmatpush1.msra.mxu0 %v73
    %2130 = vmatprep.subr.mxu0 0.0
    %2131 = vmatpush1.msra.mxu0 %v74
    %2132 = vmatprep.subr.mxu0 0.0
    %2133 = vmatpush1.msra.mxu0 %v75
    %2134 = vmatprep.subr.mxu0 0.0
    %2135 = vmatpush1.msra.mxu0 %v76
    %2136 = vmatprep.subr.mxu0 0.0
    %2137 = vmatpush1.msra.mxu0 0.0
    %2138 = vmatprep.subr.mxu0 0.0
    %2139 = vmatpush1.msra.mxu0 0.0
    %2140 = vmatprep.subr.mxu0 0.0
    %2141 = vmatpush1.msra.mxu0 0.0
    %2142 = vmatprep.subr.mxu0 0.0
    %2143 = vmatpush1.msra.mxu0 0.0
    %2144 = vmatprep.subr.mxu0 0.0
    %2145 = vmatpush1.msra.mxu0 0.0
    %2146 = vmatprep.subr.mxu0 0.0
    %2147 = vmatpush1.msra.mxu0 0.0
    %2148 = vmatprep.subr.mxu0 0.0
    %2149 = vmatpush1.msra.mxu0 0.0
    %2150 = vmatprep.subr.mxu0 0.0
    %2151 = vmatpush1.msra.mxu0 0.0
    %2152 = vmatprep.subr.mxu0 0.0
    %2153 = vmatpush1.msra.mxu0 0.0
    %2154 = vmatprep.subr.mxu0 0.0
    %2155 = vmatpush1.msra.mxu0 0.0
    %2156 = vmatprep.subr.mxu0 0.0
    %2157 = vmatpush1.msra.mxu0 0.0
    %2158 = vmatprep.subr.mxu0 0.0
    %2159 = vmatpush1.msra.mxu0 0.0
    %2160 = vmatprep.subr.mxu0 0.0
    %2161 = vmatpush1.msra.mxu0 0.0
    %2162 = vmatprep.subr.mxu0 0.0
    %2163 = vmatpush1.msra.mxu0 0.0
    %2164 = vmatprep.subr.mxu0 0.0
    %2165 = vmatpush1.msra.mxu0 0.0
    %2166 = vmatprep.subr.mxu0 0.0
    %2167 = vmatpush1.msra.mxu0 0.0
    %2168 = vmatprep.subr.mxu0 0.0
    %2169 = vmatpush1.msra.mxu0 0.0
    %2170 = vmatprep.subr.mxu0 0.0
    %2171 = vmatpush1.msra.mxu0 0.0
    %2172 = vmatprep.subr.mxu0 0.0
    %2173 = vmatpush1.msra.mxu0 0.0
    %2174 = vmatprep.subr.mxu0 0.0
    %2175 = vmatpush1.msra.mxu0 0.0
    %2176 = vmatprep.subr.mxu0 0.0
    %2177 = vmatpush1.msra.mxu0 0.0
    %2178 = vmatprep.subr.mxu0 0.0
    %2179 = vmatpush1.msra.mxu0 0.0
    %2180 = vmatprep.subr.mxu0 0.0
    %2181 = vmatpush1.msra.mxu0 0.0
    %2182 = vmatprep.subr.mxu0 0.0
    %2183 = vmatpush1.msra.mxu0 0.0
    %2184 = vmatprep.subr.mxu0 0.0
    %2185 = vmatpush1.msra.mxu0 0.0
    %2186 = vmatprep.subr.mxu0 0.0
    %2187 = vmatpush1.msra.mxu0 0.0
    %2188 = vmatprep.subr.mxu0 0.0
    %2189 = vmatpush1.msra.mxu0 0.0
    %2190 = vmatprep.subr.mxu0 0.0
    %2191 = vmatpush1.msra.mxu0 0.0
    %2192 = vmatprep.mubr.f32.mxu0 0.0
    %2193 = vmatmul.mubr.f32.gmra.mrb[0].mxu0 %v2126
    %v2194 = vpop.f32.mrb[0].mxu0
    %v2195 = vadd.f32 0.0, %v2194
    %v2196 = vpop.f32.mrb[0].mxu0
    %2197 = vdwg.mxu0
    %v2199 = vrot.slane %v2195, 4
    %v2201 = vadd.f32 %v190, %v2199
    %v2202 = vxor.u32 %v2201, 2147483648
    %v2203 = vmul.f32 %v2202, 1.442695
    %v2204 = vpow.pop %v2203
    %v2205 = vadd.f32 %v2204, 1.0
    %v2206 = vrcp.pop %v2205
    %v2207 = vmul.f32 1.0, %v2206
    %v2208 = vadd.f32 %v2195, %v280
    %v2210 = vrot.slane %v2208, 4
    %2211 = vrot.lane.b32.xlu0 %v2210, 64
    %v2212 = vpop.permute.xlu0 %2211
    %v2214 = vmul.f32 %v2207, %v2212
    %2216 = vrot.lane.b32.xlu0 %v2214, 64
    %v2217 = vpop.permute.xlu0 %2216
    %v2219 = vadd.f32 %v190, %v2217
    %v2220 = vtanh.pop %v2219
    %v2222 = vrot.slane %v2220, 4
    %v2224 = vsub.f32 %v1944, %v2222
    %v2226 = vrot.slane %v2224, 4
    %2227 = vrot.lane.b32.xlu0 %v2226, 96
    %v2228 = vpop.permute.xlu0 %2227
    %v2230 = vmul.f32 %v2207, %v2228
    %2232 = vrot.lane.b32.xlu0 %v2230, 32
    %v2233 = vpop.permute.xlu0 %2232
    %v2235 = vadd.f32 %v2220, %v2233
    %v2236 = vrot.slane %v1944, 4
    %v2238 = vsub.f32 %v2235, %v2236
    %2240 = vset.pattern.permute.xlu0 0
    %2241 = vperm.xlu0 %2240, %v66
    %v2242 = vpop.permute.xlu0 %2241
    %v2245 = vrot.slane %v2238, 4
    %2246 = vrot.lane.b32.xlu0 %v2245, 64
    %v2247 = vpop.permute.xlu0 %2246
    %v2249 = vmul.f32 %v2242, %v2247
    %2251 = vrot.lane.b32.xlu0 %v2249, 64
    %v2252 = vpop.permute.xlu0 %2251
    %v2254 = vadd.f32 %v1944, %v2252
    %2255 = vmatprep.subr.mxu0 0.0
    %2256 = vmatpush1.msra.mxu0 %v69
    %2257 = vmatprep.subr.mxu0 0.0
    %2258 = vmatpush1.msra.mxu0 %v70
    %2259 = vmatprep.subr.mxu0 0.0
    %2260 = vmatpush1.msra.mxu0 %v71
    %2261 = vmatprep.subr.mxu0 0.0
    %2262 = vmatpush1.msra.mxu0 %v72
    %2263 = vmatprep.subr.mxu0 0.0
    %2264 = vmatpush1.msra.mxu0 0.0
    %2265 = vmatprep.subr.mxu0 0.0
    %2266 = vmatpush1.msra.mxu0 0.0
    %2267 = vmatprep.subr.mxu0 0.0
    %2268 = vmatpush1.msra.mxu0 0.0
    %2269 = vmatprep.subr.mxu0 0.0
    %2270 = vmatpush1.msra.mxu0 0.0
    %2271 = vmatprep.subr.mxu0 0.0
    %2272 = vmatpush1.msra.mxu0 0.0
    %2273 = vmatprep.subr.mxu0 0.0
    %2274 = vmatpush1.msra.mxu0 0.0
    %2275 = vmatprep.subr.mxu0 0.0
    %2276 = vmatpush1.msra.mxu0 0.0
    %2277 = vmatprep.subr.mxu0 0.0
    %2278 = vmatpush1.msra.mxu0 0.0
    %2279 = vmatprep.subr.mxu0 0.0
    %2280 = vmatpush1.msra.mxu0 0.0
    %2281 = vmatprep.subr.mxu0 0.0
    %2282 = vmatpush1.msra.mxu0 0.0
    %2283 = vmatprep.subr.mxu0 0.0
    %2284 = vmatpush1.msra.mxu0 0.0
    %2285 = vmatprep.subr.mxu0 0.0
    %2286 = vmatpush1.msra.mxu0 0.0
    %2287 = vmatprep.subr.mxu0 0.0
    %2288 = vmatpush1.msra.mxu0 0.0
    %2289 = vmatprep.subr.mxu0 0.0
    %2290 = vmatpush1.msra.mxu0 0.0
    %2291 = vmatprep.subr.mxu0 0.0
    %2292 = vmatpush1.msra.mxu0 0.0
    %2293 = vmatprep.subr.mxu0 0.0
    %2294 = vmatpush1.msra.mxu0 0.0
    %2295 = vmatprep.subr.mxu0 0.0
    %2296 = vmatpush1.msra.mxu0 0.0
    %2297 = vmatprep.subr.mxu0 0.0
    %2298 = vmatpush1.msra.mxu0 0.0
    %2299 = vmatprep.subr.mxu0 0.0
    %2300 = vmatpush1.msra.mxu0 0.0
    %2301 = vmatprep.subr.mxu0 0.0
    %2302 = vmatpush1.msra.mxu0 0.0
    %2303 = vmatprep.subr.mxu0 0.0
    %2304 = vmatpush1.msra.mxu0 0.0
    %2305 = vmatprep.subr.mxu0 0.0
    %2306 = vmatpush1.msra.mxu0 0.0
    %2307 = vmatprep.subr.mxu0 0.0
    %2308 = vmatpush1.msra.mxu0 0.0
    %2309 = vmatprep.subr.mxu0 0.0
    %2310 = vmatpush1.msra.mxu0 0.0
    %2311 = vmatprep.subr.mxu0 0.0
    %2312 = vmatpush1.msra.mxu0 0.0
    %2313 = vmatprep.subr.mxu0 0.0
    %2314 = vmatpush1.msra.mxu0 0.0
    %2315 = vmatprep.subr.mxu0 0.0
    %2316 = vmatpush1.msra.mxu0 0.0
    %2317 = vmatprep.subr.mxu0 0.0
    %2318 = vmatpush1.msra.mxu0 0.0
    %2319 = vmatprep.mubr.f32.mxu0 0.0
    %2320 = vmatmul.mubr.f32.gmra.mrb[0].mxu0 %v2126
    %v2321 = vpop.f32.mrb[0].mxu0
    %v2322 = vadd.f32 %v448, %v2321
    %v2323 = vpop.f32.mrb[0].mxu0
    %2324 = vdwg.mxu0
    %2326 = vrot.lane.b32.xlu0 %v2122, 64
    %v2327 = vpop.permute.xlu0 %2326
    %v2328 = vsel %vm193, %v2327, 0
    %2330 = vmatprep.subr.mxu0 0.0
    %2331 = vmatpush1.msra.mxu0 %v77
    %2332 = vmatprep.subr.mxu0 0.0
    %2333 = vmatpush1.msra.mxu0 %v78
    %2334 = vmatprep.subr.mxu0 0.0
    %2335 = vmatpush1.msra.mxu0 %v79
    %2336 = vmatprep.subr.mxu0 0.0
    %2337 = vmatpush1.msra.mxu0 %v80
    %2338 = vmatprep.subr.mxu0 0.0
    %2339 = vmatpush1.msra.mxu0 0.0
    %2340 = vmatprep.subr.mxu0 0.0
    %2341 = vmatpush1.msra.mxu0 0.0
    %2342 = vmatprep.subr.mxu0 0.0
    %2343 = vmatpush1.msra.mxu0 0.0
    %2344 = vmatprep.subr.mxu0 0.0
    %2345 = vmatpush1.msra.mxu0 0.0
    %2346 = vmatprep.subr.mxu0 0.0
    %2347 = vmatpush1.msra.mxu0 0.0
    %2348 = vmatprep.subr.mxu0 0.0
    %2349 = vmatpush1.msra.mxu0 0.0
    %2350 = vmatprep.subr.mxu0 0.0
    %2351 = vmatpush1.msra.mxu0 0.0
    %2352 = vmatprep.subr.mxu0 0.0
    %2353 = vmatpush1.msra.mxu0 0.0
    %2354 = vmatprep.subr.mxu0 0.0
    %2355 = vmatpush1.msra.mxu0 0.0
    %2356 = vmatprep.subr.mxu0 0.0
    %2357 = vmatpush1.msra.mxu0 0.0
    %2358 = vmatprep.subr.mxu0 0.0
    %2359 = vmatpush1.msra.mxu0 0.0
    %2360 = vmatprep.subr.mxu0 0.0
    %2361 = vmatpush1.msra.mxu0 0.0
    %2362 = vmatprep.subr.mxu0 0.0
    %2363 = vmatpush1.msra.mxu0 0.0
    %2364 = vmatprep.subr.mxu0 0.0
    %2365 = vmatpush1.msra.mxu0 0.0
    %2366 = vmatprep.subr.mxu0 0.0
    %2367 = vmatpush1.msra.mxu0 0.0
    %2368 = vmatprep.subr.mxu0 0.0
    %2369 = vmatpush1.msra.mxu0 0.0
    %2370 = vmatprep.subr.mxu0 0.0
    %2371 = vmatpush1.msra.mxu0 0.0
    %2372 = vmatprep.subr.mxu0 0.0
    %2373 = vmatpush1.msra.mxu0 0.0
    %2374 = vmatprep.subr.mxu0 0.0
    %2375 = vmatpush1.msra.mxu0 0.0
    %2376 = vmatprep.subr.mxu0 0.0
    %2377 = vmatpush1.msra.mxu0 0.0
    %2378 = vmatprep.subr.mxu0 0.0
    %2379 = vmatpush1.msra.mxu0 0.0
    %2380 = vmatprep.subr.mxu0 0.0
    %2381 = vmatpush1.msra.mxu0 0.0
    %2382 = vmatprep.subr.mxu0 0.0
    %2383 = vmatpush1.msra.mxu0 0.0
    %2384 = vmatprep.subr.mxu0 0.0
    %2385 = vmatpush1.msra.mxu0 0.0
    %2386 = vmatprep.subr.mxu0 0.0
    %2387 = vmatpush1.msra.mxu0 0.0
    %2388 = vmatprep.subr.mxu0 0.0
    %2389 = vmatpush1.msra.mxu0 0.0
    %2390 = vmatprep.subr.mxu0 0.0
    %2391 = vmatpush1.msra.mxu0 0.0
    %2392 = vmatprep.subr.mxu0 0.0
    %2393 = vmatpush1.msra.mxu0 0.0
    %2394 = vmatprep.mubr.f32.mxu0 0.0
    %2395 = vmatmul.mubr.f32.gmra.mrb[0].mxu0 %v2328
    %v2396 = vpop.f32.mrb[0].mxu0
    %v2397 = vadd.f32 0.0, %v2396
    %v2398 = vpop.f32.mrb[0].mxu0
    %2399 = vdwg.mxu0
    %v2400 = vadd.f32 %v2322, %v2397
    %v2401 = vxor.u32 %v2400, 2147483648
    %v2402 = vmul.f32 %v2401, 1.442695
    %v2403 = vpow.pop %v2402
    %v2404 = vadd.f32 %v2403, 1.0
    %v2405 = vrcp.pop %v2404
    %v2406 = vmul.f32 1.0, %v2405
    %v2407 = vadd.f32 %v2397, %v603
    %2409 = vrot.lane.b32.xlu0 %v2407, 64
    %v2410 = vpop.permute.xlu0 %2409
    %v2412 = vmul.f32 %v2406, %v2410
    %2414 = vrot.lane.b32.xlu0 %v2412, 64
    %v2415 = vpop.permute.xlu0 %2414
    %v2417 = vadd.f32 %v2322, %v2415
    %v2418 = vtanh.pop %v2417
    %v2419 = vsub.f32 %v2122, %v2418
    %2421 = vrot.lane.b32.xlu0 %v2419, 96
    %v2422 = vpop.permute.xlu0 %2421
    %v2424 = vmul.f32 %v2406, %v2422
    %2426 = vrot.lane.b32.xlu0 %v2424, 32
    %v2427 = vpop.permute.xlu0 %2426
    %v2429 = vadd.f32 %v2418, %v2427
    %v2430 = vsub.f32 %v2429, %v2122
    %v2431 = vmul.f32 %v1941, %v2430
    %v2432 = vadd.f32 %v2122, %v2431
    %2434 = vrot.lane.b32.xlu0 %v2254, 64
    %v2435 = vpop.permute.xlu0 %2434
    %v2436 = vsel %vm193, %v2435, 0
    %2438 = vmatprep.subr.mxu0 0.0
    %2439 = vmatpush1.msra.mxu0 %v69
    %2440 = vmatprep.subr.mxu0 0.0
    %2441 = vmatpush1.msra.mxu0 %v70
    %2442 = vmatprep.subr.mxu0 0.0
    %2443 = vmatpush1.msra.mxu0 %v71
    %2444 = vmatprep.subr.mxu0 0.0
    %2445 = vmatpush1.msra.mxu0 %v72
    %2446 = vmatprep.subr.mxu0 0.0
    %2447 = vmatpush1.msra.mxu0 0.0
    %2448 = vmatprep.subr.mxu0 0.0
    %2449 = vmatpush1.msra.mxu0 0.0
    %2450 = vmatprep.subr.mxu0 0.0
    %2451 = vmatpush1.msra.mxu0 0.0
    %2452 = vmatprep.subr.mxu0 0.0
    %2453 = vmatpush1.msra.mxu0 0.0
    %2454 = vmatprep.subr.mxu0 0.0
    %2455 = vmatpush1.msra.mxu0 0.0
    %2456 = vmatprep.subr.mxu0 0.0
    %2457 = vmatpush1.msra.mxu0 0.0
    %2458 = vmatprep.subr.mxu0 0.0
    %2459 = vmatpush1.msra.mxu0 0.0
    %2460 = vmatprep.subr.mxu0 0.0
    %2461 = vmatpush1.msra.mxu0 0.0
    %2462 = vmatprep.subr.mxu0 0.0
    %2463 = vmatpush1.msra.mxu0 0.0
    %2464 = vmatprep.subr.mxu0 0.0
    %2465 = vmatpush1.msra.mxu0 0.0
    %2466 = vmatprep.subr.mxu0 0.0
    %2467 = vmatpush1.msra.mxu0 0.0
    %2468 = vmatprep.subr.mxu0 0.0
    %2469 = vmatpush1.msra.mxu0 0.0
    %2470 = vmatprep.subr.mxu0 0.0
    %2471 = vmatpush1.msra.mxu0 0.0
    %2472 = vmatprep.subr.mxu0 0.0
    %2473 = vmatpush1.msra.mxu0 0.0
    %2474 = vmatprep.subr.mxu0 0.0
    %2475 = vmatpush1.msra.mxu0 0.0
    %2476 = vmatprep.subr.mxu0 0.0
    %2477 = vmatpush1.msra.mxu0 0.0
    %2478 = vmatprep.subr.mxu0 0.0
    %2479 = vmatpush1.msra.mxu0 0.0
    %2480 = vmatprep.subr.mxu0 0.0
    %2481 = vmatpush1.msra.mxu0 0.0
    %2482 = vmatprep.subr.mxu0 0.0
    %2483 = vmatpush1.msra.mxu0 0.0
    %2484 = vmatprep.subr.mxu0 0.0
    %2485 = vmatpush1.msra.mxu0 0.0
    %2486 = vmatprep.subr.mxu0 0.0
    %2487 = vmatpush1.msra.mxu0 0.0
    %2488 = vmatprep.subr.mxu0 0.0
    %2489 = vmatpush1.msra.mxu0 0.0
    %2490 = vmatprep.subr.mxu0 0.0
    %2491 = vmatpush1.msra.mxu0 0.0
    %2492 = vmatprep.subr.mxu0 0.0
    %2493 = vmatpush1.msra.mxu0 0.0
    %2494 = vmatprep.subr.mxu0 0.0
    %2495 = vmatpush1.msra.mxu0 0.0
    %2496 = vmatprep.subr.mxu0 0.0
    %2497 = vmatpush1.msra.mxu0 0.0
    %2498 = vmatprep.subr.mxu0 0.0
    %2499 = vmatpush1.msra.mxu0 0.0
    %2500 = vmatprep.subr.mxu0 0.0
    %2501 = vmatpush1.msra.mxu0 0.0
    %2502 = vmatprep.mubr.f32.mxu0 0.0
    %2503 = vmatmul.mubr.f32.gmra.mrb[0].mxu0 %v2436
    %v2504 = vpop.f32.mrb[0].mxu0
    %v2505 = vadd.f32 %v448, %v2504
    %v2506 = vpop.f32.mrb[0].mxu0
    %2507 = vdwg.mxu0
    %2509 = vrot.lane.b32.xlu0 %v2432, 64
    %v2510 = vpop.permute.xlu0 %2509
    %v2511 = vsel %vm193, %v2510, 0
    %2513 = vmatprep.subr.mxu0 0.0
    %2514 = vmatpush1.msra.mxu0 %v77
    %2515 = vmatprep.subr.mxu0 0.0
    %2516 = vmatpush1.msra.mxu0 %v78
    %2517 = vmatprep.subr.mxu0 0.0
    %2518 = vmatpush1.msra.mxu0 %v79
    %2519 = vmatprep.subr.mxu0 0.0
    %2520 = vmatpush1.msra.mxu0 %v80
    %2521 = vmatprep.subr.mxu0 0.0
    %2522 = vmatpush1.msra.mxu0 0.0
    %2523 = vmatprep.subr.mxu0 0.0
    %2524 = vmatpush1.msra.mxu0 0.0
    %2525 = vmatprep.subr.mxu0 0.0
    %2526 = vmatpush1.msra.mxu0 0.0
    %2527 = vmatprep.subr.mxu0 0.0
    %2528 = vmatpush1.msra.mxu0 0.0
    %2529 = vmatprep.subr.mxu0 0.0
    %2530 = vmatpush1.msra.mxu0 0.0
    %2531 = vmatprep.subr.mxu0 0.0
    %2532 = vmatpush1.msra.mxu0 0.0
    %2533 = vmatprep.subr.mxu0 0.0
    %2534 = vmatpush1.msra.mxu0 0.0
    %2535 = vmatprep.subr.mxu0 0.0
    %2536 = vmatpush1.msra.mxu0 0.0
    %2537 = vmatprep.subr.mxu0 0.0
    %2538 = vmatpush1.msra.mxu0 0.0
    %2539 = vmatprep.subr.mxu0 0.0
    %2540 = vmatpush1.msra.mxu0 0.0
    %2541 = vmatprep.subr.mxu0 0.0
    %2542 = vmatpush1.msra.mxu0 0.0
    %2543 = vmatprep.subr.mxu0 0.0
    %2544 = vmatpush1.msra.mxu0 0.0
    %2545 = vmatprep.subr.mxu0 0.0
    %2546 = vmatpush1.msra.mxu0 0.0
    %2547 = vmatprep.subr.mxu0 0.0
    %2548 = vmatpush1.msra.mxu0 0.0
    %2549 = vmatprep.subr.mxu0 0.0
    %2550 = vmatpush1.msra.mxu0 0.0
    %2551 = vmatprep.subr.mxu0 0.0
    %2552 = vmatpush1.msra.mxu0 0.0
    %2553 = vmatprep.subr.mxu0 0.0
    %2554 = vmatpush1.msra.mxu0 0.0
    %2555 = vmatprep.subr.mxu0 0.0
    %2556 = vmatpush1.msra.mxu0 0.0
    %2557 = vmatprep.subr.mxu0 0.0
    %2558 = vmatpush1.msra.mxu0 0.0
    %2559 = vmatprep.subr.mxu0 0.0
    %2560 = vmatpush1.msra.mxu0 0.0
    %2561 = vmatprep.subr.mxu0 0.0
    %2562 = vmatpush1.msra.mxu0 0.0
    %2563 = vmatprep.subr.mxu0 0.0
    %2564 = vmatpush1.msra.mxu0 0.0
    %2565 = vmatprep.subr.mxu0 0.0
    %2566 = vmatpush1.msra.mxu0 0.0
    %2567 = vmatprep.subr.mxu0 0.0
    %2568 = vmatpush1.msra.mxu0 0.0
    %2569 = vmatprep.subr.mxu0 0.0
    %2570 = vmatpush1.msra.mxu0 0.0
    %2571 = vmatprep.subr.mxu0 0.0
    %2572 = vmatpush1.msra.mxu0 0.0
    %2573 = vmatprep.subr.mxu0 0.0
    %2574 = vmatpush1.msra.mxu0 0.0
    %2575 = vmatprep.subr.mxu0 0.0
    %2576 = vmatpush1.msra.mxu0 0.0
    %2577 = vmatprep.mubr.f32.mxu0 0.0
    %2578 = vmatmul.mubr.f32.gmra.mrb[0].mxu0 %v2511
    %v2579 = vpop.f32.mrb[0].mxu0
    %v2580 = vadd.f32 0.0, %v2579
    %v2581 = vpop.f32.mrb[0].mxu0
    %2582 = vdwg.mxu0
    %v2583 = vadd.f32 %v2505, %v2580
    %v2584 = vxor.u32 %v2583, 2147483648
    %v2585 = vmul.f32 %v2584, 1.442695
    %v2586 = vpow.pop %v2585
    %v2587 = vadd.f32 %v2586, 1.0
    %v2588 = vrcp.pop %v2587
    %v2589 = vmul.f32 1.0, %v2588
    %v2590 = vadd.f32 %v2580, %v603
    %2592 = vrot.lane.b32.xlu0 %v2590, 64
    %v2593 = vpop.permute.xlu0 %2592
    %v2595 = vmul.f32 %v2589, %v2593
    %2597 = vrot.lane.b32.xlu0 %v2595, 64
    %v2598 = vpop.permute.xlu0 %2597
    %v2600 = vadd.f32 %v2505, %v2598
    %v2601 = vtanh.pop %v2600
    %v2602 = vsub.f32 %v2432, %v2601
    %2604 = vrot.lane.b32.xlu0 %v2602, 96
    %v2605 = vpop.permute.xlu0 %2604
    %v2607 = vmul.f32 %v2589, %v2605
    %2609 = vrot.lane.b32.xlu0 %v2607, 32
    %v2610 = vpop.permute.xlu0 %2609
    %v2612 = vadd.f32 %v2601, %v2610
    %v2613 = vsub.f32 %v2612, %v2432
    %v2614 = vmul.f32 %v2242, %v2613
    %v2615 = vadd.f32 %v2432, %v2614
    %v2616 = vld [vmem:[%s10] sm:$0xff]
    %v2617 = vld [vmem:[%s10 + $0x8] sm:$0xff]
    %v2618 = vld [vmem:[%s10 + $0x10] sm:$0xff]
    %v2619 = vld [vmem:[%s10 + $0x18] sm:$0xff]
    %v2620 = vld [vmem:[%s11] sm:$0x1]
    %v2622 = vlaneseq
    %v2623 = vshrl.u32 %v2622, 7
    %v2624 = vsub.s32 0, %v2623
    %v2625 = vrot.slane %v2620, %v2624
    %2628 = vrot.lane.b32.xlu0 %v2615, 64
    %v2629 = vpop.permute.xlu0 %2628
    %v2630 = vsel %vm193, %v2629, 0
    %2632 = vmatprep.subr.mxu0 0.0
    %2633 = vmatpush1.msra.mxu0 %v2616
    %2634 = vmatprep.subr.mxu0 0.0
    %2635 = vmatpush1.msra.mxu0 %v2617
    %2636 = vmatprep.subr.mxu0 0.0
    %2637 = vmatpush1.msra.mxu0 %v2618
    %2638 = vmatprep.subr.mxu0 0.0
    %2639 = vmatpush1.msra.mxu0 %v2619
    %2640 = vmatprep.subr.mxu0 0.0
    %2641 = vmatpush1.msra.mxu0 0.0
    %2642 = vmatprep.subr.mxu0 0.0
    %2643 = vmatpush1.msra.mxu0 0.0
    %2644 = vmatprep.subr.mxu0 0.0
    %2645 = vmatpush1.msra.mxu0 0.0
    %2646 = vmatprep.subr.mxu0 0.0
    %2647 = vmatpush1.msra.mxu0 0.0
    %2648 = vmatprep.subr.mxu0 0.0
    %2649 = vmatpush1.msra.mxu0 0.0
    %2650 = vmatprep.subr.mxu0 0.0
    %2651 = vmatpush1.msra.mxu0 0.0
    %2652 = vmatprep.subr.mxu0 0.0
    %2653 = vmatpush1.msra.mxu0 0.0
    %2654 = vmatprep.subr.mxu0 0.0
    %2655 = vmatpush1.msra.mxu0 0.0
    %2656 = vmatprep.subr.mxu0 0.0
    %2657 = vmatpush1.msra.mxu0 0.0
    %2658 = vmatprep.subr.mxu0 0.0
    %2659 = vmatpush1.msra.mxu0 0.0
    %2660 = vmatprep.subr.mxu0 0.0
    %2661 = vmatpush1.msra.mxu0 0.0
    %2662 = vmatprep.subr.mxu0 0.0
    %2663 = vmatpush1.msra.mxu0 0.0
    %2664 = vmatprep.subr.mxu0 0.0
    %2665 = vmatpush1.msra.mxu0 0.0
    %2666 = vmatprep.subr.mxu0 0.0
    %2667 = vmatpush1.msra.mxu0 0.0
    %2668 = vmatprep.subr.mxu0 0.0
    %2669 = vmatpush1.msra.mxu0 0.0
    %2670 = vmatprep.subr.mxu0 0.0
    %2671 = vmatpush1.msra.mxu0 0.0
    %2672 = vmatprep.subr.mxu0 0.0
    %2673 = vmatpush1.msra.mxu0 0.0
    %2674 = vmatprep.subr.mxu0 0.0
    %2675 = vmatpush1.msra.mxu0 0.0
    %2676 = vmatprep.subr.mxu0 0.0
    %2677 = vmatpush1.msra.mxu0 0.0
    %2678 = vmatprep.subr.mxu0 0.0
    %2679 = vmatpush1.msra.mxu0 0.0
    %2680 = vmatprep.subr.mxu0 0.0
    %2681 = vmatpush1.msra.mxu0 0.0
    %2682 = vmatprep.subr.mxu0 0.0
    %2683 = vmatpush1.msra.mxu0 0.0
    %2684 = vmatprep.subr.mxu0 0.0
    %2685 = vmatpush1.msra.mxu0 0.0
    %2686 = vmatprep.subr.mxu0 0.0
    %2687 = vmatpush1.msra.mxu0 0.0
    %2688 = vmatprep.subr.mxu0 0.0
    %2689 = vmatpush1.msra.mxu0 0.0
    %2690 = vmatprep.subr.mxu0 0.0
    %2691 = vmatpush1.msra.mxu0 0.0
    %2692 = vmatprep.subr.mxu0 0.0
    %2693 = vmatpush1.msra.mxu0 0.0
    %2694 = vmatprep.subr.mxu0 0.0
    %2695 = vmatpush1.msra.mxu0 0.0
    %2696 = vmatprep.mubr.f32.mxu0 0.0
    %2697 = vmatmul.mubr.f32.gmra.mrb[0].mxu0 %v2630
    %v2698 = vpop.f32.mrb[0].mxu0
    %v2699 = vadd.f32 %v2625, %v2698
    %v2700 = vpop.f32.mrb[0].mxu0
    %2701 = vdwg.mxu0
    %vm2702 = vcmask 27648
    %2703 = vst.msk [vmem:[#allocation2] sm:$0xf] %vm2702, %v2699
    // Predicated region
    $region50: #{my_model_forward.1} parent=1 // pred_check
      _
    $region51: #{my_model_forward.1} parent=1 // pred_check_branch
      %2705 = sbr.rel (0) target = $region53
    $region52: #{my_model_forward.1} parent=1 // pred_region
      %s2707 = ssub.s32 64, 64
      %2708 = vsyncadd [#allocation3], %s2707
      %s2710 = sshll.u32 [#allocation2], 4
      %s2711 = int_to_ptr.vmem [resolvable:$true] %s2710
      %2713 = dma.vmem_to_hbm [thread:$0]  %s2711, 64, %s12, [#allocation3]
    $region53: #{my_model_forward.1} parent=1 // pred_fallthru
      _
    // Predicated region
    $region54: #{my_model_forward.1} parent=1 // pred_check
      _
    $region55: #{my_model_forward.1} parent=1 // pred_check_branch
      %2715 = sbr.rel (0) target = $region57
    $region56: #{my_model_forward.1} parent=1 // pred_region
      %2716 = dma.done [#allocation3], 64
    $region57: #{my_model_forward.1} parent=1 // pred_fallthru
      _
    %2717 = vsyncpa [#allocation3], 1

</llo_original>
